<compile_context>
chip_gen: v5e
topology: v5e:2x2
jax: 0.10.0
libtpu: 0.0.40
codegen_flags: <defaults>
</compile_context>

<pallas_src>
import functools

import jax
import jax.numpy as jnp
from jax.experimental import pallas as pl
from jax.experimental.pallas import tpu as pltpu

LANE = 128   # padded lane width for every feature/output dimension
HALF = 64    # lane offset of the edge stream inside the packed activation
SUB = 16     # bf16 sublane quantum used for the one-hot class padding


def _rup(n, m):
    return -(-n // m) * m


# ---------------------------------------------------------------------------
# Fused kernel
# ---------------------------------------------------------------------------

def _soha_fused_kernel(xid_ref, eid_ref, nseg_ref, eseg_ref, asg_ref,
                       vetab_ref, wf_ref, bf_ref, wc_ref, bc_ref,
                       pool_ref, w1_ref, b1_ref, w2_ref, b2_ref,
                       o_ref, xs0_acc, xs1_acc, c_acc, *, num_layers):
    step = pl.program_id(0)

    @pl.when(step == 0)
    def _init():
        xs0_acc[...] = jnp.zeros_like(xs0_acc)
        xs1_acc[...] = jnp.zeros_like(xs1_acc)
        c_acc[...] = jnp.zeros_like(c_acc)

    tm = xid_ref.shape[1]           # rows per tile
    bp = xs0_acc.shape[0]           # padded batch rows
    tp = vetab_ref.shape[0]         # padded (atom + bond) class count

    # ---- fused node+edge embedding: ONE (tp, tm) one-hot, ONE MXU matmul.
    # Edge class ids were pre-shifted by TPV in the wrapper, so node / edge
    # one-hot rows are disjoint; the combined table writes the node embed to
    # lanes [0:d] and the edge embed to lanes [HALF:HALF+d].
    cls_iota = jax.lax.broadcasted_iota(jnp.int32, (tp, tm), 0)
    oh = ((cls_iota == xid_ref[...]) | (cls_iota == eid_ref[...])
          ).astype(jnp.bfloat16)
    h = jax.lax.dot_general(oh, vetab_ref[...], (((0,), (0,)), ((), ())),
                            preferred_element_type=jnp.float32)   # (tm, LANE)
    h_b = h.astype(jnp.bfloat16)    # reused by cluster-attr dot AND conv 0

    # ---- cluster attribute accumulation (node lanes only; edge-lane garbage
    # is killed by the zero rows of wc).
    c_acc[...] += jnp.dot(asg_ref[...], h_b, preferred_element_type=jnp.float32)

    # ---- fused node+edge conv stack: block-diagonal (LANE, LANE) weights.
    for layer in range(num_layers):
        h = jnp.maximum(
            jnp.dot(h_b, wf_ref[layer], preferred_element_type=jnp.float32)
            + bf_ref[layer], 0.0)
        h_b = h.astype(jnp.bfloat16)

    # ---- graph readouts (scatter-sum): one shared (bp, tm) segment iota.
    seg_iota = jax.lax.broadcasted_iota(jnp.int32, (bp, tm), 0)
    xs0_acc[...] += jnp.dot((seg_iota == nseg_ref[...]).astype(jnp.bfloat16),
                            h_b, preferred_element_type=jnp.float32)
    xs1_acc[...] += jnp.dot((seg_iota == eseg_ref[...]).astype(jnp.bfloat16),
                            h_b, preferred_element_type=jnp.float32)

    # ---- finalize: cluster convs, cluster pool, fused 2-stage readout head.
    @pl.when(step == pl.num_programs(0) - 1)
    def _finalize():
        c = c_acc[...]
        for layer in range(num_layers):
            c = jnp.maximum(
                jnp.dot(c.astype(jnp.bfloat16), wc_ref[layer],
                        preferred_element_type=jnp.float32) + bc_ref[layer],
                0.0)
        xs2 = jnp.dot(pool_ref[...], c.astype(jnp.bfloat16),
                      preferred_element_type=jnp.float32)          # (BP, LANE)
        # Head stage 1: three row blocks of the block-diag lin1 summed into a
        # (BP, 3*LANE) accumulator -- no lane-axis concatenate.
        h1 = (jnp.dot(xs0_acc[...].astype(jnp.bfloat16), w1_ref[0],
                      preferred_element_type=jnp.float32)
              + jnp.dot(xs1_acc[...].astype(jnp.bfloat16), w1_ref[1],
                        preferred_element_type=jnp.float32)
              + jnp.dot(xs2.astype(jnp.bfloat16), w1_ref[2],
                        preferred_element_type=jnp.float32)
              + b1_ref[...])
        h1 = jnp.maximum(h1, 0.0)
        o_ref[...] = (jnp.dot(h1.astype(jnp.bfloat16), w2_ref[...],
                              preferred_element_type=jnp.float32) + b2_ref[...])


# ---------------------------------------------------------------------------
# Wrapper: parameter prep (padding / packing, done once) + pallas_call
# ---------------------------------------------------------------------------

def soha_forward(params, x0, e0, batch, edge_index, batch_size, num_clusters,
                 readout="sum", row_tile=1024):
    assert row_tile % 128 == 0
    n_nodes, n_edges = x0.shape[0], e0.shape[0]
    atom_types, embed_dim = params["v_embed"].shape
    bond_types = params["e_embed"].shape[0]
    hidden = params["convs"][0]["wx"].shape[1]
    fh = params["lin1s"][0][0].shape[1]
    out_size = params["lin2_w"].shape[1]
    num_layers = len(params["convs"])
    # node / edge streams are packed into lane halves of one 128-lane activation
    assert max(embed_dim, hidden) <= HALF and max(fh, out_size) <= LANE

    nmax = n_nodes // batch_size
    assert nmax * batch_size == n_nodes
    bk = batch_size * num_clusters
    BP = _rup(batch_size, 8)                  # padded batch rows
    BKP = _rup(bk, 8)                         # padded cluster rows
    TPV = _rup(atom_types, SUB)               # one-hot class padding (bf16 min)
    TPE = _rup(bond_types, SUB)
    TP = TPV + TPE

    # ---- row padding: nodes and edges share one tiled row axis --------------
    rows = _rup(max(n_nodes, n_edges, row_tile), row_tile)

    def pad_ids(ids, n, offset):
        # pad value TP is out of range of the combined class iota -> no embed
        return jnp.full((1, rows), TP, jnp.int32).at[0, :n].set(
            ids.astype(jnp.int32) + offset)

    def pad_seg(seg, n):  # pad value BP is out of range -> dropped in-kernel
        return jnp.full((1, rows), BP, jnp.int32).at[0, :n].set(
            seg.astype(jnp.int32))

    xid = pad_ids(x0[:, 0], n_nodes, 0)
    eid = pad_ids(e0[:, 0], n_edges, TPV)     # edge classes shifted past TPV
    nseg = pad_seg(batch, n_nodes)
    eseg = pad_seg(batch[edge_index[0]], n_edges)

    # block-diagonal soft assignment so that c_flat = asg @ x_embed
    a_t = jnp.transpose(params["cluster_assign"], (0, 2, 1))    # (B, K, nmax)
    asg = jnp.zeros((BKP, rows), jnp.float32)
    for b in range(batch_size):
        asg = asg.at[b * num_clusters:(b + 1) * num_clusters,
                     b * nmax:(b + 1) * nmax].set(a_t[b])
    asg = asg.astype(jnp.bfloat16)

    # combined class table: node embed -> lanes [0:d], edge embed -> [HALF:HALF+d]
    vetab = jnp.zeros((TP, LANE), jnp.float32)
    vetab = vetab.at[:atom_types, :embed_dim].set(params["v_embed"])
    vetab = vetab.at[TPV:TPV + bond_types, HALF:HALF + embed_dim].set(
        params["e_embed"])
    vetab = vetab.astype(jnp.bfloat16)

    # fused node+edge conv weights: block-diagonal inside the 128 lanes;
    # cluster conv weights use lanes [0:hidden] only.
    wf = jnp.zeros((num_layers, LANE, LANE), jnp.float32)
    bf = jnp.zeros((num_layers, 1, LANE), jnp.float32)
    wc = jnp.zeros((num_layers, LANE, LANE), jnp.float32)
    bc = jnp.zeros((num_layers, 1, LANE), jnp.float32)
    for i, lw in enumerate(params["convs"]):
        din = lw["wx"].shape[0]
        wf = wf.at[i, :din, :hidden].set(lw["wx"])
        wf = wf.at[i, HALF:HALF + din, HALF:HALF + hidden].set(lw["we"])
        bf = bf.at[i, 0, :hidden].set(lw["bx"])
        bf = bf.at[i, 0, HALF:HALF + hidden].set(lw["be"])
        wc = wc.at[i, :din, :hidden].set(lw["wc"])
        bc = bc.at[i, 0, :hidden].set(lw["bc"])
    wf = wf.astype(jnp.bfloat16)
    wc = wc.astype(jnp.bfloat16)

    # cluster pool over the K clusters of each graph (sum or mean)
    # TODO(synk): readout='mean' for the node/edge scatter (per-segment counts)
    # is not implemented; 'sum' matches the reference used here.
    val = 1.0 if readout == "sum" else 1.0 / num_clusters
    pool = jnp.zeros((BP, BKP), jnp.float32)
    for b in range(batch_size):
        pool = pool.at[b, b * num_clusters:(b + 1) * num_clusters].set(val)
    pool = pool.astype(jnp.bfloat16)

    # head: block-diagonal lin1 split into three (LANE, 3*LANE) row blocks.
    # Branch 0 reads node lanes [0:hidden], branch 1 reads edge lanes
    # [HALF:HALF+hidden], branch 2 reads cluster lanes [0:hidden].
    w1s = jnp.zeros((3, LANE, 3 * LANE), jnp.float32)
    b1 = jnp.zeros((1, 3 * LANE), jnp.float32)
    in_offs = (0, HALF, 0)
    for i, (w, b) in enumerate(params["lin1s"]):
        w1s = w1s.at[i, in_offs[i]:in_offs[i] + hidden,
                     i * LANE:i * LANE + fh].set(w)
        b1 = b1.at[0, i * LANE:i * LANE + fh].set(b)
    w1s = w1s.astype(jnp.bfloat16)
    w2 = jnp.zeros((3 * LANE, LANE), jnp.float32)
    for i in range(3):
        w2 = w2.at[i * LANE:i * LANE + fh, :out_size].set(
            params["lin2_w"][i * fh:(i + 1) * fh])
    w2 = w2.astype(jnp.bfloat16)
    b2 = jnp.zeros((1, LANE), jnp.float32).at[0, :out_size].set(params["lin2_b"])

    # ---- fused pallas call ---------------------------------------------------
    grid = (rows // row_tile,)
    row_spec = pl.BlockSpec((1, row_tile), lambda i: (0, i))
    asg_spec = pl.BlockSpec((BKP, row_tile), lambda i: (0, i))

    def const_spec(shape):
        nd = len(shape)
        return pl.BlockSpec(shape, lambda i, _nd=nd: (0,) * _nd)

    out = pl.pallas_call(
        functools.partial(_soha_fused_kernel, num_layers=num_layers),
        grid=grid,
        in_specs=[row_spec, row_spec, row_spec, row_spec, asg_spec,
                  const_spec(vetab.shape),
                  const_spec(wf.shape), const_spec(bf.shape),
                  const_spec(wc.shape), const_spec(bc.shape),
                  const_spec(pool.shape),
                  const_spec(w1s.shape), const_spec(b1.shape),
                  const_spec(w2.shape), const_spec(b2.shape)],
        out_specs=pl.BlockSpec((BP, LANE), lambda i: (0, 0)),
        out_shape=jax.ShapeDtypeStruct((BP, LANE), jnp.float32),
        scratch_shapes=[pltpu.VMEM((BP, LANE), jnp.float32),
                        pltpu.VMEM((BP, LANE), jnp.float32),
                        pltpu.VMEM((BKP, LANE), jnp.float32)],
        compiler_params=pltpu.CompilerParams(
            dimension_semantics=("arbitrary",)),   # carried accumulators
    )(xid, eid, nseg, eseg, asg, vetab, wf, bf, wc, bc, pool, w1s, b1, w2, b2)

    return out[:batch_size, :out_size]


# ---------------------------------------------------------------------------
# Pure-JAX f32 reference (same stand-in semantics) for validation
# ---------------------------------------------------------------------------

def soha_reference(params, x0, e0, batch, edge_index, batch_size, num_clusters,
                   readout="sum"):
    x = params["v_embed"][x0[:, 0].astype(jnp.int32)]
    e = params["e_embed"][e0[:, 0].astype(jnp.int32)]
    nmax = x.shape[0] // batch_size
    dense_x = x.reshape(batch_size, nmax, -1)
    c = jnp.einsum("bnk,bnd->bkd", params["cluster_assign"], dense_x)
    c = c.reshape(batch_size * num_clusters, -1)
    for lw in params["convs"]:
        x = jax.nn.relu(x @ lw["wx"] + lw["bx"])
        e = jax.nn.relu(e @ lw["we"] + lw["be"])
        c = jax.nn.relu(c @ lw["wc"] + lw["bc"])
    c = c.reshape(batch_size, num_clusters, -1)
    xs0 = jnp.zeros((batch_size, x.shape[1]), x.dtype).at[batch].add(x)
    ebatch = batch[edge_index[0]]
    xs1 = jnp.zeros((batch_size, e.shape[1]), e.dtype).at[ebatch].add(e)
    xs2 = c.sum(axis=1) if readout == "sum" else c.mean(axis=1)
    hs = [jax.nn.relu(v @ w + b)
          for v, (w, b) in zip([xs0, xs1, xs2], params["lin1s"])]
    return jnp.concatenate(hs, axis=-1) @ params["lin2_w"] + params["lin2_b"]


# ---------------------------------------------------------------------------
# Deterministic parameter / input construction + run
# ---------------------------------------------------------------------------

if __name__ == "__main__":
    key = jax.random.PRNGKey(0)
    keys = jax.random.split(key, 12)

    atom_types, bond_types = 5, 4
    embed_dim, hidden, out_size = 8, 16, 3
    num_layers, fh_mult = 2, 2
    B, nmax, K = 2, 4, 4            # cluster_nums=(4,)
    N = B * nmax
    E = 12

    # --- synthetic graph data ---
    x0 = jax.random.randint(keys[0], (N, 1), 0, atom_types, dtype=jnp.int32)
    e0 = jax.random.randint(keys[1], (E, 1), 0, bond_types, dtype=jnp.int32)
    batch = jnp.repeat(jnp.arange(B, dtype=jnp.int32), nmax)
    src = jax.random.randint(keys[2], (E,), 0, nmax, dtype=jnp.int32)
    dst = jax.random.randint(keys[3], (E,), 0, nmax, dtype=jnp.int32)
    goff = jnp.repeat(jnp.arange(B, dtype=jnp.int32), E // B) * nmax
    edge_index = jnp.stack([src + goff, dst + goff])            # (2, E)

    # --- deterministic parameters ---
    def lin_init(k, fan_in, fan_out):
        kw, kb = jax.random.split(k)
        w = jax.random.normal(kw, (fan_in, fan_out), jnp.float32) / jnp.sqrt(fan_in)
        b = 0.01 * jax.random.normal(kb, (fan_out,), jnp.float32)
        return w, b

    params = {}
    params["v_embed"] = jax.random.normal(keys[4], (atom_types, embed_dim), jnp.float32)
    params["e_embed"] = jax.random.normal(keys[5], (bond_types, embed_dim), jnp.float32)
    params["cluster_assign"] = jax.nn.softmax(
        jax.random.normal(keys[6], (B, nmax, K), jnp.float32), axis=-1)

    convs = []
    ck = jax.random.split(keys[7], num_layers * 3)
    for i in range(num_layers):
        din = embed_dim if i == 0 else hidden
        wx_, bx_ = lin_init(ck[3 * i + 0], din, hidden)
        we_, be_ = lin_init(ck[3 * i + 1], din, hidden)
        wc_, bc_ = lin_init(ck[3 * i + 2], din, hidden)
        convs.append(dict(wx=wx_, bx=bx_, we=we_, be=be_, wc=wc_, bc=bc_))
    params["convs"] = convs

    fh = fh_mult * hidden
    lk = jax.random.split(keys[8], 3)
    params["lin1s"] = [lin_init(lk[i], hidden, fh) for i in range(3)]
    params["lin2_w"], params["lin2_b"] = lin_init(keys[9], 3 * fh, out_size)

    out = soha_forward(params, x0, e0, batch, edge_index, B, K, readout="sum")
    out = jax.block_until_ready(out)
    ref = soha_reference(params, x0, e0, batch, edge_index, B, K, readout="sum")

    assert out.shape == (B, out_size)
    assert bool(jnp.all(jnp.isfinite(out)))
    # tolerance covers bf16 rounding of weights/assignments (f32 accumulation)
    assert bool(jnp.allclose(out, ref, rtol=0.05, atol=0.1)), (out, ref)
    print("KERNEL_OK")
</pallas_src>

<mosaic_0001>
module attributes {stable_mosaic.version = 11 : i64} {
  func.func @_soha_fused_kernel(%arg0: i32, %arg1: memref<1x1024xi32, #tpu.memory_space<vmem>>, %arg2: memref<1x1024xi32, #tpu.memory_space<vmem>>, %arg3: memref<1x1024xi32, #tpu.memory_space<vmem>>, %arg4: memref<1x1024xi32, #tpu.memory_space<vmem>>, %arg5: memref<8x1024xbf16, #tpu.memory_space<vmem>>, %arg6: memref<32x128xbf16, #tpu.memory_space<vmem>>, %arg7: memref<2x128x128xbf16, #tpu.memory_space<vmem>>, %arg8: memref<2x1x128xf32, #tpu.memory_space<vmem>>, %arg9: memref<2x128x128xbf16, #tpu.memory_space<vmem>>, %arg10: memref<2x1x128xf32, #tpu.memory_space<vmem>>, %arg11: memref<8x8xbf16, #tpu.memory_space<vmem>>, %arg12: memref<3x128x384xbf16, #tpu.memory_space<vmem>>, %arg13: memref<1x384xf32, #tpu.memory_space<vmem>>, %arg14: memref<384x128xbf16, #tpu.memory_space<vmem>>, %arg15: memref<1x128xf32, #tpu.memory_space<vmem>>, %arg16: memref<8x128xf32, #tpu.memory_space<vmem>>, %arg17: memref<8x128xf32, #tpu.memory_space<vmem>>, %arg18: memref<8x128xf32, #tpu.memory_space<vmem>>, %arg19: memref<8x128xf32, #tpu.memory_space<vmem>>) attributes {dimension_semantics = [#tpu.dimension_semantics<arbitrary>], iteration_bounds = array<i64: 1>, scalar_prefetch = 0 : i64, scratch_operands = 3 : i64, tpu.core_type = #tpu.core_type<tc>, window_params = [{transform_indices = @transform_0, window_bounds = array<i64: 1, 1024>}, {transform_indices = @transform_1, window_bounds = array<i64: 1, 1024>}, {transform_indices = @transform_2, window_bounds = array<i64: 1, 1024>}, {transform_indices = @transform_3, window_bounds = array<i64: 1, 1024>}, {transform_indices = @transform_4, window_bounds = array<i64: 8, 1024>}, {pipeline_mode = #tpu.pipeline_mode<synchronous>, transform_indices = @transform_5, window_bounds = array<i64: 32, 128>}, {pipeline_mode = #tpu.pipeline_mode<synchronous>, transform_indices = @transform_6, window_bounds = array<i64: 2, 128, 128>}, {pipeline_mode = #tpu.pipeline_mode<synchronous>, transform_indices = @transform_7, window_bounds = array<i64: 2, 1, 128>}, {pipeline_mode = #tpu.pipeline_mode<synchronous>, transform_indices = @transform_8, window_bounds = array<i64: 2, 128, 128>}, {pipeline_mode = #tpu.pipeline_mode<synchronous>, transform_indices = @transform_9, window_bounds = array<i64: 2, 1, 128>}, {pipeline_mode = #tpu.pipeline_mode<synchronous>, transform_indices = @transform_10, window_bounds = array<i64: 8, 8>}, {pipeline_mode = #tpu.pipeline_mode<synchronous>, transform_indices = @transform_11, window_bounds = array<i64: 3, 128, 384>}, {pipeline_mode = #tpu.pipeline_mode<synchronous>, transform_indices = @transform_12, window_bounds = array<i64: 1, 384>}, {pipeline_mode = #tpu.pipeline_mode<synchronous>, transform_indices = @transform_13, window_bounds = array<i64: 384, 128>}, {pipeline_mode = #tpu.pipeline_mode<synchronous>, transform_indices = @transform_14, window_bounds = array<i64: 1, 128>}, {pipeline_mode = #tpu.pipeline_mode<synchronous>, transform_indices = @transform_15, window_bounds = array<i64: 8, 128>}]} {
    %c0_i32 = arith.constant 0 : i32
    %0 = arith.cmpi eq, %arg0, %c0_i32 : i32
    %1 = arith.extui %0 : i1 to i32
    %c0_i32_0 = arith.constant 0 : i32
    %2 = arith.cmpi ne, %1, %c0_i32_0 : i32
    scf.if %2 {
      %cst_44 = arith.constant 0.000000e+00 : f32
      %66 = vector.broadcast %cst_44 : f32 to vector<8x128xf32>
      %c0_45 = arith.constant 0 : index
      %c0_46 = arith.constant 0 : index
      %67 = vector.load %arg17[%c0_45, %c0_46] : memref<8x128xf32, #tpu.memory_space<vmem>>, vector<8x128xf32>
      tpu.vector_store %arg17[%c0_45, %c0_46], %66 {strides = array<i32>} : memref<8x128xf32, #tpu.memory_space<vmem>>, vector<8x128xf32>,
      %cst_47 = arith.constant 0.000000e+00 : f32
      %68 = vector.broadcast %cst_47 : f32 to vector<8x128xf32>
      %c0_48 = arith.constant 0 : index
      %c0_49 = arith.constant 0 : index
      %69 = vector.load %arg18[%c0_48, %c0_49] : memref<8x128xf32, #tpu.memory_space<vmem>>, vector<8x128xf32>
      tpu.vector_store %arg18[%c0_48, %c0_49], %68 {strides = array<i32>} : memref<8x128xf32, #tpu.memory_space<vmem>>, vector<8x128xf32>,
      %cst_50 = arith.constant 0.000000e+00 : f32
      %70 = vector.broadcast %cst_50 : f32 to vector<8x128xf32>
      %c0_51 = arith.constant 0 : index
      %c0_52 = arith.constant 0 : index
      %71 = vector.load %arg19[%c0_51, %c0_52] : memref<8x128xf32, #tpu.memory_space<vmem>>, vector<8x128xf32>
      tpu.vector_store %arg19[%c0_51, %c0_52], %70 {strides = array<i32>} : memref<8x128xf32, #tpu.memory_space<vmem>>, vector<8x128xf32>,
    } else {
    }
    %3 = tpu.iota {dimensions = array<i32: 0>} : vector<32x1024xi32>
    %c0 = arith.constant 0 : index
    %c0_1 = arith.constant 0 : index
    %4 = vector.load %arg1[%c0, %c0_1] : memref<1x1024xi32, #tpu.memory_space<vmem>>, vector<1x1024xi32>
    %5 = vector.broadcast %4 : vector<1x1024xi32> to vector<32x1024xi32>
    %6 = arith.cmpi eq, %3, %5 : vector<32x1024xi32>
    %c0_2 = arith.constant 0 : index
    %c0_3 = arith.constant 0 : index
    %7 = vector.load %arg2[%c0_2, %c0_3] : memref<1x1024xi32, #tpu.memory_space<vmem>>, vector<1x1024xi32>
    %8 = vector.broadcast %7 : vector<1x1024xi32> to vector<32x1024xi32>
    %9 = arith.cmpi eq, %3, %8 : vector<32x1024xi32>
    %10 = arith.ori %6, %9 : vector<32x1024xi1>
    %11 = arith.extui %10 : vector<32x1024xi1> to vector<32x1024xi32>
    %12 = arith.sitofp %11 : vector<32x1024xi32> to vector<32x1024xf32>
    %13 = arith.truncf %12 : vector<32x1024xf32> to vector<32x1024xbf16>
    %c0_4 = arith.constant 0 : index
    %c0_5 = arith.constant 0 : index
    %14 = vector.load %arg6[%c0_4, %c0_5] : memref<32x128xbf16, #tpu.memory_space<vmem>>, vector<32x128xbf16>
    %cst = arith.constant dense<0.000000e+00> : vector<1024x128xf32>
    %15 = tpu.matmul %13, %14, %cst {dimension_numbers = #tpu.dot_dimension_numbers<[0], [0], [1], [1], [0, 1, 1, 1], [], []>} : vector<32x1024xbf16>, vector<32x128xbf16>, vector<1024x128xf32> -> vector<1024x128xf32>
    %16 = arith.truncf %15 : vector<1024x128xf32> to vector<1024x128xbf16>
    %c0_6 = arith.constant 0 : index
    %c0_7 = arith.constant 0 : index
    %17 = vector.load %arg19[%c0_6, %c0_7] : memref<8x128xf32, #tpu.memory_space<vmem>>, vector<8x128xf32>
    %c0_8 = arith.constant 0 : index
    %c0_9 = arith.constant 0 : index
    %18 = vector.load %arg5[%c0_8, %c0_9] : memref<8x1024xbf16, #tpu.memory_space<vmem>>, vector<8x1024xbf16>
    %cst_10 = arith.constant dense<0.000000e+00> : vector<8x128xf32>
    %19 = tpu.matmul %18, %16, %cst_10 {dimension_numbers = #tpu.dot_dimension_numbers<[1], [0], [0], [1], [0, 0, 1, 1], [], []>} : vector<8x1024xbf16>, vector<1024x128xbf16>, vector<8x128xf32> -> vector<8x128xf32>
    %20 = arith.addf %17, %19 : vector<8x128xf32>
    %c0_11 = arith.constant 0 : index
    %c0_12 = arith.constant 0 : index
    %21 = vector.load %arg19[%c0_11, %c0_12] : memref<8x128xf32, #tpu.memory_space<vmem>>, vector<8x128xf32>
    tpu.vector_store %arg19[%c0_11, %c0_12], %20 {strides = array<i32>} : memref<8x128xf32, #tpu.memory_space<vmem>>, vector<8x128xf32>,
    %c0_13 = arith.constant 0 : index
    %c0_14 = arith.constant 0 : index
    %c0_15 = arith.constant 0 : index
    %22 = vector.load %arg7[%c0_13, %c0_14, %c0_15] : memref<2x128x128xbf16, #tpu.memory_space<vmem>>, vector<1x128x128xbf16>
    %23 = vector.shape_cast %22 : vector<1x128x128xbf16> to vector<128x128xbf16>
    %cst_16 = arith.constant dense<0.000000e+00> : vector<1024x128xf32>
    %24 = tpu.matmul %16, %23, %cst_16 {dimension_numbers = #tpu.dot_dimension_numbers<[1], [0], [0], [1], [0, 0, 1, 1], [], []>} : vector<1024x128xbf16>, vector<128x128xbf16>, vector<1024x128xf32> -> vector<1024x128xf32>
    %c0_17 = arith.constant 0 : index
    %c0_18 = arith.constant 0 : index
    %c0_19 = arith.constant 0 : index
    %25 = vector.load %arg8[%c0_17, %c0_18, %c0_19] : memref<2x1x128xf32, #tpu.memory_space<vmem>>, vector<1x1x128xf32>
    %26 = vector.shape_cast %25 : vector<1x1x128xf32> to vector<1x128xf32>
    %27 = vector.broadcast %26 : vector<1x128xf32> to vector<1024x128xf32>
    %28 = arith.addf %24, %27 : vector<1024x128xf32>
    %cst_20 = arith.constant 0.000000e+00 : f32
    %29 = vector.broadcast %cst_20 : f32 to vector<1024x128xf32>
    %30 = arith.maximumf %28, %29 : vector<1024x128xf32>
    %31 = arith.truncf %30 : vector<1024x128xf32> to vector<1024x128xbf16>
    %c1 = arith.constant 1 : index
    %c0_21 = arith.constant 0 : index
    %c0_22 = arith.constant 0 : index
    %32 = vector.load %arg7[%c1, %c0_21, %c0_22] : memref<2x128x128xbf16, #tpu.memory_space<vmem>>, vector<1x128x128xbf16>
    %33 = vector.shape_cast %32 : vector<1x128x128xbf16> to vector<128x128xbf16>
    %cst_23 = arith.constant dense<0.000000e+00> : vector<1024x128xf32>
    %34 = tpu.matmul %31, %33, %cst_23 {dimension_numbers = #tpu.dot_dimension_numbers<[1], [0], [0], [1], [0, 0, 1, 1], [], []>} : vector<1024x128xbf16>, vector<128x128xbf16>, vector<1024x128xf32> -> vector<1024x128xf32>
    %c1_24 = arith.constant 1 : index
    %c0_25 = arith.constant 0 : index
    %c0_26 = arith.constant 0 : index
    %35 = vector.load %arg8[%c1_24, %c0_25, %c0_26] : memref<2x1x128xf32, #tpu.memory_space<vmem>>, vector<1x1x128xf32>
    %36 = vector.shape_cast %35 : vector<1x1x128xf32> to vector<1x128xf32>
    %37 = vector.broadcast %36 : vector<1x128xf32> to vector<1024x128xf32>
    %38 = arith.addf %34, %37 : vector<1024x128xf32>
    %cst_27 = arith.constant 0.000000e+00 : f32
    %39 = vector.broadcast %cst_27 : f32 to vector<1024x128xf32>
    %40 = arith.maximumf %38, %39 : vector<1024x128xf32>
    %41 = arith.truncf %40 : vector<1024x128xf32> to vector<1024x128xbf16>
    %42 = tpu.iota {dimensions = array<i32: 0>} : vector<8x1024xi32>
    %c0_28 = arith.constant 0 : index
    %c0_29 = arith.constant 0 : index
    %43 = vector.load %arg17[%c0_28, %c0_29] : memref<8x128xf32, #tpu.memory_space<vmem>>, vector<8x128xf32>
    %c0_30 = arith.constant 0 : index
    %c0_31 = arith.constant 0 : index
    %44 = vector.load %arg3[%c0_30, %c0_31] : memref<1x1024xi32, #tpu.memory_space<vmem>>, vector<1x1024xi32>
    %45 = vector.broadcast %44 : vector<1x1024xi32> to vector<8x1024xi32>
    %46 = arith.cmpi eq, %42, %45 : vector<8x1024xi32>
    %47 = arith.extui %46 : vector<8x1024xi1> to vector<8x1024xi32>
    %48 = arith.sitofp %47 : vector<8x1024xi32> to vector<8x1024xf32>
    %49 = arith.truncf %48 : vector<8x1024xf32> to vector<8x1024xbf16>
    %cst_32 = arith.constant dense<0.000000e+00> : vector<8x128xf32>
    %50 = tpu.matmul %49, %41, %cst_32 {dimension_numbers = #tpu.dot_dimension_numbers<[1], [0], [0], [1], [0, 0, 1, 1], [], []>} : vector<8x1024xbf16>, vector<1024x128xbf16>, vector<8x128xf32> -> vector<8x128xf32>
    %51 = arith.addf %43, %50 : vector<8x128xf32>
    %c0_33 = arith.constant 0 : index
    %c0_34 = arith.constant 0 : index
    %52 = vector.load %arg17[%c0_33, %c0_34] : memref<8x128xf32, #tpu.memory_space<vmem>>, vector<8x128xf32>
    tpu.vector_store %arg17[%c0_33, %c0_34], %51 {strides = array<i32>} : memref<8x128xf32, #tpu.memory_space<vmem>>, vector<8x128xf32>,
    %c0_35 = arith.constant 0 : index
    %c0_36 = arith.constant 0 : index
    %53 = vector.load %arg18[%c0_35, %c0_36] : memref<8x128xf32, #tpu.memory_space<vmem>>, vector<8x128xf32>
    %c0_37 = arith.constant 0 : index
    %c0_38 = arith.constant 0 : index
    %54 = vector.load %arg4[%c0_37, %c0_38] : memref<1x1024xi32, #tpu.memory_space<vmem>>, vector<1x1024xi32>
    %55 = vector.broadcast %54 : vector<1x1024xi32> to vector<8x1024xi32>
    %56 = arith.cmpi eq, %42, %55 : vector<8x1024xi32>
    %57 = arith.extui %56 : vector<8x1024xi1> to vector<8x1024xi32>
    %58 = arith.sitofp %57 : vector<8x1024xi32> to vector<8x1024xf32>
    %59 = arith.truncf %58 : vector<8x1024xf32> to vector<8x1024xbf16>
    %cst_39 = arith.constant dense<0.000000e+00> : vector<8x128xf32>
    %60 = tpu.matmul %59, %41, %cst_39 {dimension_numbers = #tpu.dot_dimension_numbers<[1], [0], [0], [1], [0, 0, 1, 1], [], []>} : vector<8x1024xbf16>, vector<1024x128xbf16>, vector<8x128xf32> -> vector<8x128xf32>
    %61 = arith.addf %53, %60 : vector<8x128xf32>
    %c0_40 = arith.constant 0 : index
    %c0_41 = arith.constant 0 : index
    %62 = vector.load %arg18[%c0_40, %c0_41] : memref<8x128xf32, #tpu.memory_space<vmem>>, vector<8x128xf32>
    tpu.vector_store %arg18[%c0_40, %c0_41], %61 {strides = array<i32>} : memref<8x128xf32, #tpu.memory_space<vmem>>, vector<8x128xf32>,
    %c0_i32_42 = arith.constant 0 : i32
    %63 = arith.cmpi eq, %arg0, %c0_i32_42 : i32
    %64 = arith.extui %63 : i1 to i32
    %c0_i32_43 = arith.constant 0 : i32
    %65 = arith.cmpi ne, %64, %c0_i32_43 : i32
    scf.if %65 {
      %c0_44 = arith.constant 0 : index
      %c0_45 = arith.constant 0 : index
      %66 = vector.load %arg19[%c0_44, %c0_45] : memref<8x128xf32, #tpu.memory_space<vmem>>, vector<8x128xf32>
      %67 = arith.truncf %66 : vector<8x128xf32> to vector<8x128xbf16>
      %c0_46 = arith.constant 0 : index
      %c0_47 = arith.constant 0 : index
      %c0_48 = arith.constant 0 : index
      %68 = vector.load %arg9[%c0_46, %c0_47, %c0_48] : memref<2x128x128xbf16, #tpu.memory_space<vmem>>, vector<1x128x128xbf16>
      %69 = vector.shape_cast %68 : vector<1x128x128xbf16> to vector<128x128xbf16>
      %cst_49 = arith.constant dense<0.000000e+00> : vector<8x128xf32>
      %70 = tpu.matmul %67, %69, %cst_49 {dimension_numbers = #tpu.dot_dimension_numbers<[1], [0], [0], [1], [0, 0, 1, 1], [], []>} : vector<8x128xbf16>, vector<128x128xbf16>, vector<8x128xf32> -> vector<8x128xf32>
      %c0_50 = arith.constant 0 : index
      %c0_51 = arith.constant 0 : index
      %c0_52 = arith.constant 0 : index
      %71 = vector.load %arg10[%c0_50, %c0_51, %c0_52] : memref<2x1x128xf32, #tpu.memory_space<vmem>>, vector<1x1x128xf32>
      %72 = vector.shape_cast %71 : vector<1x1x128xf32> to vector<1x128xf32>
      %73 = vector.broadcast %72 : vector<1x128xf32> to vector<8x128xf32>
      %74 = arith.addf %70, %73 : vector<8x128xf32>
      %cst_53 = arith.constant 0.000000e+00 : f32
      %75 = vector.broadcast %cst_53 : f32 to vector<8x128xf32>
      %76 = arith.maximumf %74, %75 : vector<8x128xf32>
      %77 = arith.truncf %76 : vector<8x128xf32> to vector<8x128xbf16>
      %c1_54 = arith.constant 1 : index
      %c0_55 = arith.constant 0 : index
      %c0_56 = arith.constant 0 : index
      %78 = vector.load %arg9[%c1_54, %c0_55, %c0_56] : memref<2x128x128xbf16, #tpu.memory_space<vmem>>, vector<1x128x128xbf16>
      %79 = vector.shape_cast %78 : vector<1x128x128xbf16> to vector<128x128xbf16>
      %cst_57 = arith.constant dense<0.000000e+00> : vector<8x128xf32>
      %80 = tpu.matmul %77, %79, %cst_57 {dimension_numbers = #tpu.dot_dimension_numbers<[1], [0], [0], [1], [0, 0, 1, 1], [], []>} : vector<8x128xbf16>, vector<128x128xbf16>, vector<8x128xf32> -> vector<8x128xf32>
      %c1_58 = arith.constant 1 : index
      %c0_59 = arith.constant 0 : index
      %c0_60 = arith.constant 0 : index
      %81 = vector.load %arg10[%c1_58, %c0_59, %c0_60] : memref<2x1x128xf32, #tpu.memory_space<vmem>>, vector<1x1x128xf32>
      %82 = vector.shape_cast %81 : vector<1x1x128xf32> to vector<1x128xf32>
      %83 = vector.broadcast %82 : vector<1x128xf32> to vector<8x128xf32>
      %84 = arith.addf %80, %83 : vector<8x128xf32>
      %cst_61 = arith.constant 0.000000e+00 : f32
      %85 = vector.broadcast %cst_61 : f32 to vector<8x128xf32>
      %86 = arith.maximumf %84, %85 : vector<8x128xf32>
      %c0_62 = arith.constant 0 : index
      %c0_63 = arith.constant 0 : index
      %87 = vector.load %arg11[%c0_62, %c0_63] : memref<8x8xbf16, #tpu.memory_space<vmem>>, vector<8x8xbf16>
      %88 = arith.truncf %86 : vector<8x128xf32> to vector<8x128xbf16>
      %cst_64 = arith.constant dense<0.000000e+00> : vector<8x128xf32>
      %89 = tpu.matmul %87, %88, %cst_64 {dimension_numbers = #tpu.dot_dimension_numbers<[1], [0], [0], [1], [0, 0, 1, 1], [], []>} : vector<8x8xbf16>, vector<8x128xbf16>, vector<8x128xf32> -> vector<8x128xf32>
      %c0_65 = arith.constant 0 : index
      %c0_66 = arith.constant 0 : index
      %90 = vector.load %arg17[%c0_65, %c0_66] : memref<8x128xf32, #tpu.memory_space<vmem>>, vector<8x128xf32>
      %91 = arith.truncf %90 : vector<8x128xf32> to vector<8x128xbf16>
      %c0_67 = arith.constant 0 : index
      %c0_68 = arith.constant 0 : index
      %c0_69 = arith.constant 0 : index
      %92 = vector.load %arg12[%c0_67, %c0_68, %c0_69] : memref<3x128x384xbf16, #tpu.memory_space<vmem>>, vector<1x128x384xbf16>
      %93 = vector.shape_cast %92 : vector<1x128x384xbf16> to vector<128x384xbf16>
      %cst_70 = arith.constant dense<0.000000e+00> : vector<8x384xf32>
      %94 = tpu.matmul %91, %93, %cst_70 {dimension_numbers = #tpu.dot_dimension_numbers<[1], [0], [0], [1], [0, 0, 1, 1], [], []>} : vector<8x128xbf16>, vector<128x384xbf16>, vector<8x384xf32> -> vector<8x384xf32>
      %c0_71 = arith.constant 0 : index
      %c0_72 = arith.constant 0 : index
      %95 = vector.load %arg18[%c0_71, %c0_72] : memref<8x128xf32, #tpu.memory_space<vmem>>, vector<8x128xf32>
      %96 = arith.truncf %95 : vector<8x128xf32> to vector<8x128xbf16>
      %c1_73 = arith.constant 1 : index
      %c0_74 = arith.constant 0 : index
      %c0_75 = arith.constant 0 : index
      %97 = vector.load %arg12[%c1_73, %c0_74, %c0_75] : memref<3x128x384xbf16, #tpu.memory_space<vmem>>, vector<1x128x384xbf16>
      %98 = vector.shape_cast %97 : vector<1x128x384xbf16> to vector<128x384xbf16>
      %cst_76 = arith.constant dense<0.000000e+00> : vector<8x384xf32>
      %99 = tpu.matmul %96, %98, %cst_76 {dimension_numbers = #tpu.dot_dimension_numbers<[1], [0], [0], [1], [0, 0, 1, 1], [], []>} : vector<8x128xbf16>, vector<128x384xbf16>, vector<8x384xf32> -> vector<8x384xf32>
      %100 = arith.addf %94, %99 : vector<8x384xf32>
      %101 = arith.truncf %89 : vector<8x128xf32> to vector<8x128xbf16>
      %c2 = arith.constant 2 : index
      %c0_77 = arith.constant 0 : index
      %c0_78 = arith.constant 0 : index
      %102 = vector.load %arg12[%c2, %c0_77, %c0_78] : memref<3x128x384xbf16, #tpu.memory_space<vmem>>, vector<1x128x384xbf16>
      %103 = vector.shape_cast %102 : vector<1x128x384xbf16> to vector<128x384xbf16>
      %cst_79 = arith.constant dense<0.000000e+00> : vector<8x384xf32>
      %104 = tpu.matmul %101, %103, %cst_79 {dimension_numbers = #tpu.dot_dimension_numbers<[1], [0], [0], [1], [0, 0, 1, 1], [], []>} : vector<8x128xbf16>, vector<128x384xbf16>, vector<8x384xf32> -> vector<8x384xf32>
      %105 = arith.addf %100, %104 : vector<8x384xf32>
      %c0_80 = arith.constant 0 : index
      %c0_81 = arith.constant 0 : index
      %106 = vector.load %arg13[%c0_80, %c0_81] : memref<1x384xf32, #tpu.memory_space<vmem>>, vector<1x384xf32>
      %107 = vector.broadcast %106 : vector<1x384xf32> to vector<8x384xf32>
      %108 = arith.addf %105, %107 : vector<8x384xf32>
      %cst_82 = arith.constant 0.000000e+00 : f32
      %109 = vector.broadcast %cst_82 : f32 to vector<8x384xf32>
      %110 = arith.maximumf %108, %109 : vector<8x384xf32>
      %111 = arith.truncf %110 : vector<8x384xf32> to vector<8x384xbf16>
      %c0_83 = arith.constant 0 : index
      %c0_84 = arith.constant 0 : index
      %112 = vector.load %arg14[%c0_83, %c0_84] : memref<384x128xbf16, #tpu.memory_space<vmem>>, vector<384x128xbf16>
      %cst_85 = arith.constant dense<0.000000e+00> : vector<8x128xf32>
      %113 = tpu.matmul %111, %112, %cst_85 {dimension_numbers = #tpu.dot_dimension_numbers<[1], [0], [0], [1], [0, 0, 1, 1], [], []>} : vector<8x384xbf16>, vector<384x128xbf16>, vector<8x128xf32> -> vector<8x128xf32>
      %c0_86 = arith.constant 0 : index
      %c0_87 = arith.constant 0 : index
      %114 = vector.load %arg15[%c0_86, %c0_87] : memref<1x128xf32, #tpu.memory_space<vmem>>, vector<1x128xf32>
      %115 = vector.broadcast %114 : vector<1x128xf32> to vector<8x128xf32>
      %116 = arith.addf %113, %115 : vector<8x128xf32>
      %c0_88 = arith.constant 0 : index
      %c0_89 = arith.constant 0 : index
      %117 = vector.load %arg16[%c0_88, %c0_89] : memref<8x128xf32, #tpu.memory_space<vmem>>, vector<8x128xf32>
      tpu.vector_store %arg16[%c0_88, %c0_89], %116 {strides = array<i32>} : memref<8x128xf32, #tpu.memory_space<vmem>>, vector<8x128xf32>,
    } else {
    }
    return
  }
  func.func @transform_0(%arg0: i32) -> (i32, i32) {
    %c0_i32 = arith.constant 0 : i32
    %c0_i32_0 = arith.constant 0 : i32
    return %c0_i32, %arg0 : i32, i32
  }
  func.func @transform_1(%arg0: i32) -> (i32, i32) {
    %c0_i32 = arith.constant 0 : i32
    %c0_i32_0 = arith.constant 0 : i32
    return %c0_i32, %arg0 : i32, i32
  }
  func.func @transform_2(%arg0: i32) -> (i32, i32) {
    %c0_i32 = arith.constant 0 : i32
    %c0_i32_0 = arith.constant 0 : i32
    return %c0_i32, %arg0 : i32, i32
  }
  func.func @transform_3(%arg0: i32) -> (i32, i32) {
    %c0_i32 = arith.constant 0 : i32
    %c0_i32_0 = arith.constant 0 : i32
    return %c0_i32, %arg0 : i32, i32
  }
  func.func @transform_4(%arg0: i32) -> (i32, i32) {
    %c0_i32 = arith.constant 0 : i32
    %c0_i32_0 = arith.constant 0 : i32
    return %c0_i32, %arg0 : i32, i32
  }
  func.func @transform_5(%arg0: i32) -> (i32, i32) {
    %c0_i32 = arith.constant 0 : i32
    %c0_i32_0 = arith.constant 0 : i32
    %c0_i32_1 = arith.constant 0 : i32
    return %c0_i32, %c0_i32_0 : i32, i32
  }
  func.func @transform_6(%arg0: i32) -> (i32, i32, i32) {
    %c0_i32 = arith.constant 0 : i32
    %c0_i32_0 = arith.constant 0 : i32
    %c0_i32_1 = arith.constant 0 : i32
    %c0_i32_2 = arith.constant 0 : i32
    return %c0_i32, %c0_i32_0, %c0_i32_1 : i32, i32, i32
  }
  func.func @transform_7(%arg0: i32) -> (i32, i32, i32) {
    %c0_i32 = arith.constant 0 : i32
    %c0_i32_0 = arith.constant 0 : i32
    %c0_i32_1 = arith.constant 0 : i32
    %c0_i32_2 = arith.constant 0 : i32
    return %c0_i32, %c0_i32_0, %c0_i32_1 : i32, i32, i32
  }
  func.func @transform_8(%arg0: i32) -> (i32, i32, i32) {
    %c0_i32 = arith.constant 0 : i32
    %c0_i32_0 = arith.constant 0 : i32
    %c0_i32_1 = arith.constant 0 : i32
    %c0_i32_2 = arith.constant 0 : i32
    return %c0_i32, %c0_i32_0, %c0_i32_1 : i32, i32, i32
  }
  func.func @transform_9(%arg0: i32) -> (i32, i32, i32) {
    %c0_i32 = arith.constant 0 : i32
    %c0_i32_0 = arith.constant 0 : i32
    %c0_i32_1 = arith.constant 0 : i32
    %c0_i32_2 = arith.constant 0 : i32
    return %c0_i32, %c0_i32_0, %c0_i32_1 : i32, i32, i32
  }
  func.func @transform_10(%arg0: i32) -> (i32, i32) {
    %c0_i32 = arith.constant 0 : i32
    %c0_i32_0 = arith.constant 0 : i32
    %c0_i32_1 = arith.constant 0 : i32
    return %c0_i32, %c0_i32_0 : i32, i32
  }
  func.func @transform_11(%arg0: i32) -> (i32, i32, i32) {
    %c0_i32 = arith.constant 0 : i32
    %c0_i32_0 = arith.constant 0 : i32
    %c0_i32_1 = arith.constant 0 : i32
    %c0_i32_2 = arith.constant 0 : i32
    return %c0_i32, %c0_i32_0, %c0_i32_1 : i32, i32, i32
  }
  func.func @transform_12(%arg0: i32) -> (i32, i32) {
    %c0_i32 = arith.constant 0 : i32
    %c0_i32_0 = arith.constant 0 : i32
    %c0_i32_1 = arith.constant 0 : i32
    return %c0_i32, %c0_i32_0 : i32, i32
  }
  func.func @transform_13(%arg0: i32) -> (i32, i32) {
    %c0_i32 = arith.constant 0 : i32
    %c0_i32_0 = arith.constant 0 : i32
    %c0_i32_1 = arith.constant 0 : i32
    return %c0_i32, %c0_i32_0 : i32, i32
  }
  func.func @transform_14(%arg0: i32) -> (i32, i32) {
    %c0_i32 = arith.constant 0 : i32
    %c0_i32_0 = arith.constant 0 : i32
    %c0_i32_1 = arith.constant 0 : i32
    return %c0_i32, %c0_i32_0 : i32, i32
  }
  func.func @transform_15(%arg0: i32) -> (i32, i32) {
    %c0_i32 = arith.constant 0 : i32
    %c0_i32_0 = arith.constant 0 : i32
    %c0_i32_1 = arith.constant 0 : i32
    return %c0_i32, %c0_i32_0 : i32, i32
  }
}

</mosaic_0001>

<llo_original>
// kernel: tpu_custom_call.1
$region0: #{tpu_custom_call.1}
  #allocation0 [shape = 'u32[]', space=smem, size = 0x4, offset = 0x4, fixed_abs, tag = 'smem constant byte address 0x4 - core index']
  #allocation1 [shape = 'u32[72,128]{1,0:T(1,128)}', space=vmem, size = 0x9000, scoped, tag = 'internal scratch']
  #allocation2 [shape = 'f32[8,128]{1,0:T(8,128)}', space=vmem, size = 0x1000, scoped, tag = 'scratch operand']
  #allocation3 [shape = 'f32[8,128]{1,0:T(8,128)}', space=vmem, size = 0x1000, scoped, tag = 'scratch operand']
  #allocation4 [shape = 'f32[8,128]{1,0:T(8,128)}', space=vmem, size = 0x1000, scoped, tag = 'scratch operand']
  %s0 = inlined_call_operand.hbm [shape: s32[1,1024], index: 0, kind: input, shape index: {}]
  %s1 = inlined_call_operand.hbm [shape: s32[1,1024], index: 1, kind: input, shape index: {}]
  %s2 = inlined_call_operand.hbm [shape: s32[1,1024], index: 2, kind: input, shape index: {}]
  %s3 = inlined_call_operand.hbm [shape: s32[1,1024], index: 3, kind: input, shape index: {}]
  %s4 = inlined_call_operand.hbm [shape: bf16[8,1024], index: 4, kind: input, shape index: {}]
  %s5 = inlined_call_operand.hbm [shape: bf16[32,128], index: 5, kind: input, shape index: {}]
  %s6 = inlined_call_operand.hbm [shape: bf16[2,128,128], index: 6, kind: input, shape index: {}]
  %s7 = inlined_call_operand.hbm [shape: f32[2,1,128], index: 7, kind: input, shape index: {}]
  %s8 = inlined_call_operand.hbm [shape: bf16[2,128,128], index: 8, kind: input, shape index: {}]
  %s9 = inlined_call_operand.hbm [shape: f32[2,1,128], index: 9, kind: input, shape index: {}]
  %s10 = inlined_call_operand.vmem [shape: bf16[8,8], index: 10, kind: input, shape index: {}]
  %s11 = inlined_call_operand.hbm [shape: bf16[3,128,384], index: 11, kind: input, shape index: {}]
  %s12 = inlined_call_operand.vmem [shape: f32[1,384], index: 12, kind: input, shape index: {}]
  %s13 = inlined_call_operand.hbm [shape: bf16[384,128], index: 13, kind: input, shape index: {}]
  %s14 = inlined_call_operand.vmem [shape: f32[1,128], index: 14, kind: input, shape index: {}]
  %s15 = inlined_call_operand.hbm [shape: f32[8,128], index: 15, kind: output, shape index: {}]
  %s16 = sld [smem:[#allocation0]]
  $region126: #{tpu_custom_call.1} parent=0
    _
  %s18 = ssub.s32 1, %s16
  %s19 = scalar_select 0, %s18, %s16
  $region1: #{tpu_custom_call.1} parent=0
    #allocation5 [shape = 'u8[4096]{0}', space=vmem, size = 0x1000, scoped, tag = 'input window, operand 0, single buffered']
    #allocation6 [shape = 's32[1]{0}', space=sflag, size = 0x4, scoped, tag = 'scoped memory for tpu_custom_call.1']
    #allocation7 [shape = 's32[1]{0}', space=sflag, size = 0x4, scoped, tag = 'scoped memory for tpu_custom_call.1']
    #allocation8 [shape = 'u8[4096]{0}', space=vmem, size = 0x1000, scoped, tag = 'input window, operand 1, single buffered']
    #allocation9 [shape = 's32[1]{0}', space=sflag, size = 0x4, scoped, tag = 'scoped memory for tpu_custom_call.1']
    #allocation10 [shape = 'u8[4096]{0}', space=vmem, size = 0x1000, scoped, tag = 'input window, operand 2, single buffered']
    #allocation11 [shape = 'u8[4096]{0}', space=vmem, size = 0x1000, scoped, tag = 'input window, operand 3, single buffered']
    #allocation12 [shape = 's32[1]{0}', space=sflag, size = 0x4, scoped, tag = 'scoped memory for tpu_custom_call.1']
    #allocation13 [shape = 'u8[16384]{0}', space=vmem, size = 0x4000, scoped, tag = 'input window, operand 4, single buffered']
    #allocation14 [shape = 'u8[8192]{0}', space=vmem, size = 0x2000, scoped, tag = 'input window, operand 5, single buffered']
    #allocation15 [shape = 's32[1]{0}', space=sflag, size = 0x4, scoped, tag = 'scoped memory for tpu_custom_call.1']
    #allocation16 [shape = 'u8[65536]{0}', space=vmem, size = 0x10000, scoped, tag = 'input window, operand 6, single buffered']
    #allocation17 [shape = 'u8[1024]{0}', space=vmem, size = 0x400, scoped, tag = 'input window, operand 7, single buffered']
    #allocation18 [shape = 's32[1]{0}', space=sflag, size = 0x4, scoped, tag = 'scoped memory for tpu_custom_call.1']
    #allocation19 [shape = 'u8[65536]{0}', space=vmem, size = 0x10000, scoped, tag = 'input window, operand 8, single buffered']
    #allocation20 [shape = 'u8[1024]{0}', space=vmem, size = 0x400, scoped, tag = 'input window, operand 9, single buffered']
    #allocation21 [shape = 's32[1]{0}', space=sflag, size = 0x4, scoped, tag = 'scoped memory for tpu_custom_call.1']
    #allocation22 [shape = 'u8[294912]{0}', space=vmem, size = 0x48000, scoped, tag = 'input window, operand 11, single buffered']
    #allocation23 [shape = 'u8[98304]{0}', space=vmem, size = 0x18000, scoped, tag = 'input window, operand 13, single buffered']
    #allocation24 [shape = 's32[1]{0}', space=sflag, size = 0x4, scoped, tag = 'scoped memory for tpu_custom_call.1']
    #allocation25 [shape = 'u8[4096]{0}', space=vmem, size = 0x1000, scoped, tag = 'output window, operand 0, single buffered']
    %20 = vsyncpa [#allocation6], 0
    %21 = vsyncpa [#allocation9], 0
    %22 = vsyncpa [#allocation12], 0
    %23 = vsyncpa [#allocation15], 0
    %24 = vsyncpa [#allocation18], 0
    %25 = vsyncpa [#allocation21], 0
    %26 = vsyncpa [#allocation24], 0
    %27 = vsyncpa [#allocation7], 0
    // Predicated region
    $region2: #{tpu_custom_call.1} parent=1 // pred_check
      _
    $region3: #{tpu_custom_call.1} parent=1 // pred_check_branch
      %29 = sbr.rel (0) target = $region5
    $region4: #{tpu_custom_call.1} parent=1 // pred_region
      %31 = vsyncadd [#allocation6], 0
      %s33 = sshll.u32 %s0, 4
      %s34 = int_to_ptr.hbm [resolvable:$true] %s33
      %s35 = sshll.u32 [#allocation5], 4
      %s36 = int_to_ptr.vmem [resolvable:$true] %s35
      %38 = dma.hbm_to_vmem [thread:$0]  %s34, 128, %s36, [#allocation6]
    $region5: #{tpu_custom_call.1} parent=1 // pred_fallthru
      _
    // Predicated region
    $region6: #{tpu_custom_call.1} parent=1 // pred_check
      _
    $region7: #{tpu_custom_call.1} parent=1 // pred_check_branch
      %40 = sbr.rel (0) target = $region9
    $region8: #{tpu_custom_call.1} parent=1 // pred_region
      %42 = vsyncadd [#allocation9], 0
      %s44 = sshll.u32 %s1, 4
      %s45 = int_to_ptr.hbm [resolvable:$true] %s44
      %s46 = sshll.u32 [#allocation8], 4
      %s47 = int_to_ptr.vmem [resolvable:$true] %s46
      %49 = dma.hbm_to_vmem [thread:$0]  %s45, 128, %s47, [#allocation9]
    $region9: #{tpu_custom_call.1} parent=1 // pred_fallthru
      _
    // Predicated region
    $region10: #{tpu_custom_call.1} parent=1 // pred_check
      _
    $region11: #{tpu_custom_call.1} parent=1 // pred_check_branch
      %51 = sbr.rel (0) target = $region13
    $region12: #{tpu_custom_call.1} parent=1 // pred_region
      %53 = vsyncadd [#allocation9], 0
      %s55 = sshll.u32 %s2, 4
      %s56 = int_to_ptr.hbm [resolvable:$true] %s55
      %s57 = sshll.u32 [#allocation10], 4
      %s58 = int_to_ptr.vmem [resolvable:$true] %s57
      %60 = dma.hbm_to_vmem [thread:$0]  %s56, 128, %s58, [#allocation9]
    $region13: #{tpu_custom_call.1} parent=1 // pred_fallthru
      _
    // Predicated region
    $region14: #{tpu_custom_call.1} parent=1 // pred_check
      _
    $region15: #{tpu_custom_call.1} parent=1 // pred_check_branch
      %62 = sbr.rel (0) target = $region17
    $region16: #{tpu_custom_call.1} parent=1 // pred_region
      %64 = vsyncadd [#allocation12], 0
      %s66 = sshll.u32 %s3, 4
      %s67 = int_to_ptr.hbm [resolvable:$true] %s66
      %s68 = sshll.u32 [#allocation11], 4
      %s69 = int_to_ptr.vmem [resolvable:$true] %s68
      %71 = dma.hbm_to_vmem [thread:$0]  %s67, 128, %s69, [#allocation12]
    $region17: #{tpu_custom_call.1} parent=1 // pred_fallthru
      _
    // Predicated region
    $region18: #{tpu_custom_call.1} parent=1 // pred_check
      _
    $region19: #{tpu_custom_call.1} parent=1 // pred_check_branch
      %73 = sbr.rel (0) target = $region21
    $region20: #{tpu_custom_call.1} parent=1 // pred_region
      %75 = vsyncadd [#allocation12], 0
      %s77 = sshll.u32 %s4, 4
      %s78 = int_to_ptr.hbm [resolvable:$true] %s77
      %s79 = sshll.u32 [#allocation13], 4
      %s80 = int_to_ptr.vmem [resolvable:$true] %s79
      %82 = dma.hbm_to_vmem [thread:$0]  %s78, 512, %s80, [#allocation12]
    $region21: #{tpu_custom_call.1} parent=1 // pred_fallthru
      _
    // Predicated region
    $region22: #{tpu_custom_call.1} parent=1 // pred_check
      _
    $region23: #{tpu_custom_call.1} parent=1 // pred_check_branch
      %84 = sbr.rel (0) target = $region25
    $region24: #{tpu_custom_call.1} parent=1 // pred_region
      %86 = vsyncadd [#allocation15], 0
      %s87 = sshll.u32 %s5, 4
      %s88 = int_to_ptr.hbm [resolvable:$true] %s87
      %s89 = sshll.u32 [#allocation14], 4
      %s90 = int_to_ptr.vmem [resolvable:$true] %s89
      %95 = dma.hbm_to_vmem [thread:$0]  %s88, 256, %s90, [#allocation15], 64, 64, 4
    $region25: #{tpu_custom_call.1} parent=1 // pred_fallthru
      _
    // Predicated region
    $region26: #{tpu_custom_call.1} parent=1 // pred_check
      _
    $region27: #{tpu_custom_call.1} parent=1 // pred_check_branch
      %97 = sbr.rel (0) target = $region29
    $region28: #{tpu_custom_call.1} parent=1 // pred_region
      %99 = vsyncadd [#allocation15], 0
      %s100 = sshll.u32 %s6, 4
      %s101 = int_to_ptr.hbm [resolvable:$true] %s100
      %s102 = sshll.u32 [#allocation16], 4
      %s103 = int_to_ptr.vmem [resolvable:$true] %s102
      %108 = dma.hbm_to_vmem [thread:$0]  %s101, 2048, %s103, [#allocation15], 64, 64, 4
    $region29: #{tpu_custom_call.1} parent=1 // pred_fallthru
      _
    // Predicated region
    $region30: #{tpu_custom_call.1} parent=1 // pred_check
      _
    $region31: #{tpu_custom_call.1} parent=1 // pred_check_branch
      %110 = sbr.rel (0) target = $region33
    $region32: #{tpu_custom_call.1} parent=1 // pred_region
      %112 = vsyncadd [#allocation18], 0
      %s113 = sshll.u32 %s7, 4
      %s114 = int_to_ptr.hbm [resolvable:$true] %s113
      %s115 = sshll.u32 [#allocation17], 4
      %s116 = int_to_ptr.vmem [resolvable:$true] %s115
      %121 = dma.hbm_to_vmem [thread:$0]  %s114, 32, %s116, [#allocation18], 16, 16, 1
    $region33: #{tpu_custom_call.1} parent=1 // pred_fallthru
      _
    // Predicated region
    $region34: #{tpu_custom_call.1} parent=1 // pred_check
      _
    $region35: #{tpu_custom_call.1} parent=1 // pred_check_branch
      %123 = sbr.rel (0) target = $region37
    $region36: #{tpu_custom_call.1} parent=1 // pred_region
      %125 = vsyncadd [#allocation18], 0
      %s126 = sshll.u32 %s8, 4
      %s127 = int_to_ptr.hbm [resolvable:$true] %s126
      %s128 = sshll.u32 [#allocation19], 4
      %s129 = int_to_ptr.vmem [resolvable:$true] %s128
      %134 = dma.hbm_to_vmem [thread:$0]  %s127, 2048, %s129, [#allocation18], 64, 64, 4
    $region37: #{tpu_custom_call.1} parent=1 // pred_fallthru
      _
    // Predicated region
    $region38: #{tpu_custom_call.1} parent=1 // pred_check
      _
    $region39: #{tpu_custom_call.1} parent=1 // pred_check_branch
      %136 = sbr.rel (0) target = $region41
    $region40: #{tpu_custom_call.1} parent=1 // pred_region
      %138 = vsyncadd [#allocation21], 0
      %s139 = sshll.u32 %s9, 4
      %s140 = int_to_ptr.hbm [resolvable:$true] %s139
      %s141 = sshll.u32 [#allocation20], 4
      %s142 = int_to_ptr.vmem [resolvable:$true] %s141
      %147 = dma.hbm_to_vmem [thread:$0]  %s140, 32, %s142, [#allocation21], 16, 16, 1
    $region41: #{tpu_custom_call.1} parent=1 // pred_fallthru
      _
    // Predicated region
    $region42: #{tpu_custom_call.1} parent=1 // pred_check
      _
    $region43: #{tpu_custom_call.1} parent=1 // pred_check_branch
      %149 = sbr.rel (0) target = $region45
    $region44: #{tpu_custom_call.1} parent=1 // pred_region
      _
    $region45: #{tpu_custom_call.1} parent=1 // pred_fallthru
      _
    // Predicated region
    $region46: #{tpu_custom_call.1} parent=1 // pred_check
      _
    $region47: #{tpu_custom_call.1} parent=1 // pred_check_branch
      %151 = sbr.rel (0) target = $region49
    $region48: #{tpu_custom_call.1} parent=1 // pred_region
      %153 = vsyncadd [#allocation21], 0
      %s154 = sshll.u32 %s11, 4
      %s155 = int_to_ptr.hbm [resolvable:$true] %s154
      %s156 = sshll.u32 [#allocation22], 4
      %s157 = int_to_ptr.vmem [resolvable:$true] %s156
      %162 = dma.hbm_to_vmem [thread:$0]  %s155, 9216, %s157, [#allocation21], 192, 192, 12
    $region49: #{tpu_custom_call.1} parent=1 // pred_fallthru
      _
    // Predicated region
    $region50: #{tpu_custom_call.1} parent=1 // pred_check
      _
    $region51: #{tpu_custom_call.1} parent=1 // pred_check_branch
      %164 = sbr.rel (0) target = $region53
    $region52: #{tpu_custom_call.1} parent=1 // pred_region
      _
    $region53: #{tpu_custom_call.1} parent=1 // pred_fallthru
      _
    // Predicated region
    $region54: #{tpu_custom_call.1} parent=1 // pred_check
      _
    $region55: #{tpu_custom_call.1} parent=1 // pred_check_branch
      %166 = sbr.rel (0) target = $region57
    $region56: #{tpu_custom_call.1} parent=1 // pred_region
      %168 = vsyncadd [#allocation24], 0
      %s169 = sshll.u32 %s13, 4
      %s170 = int_to_ptr.hbm [resolvable:$true] %s169
      %s171 = sshll.u32 [#allocation23], 4
      %s172 = int_to_ptr.vmem [resolvable:$true] %s171
      %177 = dma.hbm_to_vmem [thread:$0]  %s170, 3072, %s172, [#allocation24], 64, 64, 4
    $region57: #{tpu_custom_call.1} parent=1 // pred_fallthru
      _
    // Predicated region
    $region58: #{tpu_custom_call.1} parent=1 // pred_check
      _
    $region59: #{tpu_custom_call.1} parent=1 // pred_check_branch
      %179 = sbr.rel (0) target = $region61
    $region60: #{tpu_custom_call.1} parent=1 // pred_region
      _
    $region61: #{tpu_custom_call.1} parent=1 // pred_fallthru
      _
    // Predicated region
    $region62: #{tpu_custom_call.1} parent=1 // pred_check
      _
    $region63: #{tpu_custom_call.1} parent=1 // pred_check_branch
      %181 = sbr.rel (0) target = $region65
    $region64: #{tpu_custom_call.1} parent=1 // pred_region
      %183 = dma.done [#allocation6], 128
    $region65: #{tpu_custom_call.1} parent=1 // pred_fallthru
      _
    // Predicated region
    $region66: #{tpu_custom_call.1} parent=1 // pred_check
      _
    $region67: #{tpu_custom_call.1} parent=1 // pred_check_branch
      %185 = sbr.rel (0) target = $region69
    $region68: #{tpu_custom_call.1} parent=1 // pred_region
      %187 = dma.done [#allocation9], 128
    $region69: #{tpu_custom_call.1} parent=1 // pred_fallthru
      _
    // Predicated region
    $region70: #{tpu_custom_call.1} parent=1 // pred_check
      _
    $region71: #{tpu_custom_call.1} parent=1 // pred_check_branch
      %189 = sbr.rel (0) target = $region73
    $region72: #{tpu_custom_call.1} parent=1 // pred_region
      %191 = dma.done [#allocation9], 128
    $region73: #{tpu_custom_call.1} parent=1 // pred_fallthru
      _
    // Predicated region
    $region74: #{tpu_custom_call.1} parent=1 // pred_check
      _
    $region75: #{tpu_custom_call.1} parent=1 // pred_check_branch
      %193 = sbr.rel (0) target = $region77
    $region76: #{tpu_custom_call.1} parent=1 // pred_region
      %195 = dma.done [#allocation12], 128
    $region77: #{tpu_custom_call.1} parent=1 // pred_fallthru
      _
    // Predicated region
    $region78: #{tpu_custom_call.1} parent=1 // pred_check
      _
    $region79: #{tpu_custom_call.1} parent=1 // pred_check_branch
      %197 = sbr.rel (0) target = $region81
    $region80: #{tpu_custom_call.1} parent=1 // pred_region
      %199 = dma.done [#allocation12], 512
    $region81: #{tpu_custom_call.1} parent=1 // pred_fallthru
      _
    // Predicated region
    $region82: #{tpu_custom_call.1} parent=1 // pred_check
      _
    $region83: #{tpu_custom_call.1} parent=1 // pred_check_branch
      %201 = sbr.rel (0) target = $region85
    $region84: #{tpu_custom_call.1} parent=1 // pred_region
      %203 = dma.done [#allocation15], 256
    $region85: #{tpu_custom_call.1} parent=1 // pred_fallthru
      _
    // Predicated region
    $region86: #{tpu_custom_call.1} parent=1 // pred_check
      _
    $region87: #{tpu_custom_call.1} parent=1 // pred_check_branch
      %205 = sbr.rel (0) target = $region89
    $region88: #{tpu_custom_call.1} parent=1 // pred_region
      %207 = dma.done [#allocation15], 2048
    $region89: #{tpu_custom_call.1} parent=1 // pred_fallthru
      _
    // Predicated region
    $region90: #{tpu_custom_call.1} parent=1 // pred_check
      _
    $region91: #{tpu_custom_call.1} parent=1 // pred_check_branch
      %209 = sbr.rel (0) target = $region93
    $region92: #{tpu_custom_call.1} parent=1 // pred_region
      %211 = dma.done [#allocation18], 32
    $region93: #{tpu_custom_call.1} parent=1 // pred_fallthru
      _
    // Predicated region
    $region94: #{tpu_custom_call.1} parent=1 // pred_check
      _
    $region95: #{tpu_custom_call.1} parent=1 // pred_check_branch
      %213 = sbr.rel (0) target = $region97
    $region96: #{tpu_custom_call.1} parent=1 // pred_region
      %215 = dma.done [#allocation18], 2048
    $region97: #{tpu_custom_call.1} parent=1 // pred_fallthru
      _
    // Predicated region
    $region98: #{tpu_custom_call.1} parent=1 // pred_check
      _
    $region99: #{tpu_custom_call.1} parent=1 // pred_check_branch
      %217 = sbr.rel (0) target = $region101
    $region100: #{tpu_custom_call.1} parent=1 // pred_region
      %219 = dma.done [#allocation21], 32
    $region101: #{tpu_custom_call.1} parent=1 // pred_fallthru
      _
    // Predicated region
    $region102: #{tpu_custom_call.1} parent=1 // pred_check
      _
    $region103: #{tpu_custom_call.1} parent=1 // pred_check_branch
      %221 = sbr.rel (0) target = $region105
    $region104: #{tpu_custom_call.1} parent=1 // pred_region
      %223 = dma.done [#allocation21], 9216
    $region105: #{tpu_custom_call.1} parent=1 // pred_fallthru
      _
    // Predicated region
    $region106: #{tpu_custom_call.1} parent=1 // pred_check
      _
    $region107: #{tpu_custom_call.1} parent=1 // pred_check_branch
      %225 = sbr.rel (0) target = $region109
    $region108: #{tpu_custom_call.1} parent=1 // pred_region
      %227 = dma.done [#allocation24], 3072
    $region109: #{tpu_custom_call.1} parent=1 // pred_fallthru
      _
    %p229 = scmp.eq.s32.totalorder 0, 0
    // Predicated region
    $region110: #{tpu_custom_call.1} parent=1 // pred_check
      %p230 = pneg %p229
    $region111: #{tpu_custom_call.1} parent=1 // pred_check_branch
      %232 = sbr.rel (%p230) target = $region113
    $region112: #{tpu_custom_call.1} parent=1 // pred_region
      %233 = vst [vmem:[#allocation2] sm:$0xff] 0.0
      %234 = vst [vmem:[#allocation3] sm:$0xff] 0.0
      %235 = vst [vmem:[#allocation4] sm:$0xff] 0.0
    $region113: #{tpu_custom_call.1} parent=1 // pred_fallthru
      _
    %v236 = vlaneseq
    %v237 = vshrl.u32 %v236, 7
    %v238 = vadd.s32 %v237, 8
    %v239 = vadd.s32 %v237, 16
    %v240 = vadd.s32 %v237, 24
    %v241 = vld [vmem:[#allocation5] sm:$0xff]
    %v242 = vperm.slane %v241, 0
    %v243 = vperm.slane %v241, 1
    %v244 = vperm.slane %v241, 2
    %v245 = vperm.slane %v241, 3
    %v246 = vperm.slane %v241, 4
    %v247 = vperm.slane %v241, 5
    %v248 = vperm.slane %v241, 6
    %v249 = vperm.slane %v241, 7
    %vm250 = vcmp.eq.s32.totalorder %v237, %v242
    %vm251 = vcmp.eq.s32.totalorder %v237, %v243
    %vm252 = vcmp.eq.s32.totalorder %v237, %v244
    %vm253 = vcmp.eq.s32.totalorder %v237, %v245
    %vm254 = vcmp.eq.s32.totalorder %v237, %v246
    %vm255 = vcmp.eq.s32.totalorder %v237, %v247
    %vm256 = vcmp.eq.s32.totalorder %v237, %v248
    %vm257 = vcmp.eq.s32.totalorder %v237, %v249
    %vm258 = vcmp.eq.s32.totalorder %v238, %v242
    %vm259 = vcmp.eq.s32.totalorder %v238, %v243
    %vm260 = vcmp.eq.s32.totalorder %v238, %v244
    %vm261 = vcmp.eq.s32.totalorder %v238, %v245
    %vm262 = vcmp.eq.s32.totalorder %v238, %v246
    %vm263 = vcmp.eq.s32.totalorder %v238, %v247
    %vm264 = vcmp.eq.s32.totalorder %v238, %v248
    %vm265 = vcmp.eq.s32.totalorder %v238, %v249
    %vm266 = vcmp.eq.s32.totalorder %v239, %v242
    %vm267 = vcmp.eq.s32.totalorder %v239, %v243
    %vm268 = vcmp.eq.s32.totalorder %v239, %v244
    %vm269 = vcmp.eq.s32.totalorder %v239, %v245
    %vm270 = vcmp.eq.s32.totalorder %v239, %v246
    %vm271 = vcmp.eq.s32.totalorder %v239, %v247
    %vm272 = vcmp.eq.s32.totalorder %v239, %v248
    %vm273 = vcmp.eq.s32.totalorder %v239, %v249
    %vm274 = vcmp.eq.s32.totalorder %v240, %v242
    %vm275 = vcmp.eq.s32.totalorder %v240, %v243
    %vm276 = vcmp.eq.s32.totalorder %v240, %v244
    %vm277 = vcmp.eq.s32.totalorder %v240, %v245
    %vm278 = vcmp.eq.s32.totalorder %v240, %v246
    %vm279 = vcmp.eq.s32.totalorder %v240, %v247
    %vm280 = vcmp.eq.s32.totalorder %v240, %v248
    %vm281 = vcmp.eq.s32.totalorder %v240, %v249
    %v282 = vld [vmem:[#allocation8] sm:$0xff]
    %v283 = vperm.slane %v282, 0
    %v284 = vperm.slane %v282, 1
    %v285 = vperm.slane %v282, 2
    %v286 = vperm.slane %v282, 3
    %v287 = vperm.slane %v282, 4
    %v288 = vperm.slane %v282, 5
    %v289 = vperm.slane %v282, 6
    %v290 = vperm.slane %v282, 7
    %vm291 = vcmp.eq.s32.totalorder %v237, %v283
    %vm292 = vcmp.eq.s32.totalorder %v237, %v284
    %vm293 = vcmp.eq.s32.totalorder %v237, %v285
    %vm294 = vcmp.eq.s32.totalorder %v237, %v286
    %vm295 = vcmp.eq.s32.totalorder %v237, %v287
    %vm296 = vcmp.eq.s32.totalorder %v237, %v288
    %vm297 = vcmp.eq.s32.totalorder %v237, %v289
    %vm298 = vcmp.eq.s32.totalorder %v237, %v290
    %vm299 = vcmp.eq.s32.totalorder %v238, %v283
    %vm300 = vcmp.eq.s32.totalorder %v238, %v284
    %vm301 = vcmp.eq.s32.totalorder %v238, %v285
    %vm302 = vcmp.eq.s32.totalorder %v238, %v286
    %vm303 = vcmp.eq.s32.totalorder %v238, %v287
    %vm304 = vcmp.eq.s32.totalorder %v238, %v288
    %vm305 = vcmp.eq.s32.totalorder %v238, %v289
    %vm306 = vcmp.eq.s32.totalorder %v238, %v290
    %vm307 = vcmp.eq.s32.totalorder %v239, %v283
    %vm308 = vcmp.eq.s32.totalorder %v239, %v284
    %vm309 = vcmp.eq.s32.totalorder %v239, %v285
    %vm310 = vcmp.eq.s32.totalorder %v239, %v286
    %vm311 = vcmp.eq.s32.totalorder %v239, %v287
    %vm312 = vcmp.eq.s32.totalorder %v239, %v288
    %vm313 = vcmp.eq.s32.totalorder %v239, %v289
    %vm314 = vcmp.eq.s32.totalorder %v239, %v290
    %vm315 = vcmp.eq.s32.totalorder %v240, %v283
    %vm316 = vcmp.eq.s32.totalorder %v240, %v284
    %vm317 = vcmp.eq.s32.totalorder %v240, %v285
    %vm318 = vcmp.eq.s32.totalorder %v240, %v286
    %vm319 = vcmp.eq.s32.totalorder %v240, %v287
    %vm320 = vcmp.eq.s32.totalorder %v240, %v288
    %vm321 = vcmp.eq.s32.totalorder %v240, %v289
    %vm322 = vcmp.eq.s32.totalorder %v240, %v290
    %vm323 = vmor %vm250, %vm291
    %vm324 = vmor %vm251, %vm292
    %vm325 = vmor %vm252, %vm293
    %vm326 = vmor %vm253, %vm294
    %vm327 = vmor %vm254, %vm295
    %vm328 = vmor %vm255, %vm296
    %vm329 = vmor %vm256, %vm297
    %vm330 = vmor %vm257, %vm298
    %vm331 = vmor %vm258, %vm299
    %vm332 = vmor %vm259, %vm300
    %vm333 = vmor %vm260, %vm301
    %vm334 = vmor %vm261, %vm302
    %vm335 = vmor %vm262, %vm303
    %vm336 = vmor %vm263, %vm304
    %vm337 = vmor %vm264, %vm305
    %vm338 = vmor %vm265, %vm306
    %vm339 = vmor %vm266, %vm307
    %vm340 = vmor %vm267, %vm308
    %vm341 = vmor %vm268, %vm309
    %vm342 = vmor %vm269, %vm310
    %vm343 = vmor %vm270, %vm311
    %vm344 = vmor %vm271, %vm312
    %vm345 = vmor %vm272, %vm313
    %vm346 = vmor %vm273, %vm314
    %vm347 = vmor %vm274, %vm315
    %vm348 = vmor %vm275, %vm316
    %vm349 = vmor %vm276, %vm317
    %vm350 = vmor %vm277, %vm318
    %vm351 = vmor %vm278, %vm319
    %vm352 = vmor %vm279, %vm320
    %vm353 = vmor %vm280, %vm321
    %vm354 = vmor %vm281, %vm322
    %v355 = vsel %vm323, 1, 0
    %v356 = vsel %vm324, 1, 0
    %v357 = vsel %vm325, 1, 0
    %v358 = vsel %vm326, 1, 0
    %v359 = vsel %vm327, 1, 0
    %v360 = vsel %vm328, 1, 0
    %v361 = vsel %vm329, 1, 0
    %v362 = vsel %vm330, 1, 0
    %v363 = vsel %vm331, 1, 0
    %v364 = vsel %vm332, 1, 0
    %v365 = vsel %vm333, 1, 0
    %v366 = vsel %vm334, 1, 0
    %v367 = vsel %vm335, 1, 0
    %v368 = vsel %vm336, 1, 0
    %v369 = vsel %vm337, 1, 0
    %v370 = vsel %vm338, 1, 0
    %v371 = vsel %vm339, 1, 0
    %v372 = vsel %vm340, 1, 0
    %v373 = vsel %vm341, 1, 0
    %v374 = vsel %vm342, 1, 0
    %v375 = vsel %vm343, 1, 0
    %v376 = vsel %vm344, 1, 0
    %v377 = vsel %vm345, 1, 0
    %v378 = vsel %vm346, 1, 0
    %v379 = vsel %vm347, 1, 0
    %v380 = vsel %vm348, 1, 0
    %v381 = vsel %vm349, 1, 0
    %v382 = vsel %vm350, 1, 0
    %v383 = vsel %vm351, 1, 0
    %v384 = vsel %vm352, 1, 0
    %v385 = vsel %vm353, 1, 0
    %v386 = vsel %vm354, 1, 0
    %v387 = vcvt.s32.f32 %v355
    %v388 = vcvt.s32.f32 %v356
    %v389 = vcvt.s32.f32 %v357
    %v390 = vcvt.s32.f32 %v358
    %v391 = vcvt.s32.f32 %v359
    %v392 = vcvt.s32.f32 %v360
    %v393 = vcvt.s32.f32 %v361
    %v394 = vcvt.s32.f32 %v362
    %v395 = vcvt.s32.f32 %v363
    %v396 = vcvt.s32.f32 %v364
    %v397 = vcvt.s32.f32 %v365
    %v398 = vcvt.s32.f32 %v366
    %v399 = vcvt.s32.f32 %v367
    %v400 = vcvt.s32.f32 %v368
    %v401 = vcvt.s32.f32 %v369
    %v402 = vcvt.s32.f32 %v370
    %v403 = vcvt.s32.f32 %v371
    %v404 = vcvt.s32.f32 %v372
    %v405 = vcvt.s32.f32 %v373
    %v406 = vcvt.s32.f32 %v374
    %v407 = vcvt.s32.f32 %v375
    %v408 = vcvt.s32.f32 %v376
    %v409 = vcvt.s32.f32 %v377
    %v410 = vcvt.s32.f32 %v378
    %v411 = vcvt.s32.f32 %v379
    %v412 = vcvt.s32.f32 %v380
    %v413 = vcvt.s32.f32 %v381
    %v414 = vcvt.s32.f32 %v382
    %v415 = vcvt.s32.f32 %v383
    %v416 = vcvt.s32.f32 %v384
    %v417 = vcvt.s32.f32 %v385
    %v418 = vcvt.s32.f32 %v386
    %v419 = vpack.c.bf16 %v395, %v387
    %v420 = vpack.c.bf16 %v396, %v388
    %v421 = vpack.c.bf16 %v397, %v389
    %v422 = vpack.c.bf16 %v398, %v390
    %v423 = vpack.c.bf16 %v399, %v391
    %v424 = vpack.c.bf16 %v400, %v392
    %v425 = vpack.c.bf16 %v401, %v393
    %v426 = vpack.c.bf16 %v402, %v394
    %v427 = vpack.c.bf16 %v411, %v403
    %v428 = vpack.c.bf16 %v412, %v404
    %v429 = vpack.c.bf16 %v413, %v405
    %v430 = vpack.c.bf16 %v414, %v406
    %v431 = vpack.c.bf16 %v415, %v407
    %v432 = vpack.c.bf16 %v416, %v408
    %v433 = vpack.c.bf16 %v417, %v409
    %v434 = vpack.c.bf16 %v418, %v410
    %v435 = vld [vmem:[#allocation14] sm:$0xf]
    %v436 = vld [vmem:[#allocation14 + $0x4] sm:$0xf]
    %v437 = vld [vmem:[#allocation14 + $0x8] sm:$0xf]
    %v438 = vld [vmem:[#allocation14 + $0xc] sm:$0xf]
    %439 = vxpose.binary.xlu0.c.b16.start [1/16] %v420, %v419, 128
    %440 = vxpose.binary.xlu0.c.b16.cont [2/16] %v428, %v427, 128
    %441 = vxpose.binary.xlu0.c.b16.cont [3/16] 0, 0, 128
    %442 = vxpose.binary.xlu0.c.b16.cont [4/16] 0, 0, 128
    %443 = vxpose.binary.xlu0.c.b16.cont [5/16] 0, 0, 128
    %444 = vxpose.binary.xlu0.c.b16.cont [6/16] 0, 0, 128
    %445 = vxpose.binary.xlu0.c.b16.cont [7/16] 0, 0, 128
    %446 = vxpose.binary.xlu0.c.b16.end [8/16] 0, 0, 128
    %v447 = vpop.trf.xlu0
    %v448 = vpop.trf.xlu0
    %v449 = vpop.trf.xlu0
    %v450 = vpop.trf.xlu0
    %v451 = vpop.trf.xlu0
    %v452 = vpop.trf.xlu0
    %v453 = vpop.trf.xlu0
    %v454 = vpop.trf.xlu0
    %v455 = vpop.trf.xlu0
    %v456 = vpop.trf.xlu0
    %v457 = vpop.trf.xlu0
    %v458 = vpop.trf.xlu0
    %v459 = vpop.trf.xlu0
    %v460 = vpop.trf.xlu0
    %v461 = vpop.trf.xlu0
    %v462 = vpop.trf.xlu0
    %463 = vxpose.binary.xlu0.c.b16.start [1/16] %v422, %v421, 128
    %464 = vxpose.binary.xlu0.c.b16.cont [2/16] %v430, %v429, 128
    %465 = vxpose.binary.xlu0.c.b16.cont [3/16] 0, 0, 128
    %466 = vxpose.binary.xlu0.c.b16.cont [4/16] 0, 0, 128
    %467 = vxpose.binary.xlu0.c.b16.cont [5/16] 0, 0, 128
    %468 = vxpose.binary.xlu0.c.b16.cont [6/16] 0, 0, 128
    %469 = vxpose.binary.xlu0.c.b16.cont [7/16] 0, 0, 128
    %470 = vxpose.binary.xlu0.c.b16.end [8/16] 0, 0, 128
    %v471 = vpop.trf.xlu0
    %v472 = vpop.trf.xlu0
    %v473 = vpop.trf.xlu0
    %v474 = vpop.trf.xlu0
    %v475 = vpop.trf.xlu0
    %v476 = vpop.trf.xlu0
    %v477 = vpop.trf.xlu0
    %v478 = vpop.trf.xlu0
    %v479 = vpop.trf.xlu0
    %v480 = vpop.trf.xlu0
    %v481 = vpop.trf.xlu0
    %v482 = vpop.trf.xlu0
    %v483 = vpop.trf.xlu0
    %v484 = vpop.trf.xlu0
    %v485 = vpop.trf.xlu0
    %v486 = vpop.trf.xlu0
    %487 = vxpose.binary.xlu0.c.b16.start [1/16] %v424, %v423, 128
    %488 = vxpose.binary.xlu0.c.b16.cont [2/16] %v432, %v431, 128
    %489 = vxpose.binary.xlu0.c.b16.cont [3/16] 0, 0, 128
    %490 = vxpose.binary.xlu0.c.b16.cont [4/16] 0, 0, 128
    %491 = vxpose.binary.xlu0.c.b16.cont [5/16] 0, 0, 128
    %492 = vxpose.binary.xlu0.c.b16.cont [6/16] 0, 0, 128
    %493 = vxpose.binary.xlu0.c.b16.cont [7/16] 0, 0, 128
    %494 = vxpose.binary.xlu0.c.b16.end [8/16] 0, 0, 128
    %v495 = vpop.trf.xlu0
    %v496 = vpop.trf.xlu0
    %v497 = vpop.trf.xlu0
    %v498 = vpop.trf.xlu0
    %v499 = vpop.trf.xlu0
    %v500 = vpop.trf.xlu0
    %v501 = vpop.trf.xlu0
    %v502 = vpop.trf.xlu0
    %v503 = vpop.trf.xlu0
    %v504 = vpop.trf.xlu0
    %v505 = vpop.trf.xlu0
    %v506 = vpop.trf.xlu0
    %v507 = vpop.trf.xlu0
    %v508 = vpop.trf.xlu0
    %v509 = vpop.trf.xlu0
    %v510 = vpop.trf.xlu0
    %511 = vxpose.binary.xlu0.c.b16.start [1/16] %v426, %v425, 128
    %512 = vxpose.binary.xlu0.c.b16.cont [2/16] %v434, %v433, 128
    %513 = vxpose.binary.xlu0.c.b16.cont [3/16] 0, 0, 128
    %514 = vxpose.binary.xlu0.c.b16.cont [4/16] 0, 0, 128
    %515 = vxpose.binary.xlu0.c.b16.cont [5/16] 0, 0, 128
    %516 = vxpose.binary.xlu0.c.b16.cont [6/16] 0, 0, 128
    %517 = vxpose.binary.xlu0.c.b16.cont [7/16] 0, 0, 128
    %518 = vxpose.binary.xlu0.c.b16.end [8/16] 0, 0, 128
    %v519 = vpop.trf.xlu0
    %v520 = vpop.trf.xlu0
    %v521 = vpop.trf.xlu0
    %v522 = vpop.trf.xlu0
    %v523 = vpop.trf.xlu0
    %v524 = vpop.trf.xlu0
    %v525 = vpop.trf.xlu0
    %v526 = vpop.trf.xlu0
    %v527 = vpop.trf.xlu0
    %v528 = vpop.trf.xlu0
    %v529 = vpop.trf.xlu0
    %v530 = vpop.trf.xlu0
    %v531 = vpop.trf.xlu0
    %v532 = vpop.trf.xlu0
    %v533 = vpop.trf.xlu0
    %v534 = vpop.trf.xlu0
    %v539 = vunpack.c.l.b16 %v435
    %v540 = vunpack.c.l.b16 %v436
    %v541 = vunpack.c.l.b16 %v437
    %v542 = vunpack.c.l.b16 %v438
    %v543 = vpack.c.b16 %v540, %v539
    %v544 = vpack.c.b16 %v542, %v541
    %vm547 = vcmask 261120
    %v549 = vsel %vm547, %v447, 0
    %v552 = vsel %vm547, %v449, 0
    %v555 = vsel %vm547, %v451, 0
    %v558 = vsel %vm547, %v453, 0
    %v561 = vsel %vm547, %v455, 0
    %v564 = vsel %vm547, %v457, 0
    %v567 = vsel %vm547, %v459, 0
    %v570 = vsel %vm547, %v461, 0
    %v573 = vsel %vm547, %v448, 0
    %v576 = vsel %vm547, %v450, 0
    %v579 = vsel %vm547, %v452, 0
    %v582 = vsel %vm547, %v454, 0
    %v585 = vsel %vm547, %v456, 0
    %v588 = vsel %vm547, %v458, 0
    %v591 = vsel %vm547, %v460, 0
    %v594 = vsel %vm547, %v462, 0
    %v597 = vsel %vm547, %v471, 0
    %v600 = vsel %vm547, %v473, 0
    %v603 = vsel %vm547, %v475, 0
    %v606 = vsel %vm547, %v477, 0
    %v609 = vsel %vm547, %v479, 0
    %v612 = vsel %vm547, %v481, 0
    %v615 = vsel %vm547, %v483, 0
    %v618 = vsel %vm547, %v485, 0
    %v621 = vsel %vm547, %v472, 0
    %v624 = vsel %vm547, %v474, 0
    %v627 = vsel %vm547, %v476, 0
    %v630 = vsel %vm547, %v478, 0
    %v633 = vsel %vm547, %v480, 0
    %v636 = vsel %vm547, %v482, 0
    %v639 = vsel %vm547, %v484, 0
    %v642 = vsel %vm547, %v486, 0
    %v645 = vsel %vm547, %v495, 0
    %v648 = vsel %vm547, %v497, 0
    %v651 = vsel %vm547, %v499, 0
    %v654 = vsel %vm547, %v501, 0
    %v657 = vsel %vm547, %v503, 0
    %v660 = vsel %vm547, %v505, 0
    %v663 = vsel %vm547, %v507, 0
    %v666 = vsel %vm547, %v509, 0
    %v669 = vsel %vm547, %v496, 0
    %v672 = vsel %vm547, %v498, 0
    %v675 = vsel %vm547, %v500, 0
    %v678 = vsel %vm547, %v502, 0
    %v681 = vsel %vm547, %v504, 0
    %v684 = vsel %vm547, %v506, 0
    %v687 = vsel %vm547, %v508, 0
    %v690 = vsel %vm547, %v510, 0
    %v693 = vsel %vm547, %v519, 0
    %v696 = vsel %vm547, %v521, 0
    %v699 = vsel %vm547, %v523, 0
    %v702 = vsel %vm547, %v525, 0
    %v705 = vsel %vm547, %v527, 0
    %v708 = vsel %vm547, %v529, 0
    %v711 = vsel %vm547, %v531, 0
    %v714 = vsel %vm547, %v533, 0
    %v717 = vsel %vm547, %v520, 0
    %v720 = vsel %vm547, %v522, 0
    %v723 = vsel %vm547, %v524, 0
    %v726 = vsel %vm547, %v526, 0
    %v729 = vsel %vm547, %v528, 0
    %v732 = vsel %vm547, %v530, 0
    %v735 = vsel %vm547, %v532, 0
    %v738 = vsel %vm547, %v534, 0
    %740 = vmatpush.bf16.msra.mxu0 0
    %741 = vmatpush.bf16.msra.mxu0 0
    %742 = vmatpush.bf16.msra.mxu0 0
    %743 = vmatpush.bf16.msra.mxu0 0
    %744 = vmatpush.bf16.msra.mxu0 0
    %745 = vmatpush.bf16.msra.mxu0 0
    %746 = vmatpush.bf16.msra.mxu0 %v544
    %747 = vmatpush.bf16.msra.mxu0 %v543
    %748 = vmatmul.bf16.gmra.mxu0 %v549
    %v749 = vpop.f32.mrf.mxu0
    %v750 = vadd.f32 0.0, %v749
    %v751 = vpop.f32.mrf.mxu0
    %v752 = vadd.f32 0.0, %v751
    %753 = vmatmul.bf16.gmra.mxu0 %v552
    %v754 = vpop.f32.mrf.mxu0
    %v755 = vadd.f32 0.0, %v754
    %v756 = vpop.f32.mrf.mxu0
    %v757 = vadd.f32 0.0, %v756
    %758 = vmatmul.bf16.gmra.mxu0 %v555
    %v759 = vpop.f32.mrf.mxu0
    %v760 = vadd.f32 0.0, %v759
    %v761 = vpop.f32.mrf.mxu0
    %v762 = vadd.f32 0.0, %v761
    %763 = vmatmul.bf16.gmra.mxu0 %v558
    %v764 = vpop.f32.mrf.mxu0
    %v765 = vadd.f32 0.0, %v764
    %v766 = vpop.f32.mrf.mxu0
    %v767 = vadd.f32 0.0, %v766
    %768 = vmatmul.bf16.gmra.mxu0 %v561
    %v769 = vpop.f32.mrf.mxu0
    %v770 = vadd.f32 0.0, %v769
    %v771 = vpop.f32.mrf.mxu0
    %v772 = vadd.f32 0.0, %v771
    %773 = vmatmul.bf16.gmra.mxu0 %v564
    %v774 = vpop.f32.mrf.mxu0
    %v775 = vadd.f32 0.0, %v774
    %v776 = vpop.f32.mrf.mxu0
    %v777 = vadd.f32 0.0, %v776
    %778 = vmatmul.bf16.gmra.mxu0 %v567
    %v779 = vpop.f32.mrf.mxu0
    %v780 = vadd.f32 0.0, %v779
    %v781 = vpop.f32.mrf.mxu0
    %v782 = vadd.f32 0.0, %v781
    %783 = vmatmul.bf16.gmra.mxu0 %v570
    %v784 = vpop.f32.mrf.mxu0
    %v785 = vadd.f32 0.0, %v784
    %v786 = vpop.f32.mrf.mxu0
    %v787 = vadd.f32 0.0, %v786
    %788 = vmatmul.bf16.gmra.mxu0 %v573
    %v789 = vpop.f32.mrf.mxu0
    %v790 = vadd.f32 0.0, %v789
    %v791 = vpop.f32.mrf.mxu0
    %v792 = vadd.f32 0.0, %v791
    %793 = vmatmul.bf16.gmra.mxu0 %v576
    %v794 = vpop.f32.mrf.mxu0
    %v795 = vadd.f32 0.0, %v794
    %v796 = vpop.f32.mrf.mxu0
    %v797 = vadd.f32 0.0, %v796
    %798 = vmatmul.bf16.gmra.mxu0 %v579
    %v799 = vpop.f32.mrf.mxu0
    %v800 = vadd.f32 0.0, %v799
    %v801 = vpop.f32.mrf.mxu0
    %v802 = vadd.f32 0.0, %v801
    %803 = vmatmul.bf16.gmra.mxu0 %v582
    %v804 = vpop.f32.mrf.mxu0
    %v805 = vadd.f32 0.0, %v804
    %v806 = vpop.f32.mrf.mxu0
    %v807 = vadd.f32 0.0, %v806
    %808 = vmatmul.bf16.gmra.mxu0 %v585
    %v809 = vpop.f32.mrf.mxu0
    %v810 = vadd.f32 0.0, %v809
    %v811 = vpop.f32.mrf.mxu0
    %v812 = vadd.f32 0.0, %v811
    %813 = vmatmul.bf16.gmra.mxu0 %v588
    %v814 = vpop.f32.mrf.mxu0
    %v815 = vadd.f32 0.0, %v814
    %v816 = vpop.f32.mrf.mxu0
    %v817 = vadd.f32 0.0, %v816
    %818 = vmatmul.bf16.gmra.mxu0 %v591
    %v819 = vpop.f32.mrf.mxu0
    %v820 = vadd.f32 0.0, %v819
    %v821 = vpop.f32.mrf.mxu0
    %v822 = vadd.f32 0.0, %v821
    %823 = vmatmul.bf16.gmra.mxu0 %v594
    %v824 = vpop.f32.mrf.mxu0
    %v825 = vadd.f32 0.0, %v824
    %v826 = vpop.f32.mrf.mxu0
    %v827 = vadd.f32 0.0, %v826
    %828 = vmatmul.bf16.gmra.mxu0 %v597
    %v829 = vpop.f32.mrf.mxu0
    %v830 = vadd.f32 0.0, %v829
    %v831 = vpop.f32.mrf.mxu0
    %v832 = vadd.f32 0.0, %v831
    %833 = vmatmul.bf16.gmra.mxu0 %v600
    %v834 = vpop.f32.mrf.mxu0
    %v835 = vadd.f32 0.0, %v834
    %v836 = vpop.f32.mrf.mxu0
    %v837 = vadd.f32 0.0, %v836
    %838 = vmatmul.bf16.gmra.mxu0 %v603
    %v839 = vpop.f32.mrf.mxu0
    %v840 = vadd.f32 0.0, %v839
    %v841 = vpop.f32.mrf.mxu0
    %v842 = vadd.f32 0.0, %v841
    %843 = vmatmul.bf16.gmra.mxu0 %v606
    %v844 = vpop.f32.mrf.mxu0
    %v845 = vadd.f32 0.0, %v844
    %v846 = vpop.f32.mrf.mxu0
    %v847 = vadd.f32 0.0, %v846
    %848 = vmatmul.bf16.gmra.mxu0 %v609
    %v849 = vpop.f32.mrf.mxu0
    %v850 = vadd.f32 0.0, %v849
    %v851 = vpop.f32.mrf.mxu0
    %v852 = vadd.f32 0.0, %v851
    %853 = vmatmul.bf16.gmra.mxu0 %v612
    %v854 = vpop.f32.mrf.mxu0
    %v855 = vadd.f32 0.0, %v854
    %v856 = vpop.f32.mrf.mxu0
    %v857 = vadd.f32 0.0, %v856
    %858 = vmatmul.bf16.gmra.mxu0 %v615
    %v859 = vpop.f32.mrf.mxu0
    %v860 = vadd.f32 0.0, %v859
    %v861 = vpop.f32.mrf.mxu0
    %v862 = vadd.f32 0.0, %v861
    %863 = vmatmul.bf16.gmra.mxu0 %v618
    %v864 = vpop.f32.mrf.mxu0
    %v865 = vadd.f32 0.0, %v864
    %v866 = vpop.f32.mrf.mxu0
    %v867 = vadd.f32 0.0, %v866
    %868 = vmatmul.bf16.gmra.mxu0 %v621
    %v869 = vpop.f32.mrf.mxu0
    %v870 = vadd.f32 0.0, %v869
    %v871 = vpop.f32.mrf.mxu0
    %v872 = vadd.f32 0.0, %v871
    %873 = vmatmul.bf16.gmra.mxu0 %v624
    %v874 = vpop.f32.mrf.mxu0
    %v875 = vadd.f32 0.0, %v874
    %v876 = vpop.f32.mrf.mxu0
    %v877 = vadd.f32 0.0, %v876
    %878 = vmatmul.bf16.gmra.mxu0 %v627
    %v879 = vpop.f32.mrf.mxu0
    %v880 = vadd.f32 0.0, %v879
    %v881 = vpop.f32.mrf.mxu0
    %v882 = vadd.f32 0.0, %v881
    %883 = vmatmul.bf16.gmra.mxu0 %v630
    %v884 = vpop.f32.mrf.mxu0
    %v885 = vadd.f32 0.0, %v884
    %v886 = vpop.f32.mrf.mxu0
    %v887 = vadd.f32 0.0, %v886
    %888 = vmatmul.bf16.gmra.mxu0 %v633
    %v889 = vpop.f32.mrf.mxu0
    %v890 = vadd.f32 0.0, %v889
    %v891 = vpop.f32.mrf.mxu0
    %v892 = vadd.f32 0.0, %v891
    %893 = vmatmul.bf16.gmra.mxu0 %v636
    %v894 = vpop.f32.mrf.mxu0
    %v895 = vadd.f32 0.0, %v894
    %v896 = vpop.f32.mrf.mxu0
    %v897 = vadd.f32 0.0, %v896
    %898 = vmatmul.bf16.gmra.mxu0 %v639
    %v899 = vpop.f32.mrf.mxu0
    %v900 = vadd.f32 0.0, %v899
    %v901 = vpop.f32.mrf.mxu0
    %v902 = vadd.f32 0.0, %v901
    %903 = vmatmul.bf16.gmra.mxu0 %v642
    %v904 = vpop.f32.mrf.mxu0
    %v905 = vadd.f32 0.0, %v904
    %v906 = vpop.f32.mrf.mxu0
    %v907 = vadd.f32 0.0, %v906
    %908 = vmatmul.bf16.gmra.mxu0 %v645
    %v909 = vpop.f32.mrf.mxu0
    %v910 = vadd.f32 0.0, %v909
    %v911 = vpop.f32.mrf.mxu0
    %v912 = vadd.f32 0.0, %v911
    %913 = vmatmul.bf16.gmra.mxu0 %v648
    %v914 = vpop.f32.mrf.mxu0
    %v915 = vadd.f32 0.0, %v914
    %v916 = vpop.f32.mrf.mxu0
    %v917 = vadd.f32 0.0, %v916
    %918 = vmatmul.bf16.gmra.mxu0 %v651
    %v919 = vpop.f32.mrf.mxu0
    %v920 = vadd.f32 0.0, %v919
    %v921 = vpop.f32.mrf.mxu0
    %v922 = vadd.f32 0.0, %v921
    %923 = vmatmul.bf16.gmra.mxu0 %v654
    %v924 = vpop.f32.mrf.mxu0
    %v925 = vadd.f32 0.0, %v924
    %v926 = vpop.f32.mrf.mxu0
    %v927 = vadd.f32 0.0, %v926
    %928 = vmatmul.bf16.gmra.mxu0 %v657
    %v929 = vpop.f32.mrf.mxu0
    %v930 = vadd.f32 0.0, %v929
    %v931 = vpop.f32.mrf.mxu0
    %v932 = vadd.f32 0.0, %v931
    %933 = vmatmul.bf16.gmra.mxu0 %v660
    %v934 = vpop.f32.mrf.mxu0
    %v935 = vadd.f32 0.0, %v934
    %v936 = vpop.f32.mrf.mxu0
    %v937 = vadd.f32 0.0, %v936
    %938 = vmatmul.bf16.gmra.mxu0 %v663
    %v939 = vpop.f32.mrf.mxu0
    %v940 = vadd.f32 0.0, %v939
    %v941 = vpop.f32.mrf.mxu0
    %v942 = vadd.f32 0.0, %v941
    %943 = vmatmul.bf16.gmra.mxu0 %v666
    %v944 = vpop.f32.mrf.mxu0
    %v945 = vadd.f32 0.0, %v944
    %v946 = vpop.f32.mrf.mxu0
    %v947 = vadd.f32 0.0, %v946
    %948 = vmatmul.bf16.gmra.mxu0 %v669
    %v949 = vpop.f32.mrf.mxu0
    %v950 = vadd.f32 0.0, %v949
    %v951 = vpop.f32.mrf.mxu0
    %v952 = vadd.f32 0.0, %v951
    %953 = vmatmul.bf16.gmra.mxu0 %v672
    %v954 = vpop.f32.mrf.mxu0
    %v955 = vadd.f32 0.0, %v954
    %v956 = vpop.f32.mrf.mxu0
    %v957 = vadd.f32 0.0, %v956
    %958 = vmatmul.bf16.gmra.mxu0 %v675
    %v959 = vpop.f32.mrf.mxu0
    %v960 = vadd.f32 0.0, %v959
    %v961 = vpop.f32.mrf.mxu0
    %v962 = vadd.f32 0.0, %v961
    %963 = vmatmul.bf16.gmra.mxu0 %v678
    %v964 = vpop.f32.mrf.mxu0
    %v965 = vadd.f32 0.0, %v964
    %v966 = vpop.f32.mrf.mxu0
    %v967 = vadd.f32 0.0, %v966
    %968 = vmatmul.bf16.gmra.mxu0 %v681
    %v969 = vpop.f32.mrf.mxu0
    %v970 = vadd.f32 0.0, %v969
    %v971 = vpop.f32.mrf.mxu0
    %v972 = vadd.f32 0.0, %v971
    %973 = vmatmul.bf16.gmra.mxu0 %v684
    %v974 = vpop.f32.mrf.mxu0
    %v975 = vadd.f32 0.0, %v974
    %v976 = vpop.f32.mrf.mxu0
    %v977 = vadd.f32 0.0, %v976
    %978 = vmatmul.bf16.gmra.mxu0 %v687
    %v979 = vpop.f32.mrf.mxu0
    %v980 = vadd.f32 0.0, %v979
    %v981 = vpop.f32.mrf.mxu0
    %v982 = vadd.f32 0.0, %v981
    %983 = vmatmul.bf16.gmra.mxu0 %v690
    %v984 = vpop.f32.mrf.mxu0
    %v985 = vadd.f32 0.0, %v984
    %v986 = vpop.f32.mrf.mxu0
    %v987 = vadd.f32 0.0, %v986
    %988 = vmatmul.bf16.gmra.mxu0 %v693
    %v989 = vpop.f32.mrf.mxu0
    %v990 = vadd.f32 0.0, %v989
    %v991 = vpop.f32.mrf.mxu0
    %v992 = vadd.f32 0.0, %v991
    %993 = vmatmul.bf16.gmra.mxu0 %v696
    %v994 = vpop.f32.mrf.mxu0
    %v995 = vadd.f32 0.0, %v994
    %v996 = vpop.f32.mrf.mxu0
    %v997 = vadd.f32 0.0, %v996
    %998 = vmatmul.bf16.gmra.mxu0 %v699
    %v999 = vpop.f32.mrf.mxu0
    %v1000 = vadd.f32 0.0, %v999
    %v1001 = vpop.f32.mrf.mxu0
    %v1002 = vadd.f32 0.0, %v1001
    %1003 = vmatmul.bf16.gmra.mxu0 %v702
    %v1004 = vpop.f32.mrf.mxu0
    %v1005 = vadd.f32 0.0, %v1004
    %v1006 = vpop.f32.mrf.mxu0
    %v1007 = vadd.f32 0.0, %v1006
    %1008 = vmatmul.bf16.gmra.mxu0 %v705
    %v1009 = vpop.f32.mrf.mxu0
    %v1010 = vadd.f32 0.0, %v1009
    %v1011 = vpop.f32.mrf.mxu0
    %v1012 = vadd.f32 0.0, %v1011
    %1013 = vmatmul.bf16.gmra.mxu0 %v708
    %v1014 = vpop.f32.mrf.mxu0
    %v1015 = vadd.f32 0.0, %v1014
    %v1016 = vpop.f32.mrf.mxu0
    %v1017 = vadd.f32 0.0, %v1016
    %1018 = vmatmul.bf16.gmra.mxu0 %v711
    %v1019 = vpop.f32.mrf.mxu0
    %v1020 = vadd.f32 0.0, %v1019
    %v1021 = vpop.f32.mrf.mxu0
    %v1022 = vadd.f32 0.0, %v1021
    %1023 = vmatmul.bf16.gmra.mxu0 %v714
    %v1024 = vpop.f32.mrf.mxu0
    %v1025 = vadd.f32 0.0, %v1024
    %v1026 = vpop.f32.mrf.mxu0
    %v1027 = vadd.f32 0.0, %v1026
    %1028 = vmatmul.bf16.gmra.mxu0 %v717
    %v1029 = vpop.f32.mrf.mxu0
    %v1030 = vadd.f32 0.0, %v1029
    %v1031 = vpop.f32.mrf.mxu0
    %v1032 = vadd.f32 0.0, %v1031
    %1033 = vmatmul.bf16.gmra.mxu0 %v720
    %v1034 = vpop.f32.mrf.mxu0
    %v1035 = vadd.f32 0.0, %v1034
    %v1036 = vpop.f32.mrf.mxu0
    %v1037 = vadd.f32 0.0, %v1036
    %1038 = vmatmul.bf16.gmra.mxu0 %v723
    %v1039 = vpop.f32.mrf.mxu0
    %v1040 = vadd.f32 0.0, %v1039
    %v1041 = vpop.f32.mrf.mxu0
    %v1042 = vadd.f32 0.0, %v1041
    %1043 = vmatmul.bf16.gmra.mxu0 %v726
    %v1044 = vpop.f32.mrf.mxu0
    %v1045 = vadd.f32 0.0, %v1044
    %v1046 = vpop.f32.mrf.mxu0
    %v1047 = vadd.f32 0.0, %v1046
    %1048 = vmatmul.bf16.gmra.mxu0 %v729
    %v1049 = vpop.f32.mrf.mxu0
    %v1050 = vadd.f32 0.0, %v1049
    %v1051 = vpop.f32.mrf.mxu0
    %v1052 = vadd.f32 0.0, %v1051
    %1053 = vmatmul.bf16.gmra.mxu0 %v732
    %v1054 = vpop.f32.mrf.mxu0
    %v1055 = vadd.f32 0.0, %v1054
    %v1056 = vpop.f32.mrf.mxu0
    %v1057 = vadd.f32 0.0, %v1056
    %1058 = vmatmul.bf16.gmra.mxu0 %v735
    %v1059 = vpop.f32.mrf.mxu0
    %v1060 = vadd.f32 0.0, %v1059
    %v1061 = vpop.f32.mrf.mxu0
    %v1062 = vadd.f32 0.0, %v1061
    %1063 = vmatmul.bf16.gmra.mxu0 %v738
    %v1064 = vpop.f32.mrf.mxu0
    %v1065 = vadd.f32 0.0, %v1064
    %v1066 = vpop.f32.mrf.mxu0
    %v1067 = vadd.f32 0.0, %v1066
    %1068 = vdwg.mxu0
    %v1069 = vpack.c.bf16 %v752, %v750
    %v1070 = vpack.c.bf16 %v757, %v755
    %v1071 = vpack.c.bf16 %v762, %v760
    %v1072 = vpack.c.bf16 %v767, %v765
    %v1073 = vpack.c.bf16 %v772, %v770
    %v1074 = vpack.c.bf16 %v777, %v775
    %v1075 = vpack.c.bf16 %v782, %v780
    %v1076 = vpack.c.bf16 %v787, %v785
    %v1077 = vpack.c.bf16 %v792, %v790
    %v1078 = vpack.c.bf16 %v797, %v795
    %v1079 = vpack.c.bf16 %v802, %v800
    %v1080 = vpack.c.bf16 %v807, %v805
    %v1081 = vpack.c.bf16 %v812, %v810
    %v1082 = vpack.c.bf16 %v817, %v815
    %v1083 = vpack.c.bf16 %v822, %v820
    %v1084 = vpack.c.bf16 %v827, %v825
    %v1085 = vpack.c.bf16 %v832, %v830
    %v1086 = vpack.c.bf16 %v837, %v835
    %v1087 = vpack.c.bf16 %v842, %v840
    %v1088 = vpack.c.bf16 %v847, %v845
    %v1089 = vpack.c.bf16 %v852, %v850
    %v1090 = vpack.c.bf16 %v857, %v855
    %v1091 = vpack.c.bf16 %v862, %v860
    %v1092 = vpack.c.bf16 %v867, %v865
    %v1093 = vpack.c.bf16 %v872, %v870
    %v1094 = vpack.c.bf16 %v877, %v875
    %v1095 = vpack.c.bf16 %v882, %v880
    %v1096 = vpack.c.bf16 %v887, %v885
    %v1097 = vpack.c.bf16 %v892, %v890
    %v1098 = vpack.c.bf16 %v897, %v895
    %v1099 = vpack.c.bf16 %v902, %v900
    %v1100 = vpack.c.bf16 %v907, %v905
    %v1101 = vpack.c.bf16 %v912, %v910
    %v1102 = vpack.c.bf16 %v917, %v915
    %v1103 = vpack.c.bf16 %v922, %v920
    %v1104 = vpack.c.bf16 %v927, %v925
    %v1105 = vpack.c.bf16 %v932, %v930
    %v1106 = vpack.c.bf16 %v937, %v935
    %v1107 = vpack.c.bf16 %v942, %v940
    %v1108 = vpack.c.bf16 %v947, %v945
    %v1109 = vpack.c.bf16 %v952, %v950
    %v1110 = vpack.c.bf16 %v957, %v955
    %v1111 = vpack.c.bf16 %v962, %v960
    %v1112 = vpack.c.bf16 %v967, %v965
    %v1113 = vpack.c.bf16 %v972, %v970
    %v1114 = vpack.c.bf16 %v977, %v975
    %v1115 = vpack.c.bf16 %v982, %v980
    %v1116 = vpack.c.bf16 %v987, %v985
    %v1117 = vpack.c.bf16 %v992, %v990
    %v1118 = vpack.c.bf16 %v997, %v995
    %v1119 = vpack.c.bf16 %v1002, %v1000
    %v1120 = vpack.c.bf16 %v1007, %v1005
    %v1121 = vpack.c.bf16 %v1012, %v1010
    %v1122 = vpack.c.bf16 %v1017, %v1015
    %v1123 = vpack.c.bf16 %v1022, %v1020
    %v1124 = vpack.c.bf16 %v1027, %v1025
    %v1125 = vpack.c.bf16 %v1032, %v1030
    %v1126 = vpack.c.bf16 %v1037, %v1035
    %v1127 = vpack.c.bf16 %v1042, %v1040
    %v1128 = vpack.c.bf16 %v1047, %v1045
    %v1129 = vpack.c.bf16 %v1052, %v1050
    %v1130 = vpack.c.bf16 %v1057, %v1055
    %v1131 = vpack.c.bf16 %v1062, %v1060
    %v1132 = vpack.c.bf16 %v1067, %v1065
    %v1133 = vld [vmem:[#allocation4] sm:$0xff]
    %v1134 = vld [vmem:[#allocation13] sm:$0xff]
    %v1135 = vld [vmem:[#allocation13 + $0x8] sm:$0xff]
    %v1136 = vld [vmem:[#allocation13 + $0x10] sm:$0xff]
    %v1137 = vld [vmem:[#allocation13 + $0x18] sm:$0xff]
    %v1142 = vunpack.c.l.b16 %v1134
    %v1143 = vunpack.c.h.b16 %v1134
    %v1144 = vunpack.c.l.b16 %v1135
    %v1145 = vunpack.c.h.b16 %v1135
    %v1146 = vunpack.c.l.b16 %v1136
    %v1147 = vunpack.c.h.b16 %v1136
    %v1148 = vunpack.c.l.b16 %v1137
    %v1149 = vunpack.c.h.b16 %v1137
    %v1150 = vpack.c.b16 %v1142, %v1142
    %v1151 = vpack.c.b16 %v1143, %v1143
    %v1152 = vpack.c.b16 %v1144, %v1144
    %v1153 = vpack.c.b16 %v1145, %v1145
    %v1154 = vpack.c.b16 %v1146, %v1146
    %v1155 = vpack.c.b16 %v1147, %v1147
    %v1156 = vpack.c.b16 %v1148, %v1148
    %v1157 = vpack.c.b16 %v1149, %v1149
    %1166 = vmatpush.bf16.msra.mxu0 %v1076
    %1167 = vmatpush.bf16.msra.mxu0 %v1075
    %1168 = vmatpush.bf16.msra.mxu0 %v1074
    %1169 = vmatpush.bf16.msra.mxu0 %v1073
    %1170 = vmatpush.bf16.msra.mxu0 %v1072
    %1171 = vmatpush.bf16.msra.mxu0 %v1071
    %1172 = vmatpush.bf16.msra.mxu0 %v1070
    %1173 = vmatpush.bf16.msra.mxu0 %v1069
    %1174 = vmatmul.bf16.gmra.mxu0 %v1150
    %v1175 = vpop.f32.mrf.mxu0
    %v1176 = vadd.f32 0.0, %v1175
    %v1177 = vpop.f32.mrf.mxu0
    %1178 = vdwg.mxu0
    %1179 = vmatpush.bf16.msra.mxu0 %v1084
    %1180 = vmatpush.bf16.msra.mxu0 %v1083
    %1181 = vmatpush.bf16.msra.mxu0 %v1082
    %1182 = vmatpush.bf16.msra.mxu0 %v1081
    %1183 = vmatpush.bf16.msra.mxu0 %v1080
    %1184 = vmatpush.bf16.msra.mxu0 %v1079
    %1185 = vmatpush.bf16.msra.mxu0 %v1078
    %1186 = vmatpush.bf16.msra.mxu0 %v1077
    %1187 = vmatmul.bf16.gmra.mxu0 %v1151
    %v1188 = vpop.f32.mrf.mxu0
    %v1189 = vadd.f32 %v1176, %v1188
    %v1190 = vpop.f32.mrf.mxu0
    %1191 = vdwg.mxu0
    %1192 = vmatpush.bf16.msra.mxu0 %v1092
    %1193 = vmatpush.bf16.msra.mxu0 %v1091
    %1194 = vmatpush.bf16.msra.mxu0 %v1090
    %1195 = vmatpush.bf16.msra.mxu0 %v1089
    %1196 = vmatpush.bf16.msra.mxu0 %v1088
    %1197 = vmatpush.bf16.msra.mxu0 %v1087
    %1198 = vmatpush.bf16.msra.mxu0 %v1086
    %1199 = vmatpush.bf16.msra.mxu0 %v1085
    %1200 = vmatmul.bf16.gmra.mxu0 %v1152
    %v1201 = vpop.f32.mrf.mxu0
    %v1202 = vadd.f32 %v1189, %v1201
    %v1203 = vpop.f32.mrf.mxu0
    %1204 = vdwg.mxu0
    %1205 = vmatpush.bf16.msra.mxu0 %v1100
    %1206 = vmatpush.bf16.msra.mxu0 %v1099
    %1207 = vmatpush.bf16.msra.mxu0 %v1098
    %1208 = vmatpush.bf16.msra.mxu0 %v1097
    %1209 = vmatpush.bf16.msra.mxu0 %v1096
    %1210 = vmatpush.bf16.msra.mxu0 %v1095
    %1211 = vmatpush.bf16.msra.mxu0 %v1094
    %1212 = vmatpush.bf16.msra.mxu0 %v1093
    %1213 = vmatmul.bf16.gmra.mxu0 %v1153
    %v1214 = vpop.f32.mrf.mxu0
    %v1215 = vadd.f32 %v1202, %v1214
    %v1216 = vpop.f32.mrf.mxu0
    %1217 = vdwg.mxu0
    %1218 = vmatpush.bf16.msra.mxu0 %v1108
    %1219 = vmatpush.bf16.msra.mxu0 %v1107
    %1220 = vmatpush.bf16.msra.mxu0 %v1106
    %1221 = vmatpush.bf16.msra.mxu0 %v1105
    %1222 = vmatpush.bf16.msra.mxu0 %v1104
    %1223 = vmatpush.bf16.msra.mxu0 %v1103
    %1224 = vmatpush.bf16.msra.mxu0 %v1102
    %1225 = vmatpush.bf16.msra.mxu0 %v1101
    %1226 = vmatmul.bf16.gmra.mxu0 %v1154
    %v1227 = vpop.f32.mrf.mxu0
    %v1228 = vadd.f32 %v1215, %v1227
    %v1229 = vpop.f32.mrf.mxu0
    %1230 = vdwg.mxu0
    %1231 = vmatpush.bf16.msra.mxu0 %v1116
    %1232 = vmatpush.bf16.msra.mxu0 %v1115
    %1233 = vmatpush.bf16.msra.mxu0 %v1114
    %1234 = vmatpush.bf16.msra.mxu0 %v1113
    %1235 = vmatpush.bf16.msra.mxu0 %v1112
    %1236 = vmatpush.bf16.msra.mxu0 %v1111
    %1237 = vmatpush.bf16.msra.mxu0 %v1110
    %1238 = vmatpush.bf16.msra.mxu0 %v1109
    %1239 = vmatmul.bf16.gmra.mxu0 %v1155
    %v1240 = vpop.f32.mrf.mxu0
    %v1241 = vadd.f32 %v1228, %v1240
    %v1242 = vpop.f32.mrf.mxu0
    %1243 = vdwg.mxu0
    %1244 = vmatpush.bf16.msra.mxu0 %v1124
    %1245 = vmatpush.bf16.msra.mxu0 %v1123
    %1246 = vmatpush.bf16.msra.mxu0 %v1122
    %1247 = vmatpush.bf16.msra.mxu0 %v1121
    %1248 = vmatpush.bf16.msra.mxu0 %v1120
    %1249 = vmatpush.bf16.msra.mxu0 %v1119
    %1250 = vmatpush.bf16.msra.mxu0 %v1118
    %1251 = vmatpush.bf16.msra.mxu0 %v1117
    %1252 = vmatmul.bf16.gmra.mxu0 %v1156
    %v1253 = vpop.f32.mrf.mxu0
    %v1254 = vadd.f32 %v1241, %v1253
    %v1255 = vpop.f32.mrf.mxu0
    %1256 = vdwg.mxu0
    %1257 = vmatpush.bf16.msra.mxu0 %v1132
    %1258 = vmatpush.bf16.msra.mxu0 %v1131
    %1259 = vmatpush.bf16.msra.mxu0 %v1130
    %1260 = vmatpush.bf16.msra.mxu0 %v1129
    %1261 = vmatpush.bf16.msra.mxu0 %v1128
    %1262 = vmatpush.bf16.msra.mxu0 %v1127
    %1263 = vmatpush.bf16.msra.mxu0 %v1126
    %1264 = vmatpush.bf16.msra.mxu0 %v1125
    %1265 = vmatmul.bf16.gmra.mxu0 %v1157
    %v1266 = vpop.f32.mrf.mxu0
    %v1267 = vadd.f32 %v1254, %v1266
    %v1268 = vpop.f32.mrf.mxu0
    %1269 = vdwg.mxu0
    %v1270 = vadd.f32 %v1133, %v1267
    %1271 = vst [vmem:[#allocation4] sm:$0xff] %v1270
    %v1272 = vld [vmem:[#allocation16] sm:$0xf]
    %v1273 = vld [vmem:[#allocation16 + $0x4] sm:$0xf]
    %v1274 = vld [vmem:[#allocation16 + $0x8] sm:$0xf]
    %v1275 = vld [vmem:[#allocation16 + $0xc] sm:$0xf]
    %v1276 = vld [vmem:[#allocation16 + $0x10] sm:$0xf]
    %v1277 = vld [vmem:[#allocation16 + $0x14] sm:$0xf]
    %v1278 = vld [vmem:[#allocation16 + $0x18] sm:$0xf]
    %v1279 = vld [vmem:[#allocation16 + $0x1c] sm:$0xf]
    %v1280 = vld [vmem:[#allocation16 + $0x20] sm:$0xf]
    %v1281 = vld [vmem:[#allocation16 + $0x24] sm:$0xf]
    %v1282 = vld [vmem:[#allocation16 + $0x28] sm:$0xf]
    %v1283 = vld [vmem:[#allocation16 + $0x2c] sm:$0xf]
    %v1284 = vld [vmem:[#allocation16 + $0x30] sm:$0xf]
    %v1285 = vld [vmem:[#allocation16 + $0x34] sm:$0xf]
    %v1286 = vld [vmem:[#allocation16 + $0x38] sm:$0xf]
    %v1287 = vld [vmem:[#allocation16 + $0x3c] sm:$0xf]
    %v1288 = vld [vmem:[#allocation17] sm:$0x1]
    %v1290 = vperm.slane %v1288, 0
    %v1308 = vunpack.c.l.b16 %v1272
    %v1309 = vunpack.c.l.b16 %v1273
    %v1310 = vunpack.c.l.b16 %v1274
    %v1311 = vunpack.c.l.b16 %v1275
    %v1312 = vunpack.c.l.b16 %v1276
    %v1313 = vunpack.c.l.b16 %v1277
    %v1314 = vunpack.c.l.b16 %v1278
    %v1315 = vunpack.c.l.b16 %v1279
    %v1316 = vunpack.c.l.b16 %v1280
    %v1317 = vunpack.c.l.b16 %v1281
    %v1318 = vunpack.c.l.b16 %v1282
    %v1319 = vunpack.c.l.b16 %v1283
    %v1320 = vunpack.c.l.b16 %v1284
    %v1321 = vunpack.c.l.b16 %v1285
    %v1322 = vunpack.c.l.b16 %v1286
    %v1323 = vunpack.c.l.b16 %v1287
    %v1324 = vpack.c.b16 %v1309, %v1308
    %v1325 = vpack.c.b16 %v1311, %v1310
    %v1326 = vpack.c.b16 %v1313, %v1312
    %v1327 = vpack.c.b16 %v1315, %v1314
    %v1328 = vpack.c.b16 %v1317, %v1316
    %v1329 = vpack.c.b16 %v1319, %v1318
    %v1330 = vpack.c.b16 %v1321, %v1320
    %v1331 = vpack.c.b16 %v1323, %v1322
    %1340 = vmatpush.bf16.msra.mxu0 %v1331
    %1341 = vmatpush.bf16.msra.mxu0 %v1330
    %1342 = vmatpush.bf16.msra.mxu0 %v1329
    %1343 = vmatpush.bf16.msra.mxu0 %v1328
    %1344 = vmatpush.bf16.msra.mxu0 %v1327
    %1345 = vmatpush.bf16.msra.mxu0 %v1326
    %1346 = vmatpush.bf16.msra.mxu0 %v1325
    %1347 = vmatpush.bf16.msra.mxu0 %v1324
    %1348 = vmatmul.bf16.gmra.mxu0 %v1069
    %v1349 = vpop.f32.mrf.mxu0
    %v1350 = vadd.f32 %v1290, %v1349
    %v1351 = vpop.f32.mrf.mxu0
    %v1352 = vadd.f32 %v1290, %v1351
    %1353 = vmatmul.bf16.gmra.mxu0 %v1070
    %v1354 = vpop.f32.mrf.mxu0
    %v1355 = vadd.f32 %v1290, %v1354
    %v1356 = vpop.f32.mrf.mxu0
    %v1357 = vadd.f32 %v1290, %v1356
    %1358 = vmatmul.bf16.gmra.mxu0 %v1071
    %v1359 = vpop.f32.mrf.mxu0
    %v1360 = vadd.f32 %v1290, %v1359
    %v1361 = vpop.f32.mrf.mxu0
    %v1362 = vadd.f32 %v1290, %v1361
    %1363 = vmatmul.bf16.gmra.mxu0 %v1072
    %v1364 = vpop.f32.mrf.mxu0
    %v1365 = vadd.f32 %v1290, %v1364
    %v1366 = vpop.f32.mrf.mxu0
    %v1367 = vadd.f32 %v1290, %v1366
    %1368 = vmatmul.bf16.gmra.mxu0 %v1073
    %v1369 = vpop.f32.mrf.mxu0
    %v1370 = vadd.f32 %v1290, %v1369
    %v1371 = vpop.f32.mrf.mxu0
    %v1372 = vadd.f32 %v1290, %v1371
    %1373 = vmatmul.bf16.gmra.mxu0 %v1074
    %v1374 = vpop.f32.mrf.mxu0
    %v1375 = vadd.f32 %v1290, %v1374
    %v1376 = vpop.f32.mrf.mxu0
    %v1377 = vadd.f32 %v1290, %v1376
    %1378 = vmatmul.bf16.gmra.mxu0 %v1075
    %v1379 = vpop.f32.mrf.mxu0
    %v1380 = vadd.f32 %v1290, %v1379
    %v1381 = vpop.f32.mrf.mxu0
    %v1382 = vadd.f32 %v1290, %v1381
    %1383 = vmatmul.bf16.gmra.mxu0 %v1076
    %v1384 = vpop.f32.mrf.mxu0
    %v1385 = vadd.f32 %v1290, %v1384
    %v1386 = vpop.f32.mrf.mxu0
    %v1387 = vadd.f32 %v1290, %v1386
    %1388 = vmatmul.bf16.gmra.mxu0 %v1077
    %v1389 = vpop.f32.mrf.mxu0
    %v1390 = vadd.f32 %v1290, %v1389
    %v1391 = vpop.f32.mrf.mxu0
    %v1392 = vadd.f32 %v1290, %v1391
    %1393 = vmatmul.bf16.gmra.mxu0 %v1078
    %v1394 = vpop.f32.mrf.mxu0
    %v1395 = vadd.f32 %v1290, %v1394
    %v1396 = vpop.f32.mrf.mxu0
    %v1397 = vadd.f32 %v1290, %v1396
    %1398 = vmatmul.bf16.gmra.mxu0 %v1079
    %v1399 = vpop.f32.mrf.mxu0
    %v1400 = vadd.f32 %v1290, %v1399
    %v1401 = vpop.f32.mrf.mxu0
    %v1402 = vadd.f32 %v1290, %v1401
    %1403 = vmatmul.bf16.gmra.mxu0 %v1080
    %v1404 = vpop.f32.mrf.mxu0
    %v1405 = vadd.f32 %v1290, %v1404
    %v1406 = vpop.f32.mrf.mxu0
    %v1407 = vadd.f32 %v1290, %v1406
    %1408 = vmatmul.bf16.gmra.mxu0 %v1081
    %v1409 = vpop.f32.mrf.mxu0
    %v1410 = vadd.f32 %v1290, %v1409
    %v1411 = vpop.f32.mrf.mxu0
    %v1412 = vadd.f32 %v1290, %v1411
    %1413 = vmatmul.bf16.gmra.mxu0 %v1082
    %v1414 = vpop.f32.mrf.mxu0
    %v1415 = vadd.f32 %v1290, %v1414
    %v1416 = vpop.f32.mrf.mxu0
    %v1417 = vadd.f32 %v1290, %v1416
    %1418 = vmatmul.bf16.gmra.mxu0 %v1083
    %v1419 = vpop.f32.mrf.mxu0
    %v1420 = vadd.f32 %v1290, %v1419
    %v1421 = vpop.f32.mrf.mxu0
    %v1422 = vadd.f32 %v1290, %v1421
    %1423 = vmatmul.bf16.gmra.mxu0 %v1084
    %v1424 = vpop.f32.mrf.mxu0
    %v1425 = vadd.f32 %v1290, %v1424
    %v1426 = vpop.f32.mrf.mxu0
    %v1427 = vadd.f32 %v1290, %v1426
    %1428 = vmatmul.bf16.gmra.mxu0 %v1085
    %v1429 = vpop.f32.mrf.mxu0
    %v1430 = vadd.f32 %v1290, %v1429
    %v1431 = vpop.f32.mrf.mxu0
    %v1432 = vadd.f32 %v1290, %v1431
    %1433 = vmatmul.bf16.gmra.mxu0 %v1086
    %v1434 = vpop.f32.mrf.mxu0
    %v1435 = vadd.f32 %v1290, %v1434
    %v1436 = vpop.f32.mrf.mxu0
    %v1437 = vadd.f32 %v1290, %v1436
    %1438 = vmatmul.bf16.gmra.mxu0 %v1087
    %v1439 = vpop.f32.mrf.mxu0
    %v1440 = vadd.f32 %v1290, %v1439
    %v1441 = vpop.f32.mrf.mxu0
    %v1442 = vadd.f32 %v1290, %v1441
    %1443 = vmatmul.bf16.gmra.mxu0 %v1088
    %v1444 = vpop.f32.mrf.mxu0
    %v1445 = vadd.f32 %v1290, %v1444
    %v1446 = vpop.f32.mrf.mxu0
    %v1447 = vadd.f32 %v1290, %v1446
    %1448 = vmatmul.bf16.gmra.mxu0 %v1089
    %v1449 = vpop.f32.mrf.mxu0
    %v1450 = vadd.f32 %v1290, %v1449
    %v1451 = vpop.f32.mrf.mxu0
    %v1452 = vadd.f32 %v1290, %v1451
    %1453 = vmatmul.bf16.gmra.mxu0 %v1090
    %v1454 = vpop.f32.mrf.mxu0
    %v1455 = vadd.f32 %v1290, %v1454
    %v1456 = vpop.f32.mrf.mxu0
    %v1457 = vadd.f32 %v1290, %v1456
    %1458 = vmatmul.bf16.gmra.mxu0 %v1091
    %v1459 = vpop.f32.mrf.mxu0
    %v1460 = vadd.f32 %v1290, %v1459
    %v1461 = vpop.f32.mrf.mxu0
    %v1462 = vadd.f32 %v1290, %v1461
    %1463 = vmatmul.bf16.gmra.mxu0 %v1092
    %v1464 = vpop.f32.mrf.mxu0
    %v1465 = vadd.f32 %v1290, %v1464
    %v1466 = vpop.f32.mrf.mxu0
    %v1467 = vadd.f32 %v1290, %v1466
    %1468 = vmatmul.bf16.gmra.mxu0 %v1093
    %v1469 = vpop.f32.mrf.mxu0
    %v1470 = vadd.f32 %v1290, %v1469
    %v1471 = vpop.f32.mrf.mxu0
    %v1472 = vadd.f32 %v1290, %v1471
    %1473 = vmatmul.bf16.gmra.mxu0 %v1094
    %v1474 = vpop.f32.mrf.mxu0
    %v1475 = vadd.f32 %v1290, %v1474
    %v1476 = vpop.f32.mrf.mxu0
    %v1477 = vadd.f32 %v1290, %v1476
    %1478 = vmatmul.bf16.gmra.mxu0 %v1095
    %v1479 = vpop.f32.mrf.mxu0
    %v1480 = vadd.f32 %v1290, %v1479
    %v1481 = vpop.f32.mrf.mxu0
    %v1482 = vadd.f32 %v1290, %v1481
    %1483 = vmatmul.bf16.gmra.mxu0 %v1096
    %v1484 = vpop.f32.mrf.mxu0
    %v1485 = vadd.f32 %v1290, %v1484
    %v1486 = vpop.f32.mrf.mxu0
    %v1487 = vadd.f32 %v1290, %v1486
    %1488 = vmatmul.bf16.gmra.mxu0 %v1097
    %v1489 = vpop.f32.mrf.mxu0
    %v1490 = vadd.f32 %v1290, %v1489
    %v1491 = vpop.f32.mrf.mxu0
    %v1492 = vadd.f32 %v1290, %v1491
    %1493 = vmatmul.bf16.gmra.mxu0 %v1098
    %v1494 = vpop.f32.mrf.mxu0
    %v1495 = vadd.f32 %v1290, %v1494
    %v1496 = vpop.f32.mrf.mxu0
    %v1497 = vadd.f32 %v1290, %v1496
    %1498 = vmatmul.bf16.gmra.mxu0 %v1099
    %v1499 = vpop.f32.mrf.mxu0
    %v1500 = vadd.f32 %v1290, %v1499
    %v1501 = vpop.f32.mrf.mxu0
    %v1502 = vadd.f32 %v1290, %v1501
    %1503 = vmatmul.bf16.gmra.mxu0 %v1100
    %v1504 = vpop.f32.mrf.mxu0
    %v1505 = vadd.f32 %v1290, %v1504
    %v1506 = vpop.f32.mrf.mxu0
    %v1507 = vadd.f32 %v1290, %v1506
    %1508 = vmatmul.bf16.gmra.mxu0 %v1101
    %v1509 = vpop.f32.mrf.mxu0
    %v1510 = vadd.f32 %v1290, %v1509
    %v1511 = vpop.f32.mrf.mxu0
    %v1512 = vadd.f32 %v1290, %v1511
    %1513 = vmatmul.bf16.gmra.mxu0 %v1102
    %v1514 = vpop.f32.mrf.mxu0
    %v1515 = vadd.f32 %v1290, %v1514
    %v1516 = vpop.f32.mrf.mxu0
    %v1517 = vadd.f32 %v1290, %v1516
    %1518 = vmatmul.bf16.gmra.mxu0 %v1103
    %v1519 = vpop.f32.mrf.mxu0
    %v1520 = vadd.f32 %v1290, %v1519
    %v1521 = vpop.f32.mrf.mxu0
    %v1522 = vadd.f32 %v1290, %v1521
    %1523 = vmatmul.bf16.gmra.mxu0 %v1104
    %v1524 = vpop.f32.mrf.mxu0
    %v1525 = vadd.f32 %v1290, %v1524
    %v1526 = vpop.f32.mrf.mxu0
    %v1527 = vadd.f32 %v1290, %v1526
    %1528 = vmatmul.bf16.gmra.mxu0 %v1105
    %v1529 = vpop.f32.mrf.mxu0
    %v1530 = vadd.f32 %v1290, %v1529
    %v1531 = vpop.f32.mrf.mxu0
    %v1532 = vadd.f32 %v1290, %v1531
    %1533 = vmatmul.bf16.gmra.mxu0 %v1106
    %v1534 = vpop.f32.mrf.mxu0
    %v1535 = vadd.f32 %v1290, %v1534
    %v1536 = vpop.f32.mrf.mxu0
    %v1537 = vadd.f32 %v1290, %v1536
    %1538 = vmatmul.bf16.gmra.mxu0 %v1107
    %v1539 = vpop.f32.mrf.mxu0
    %v1540 = vadd.f32 %v1290, %v1539
    %v1541 = vpop.f32.mrf.mxu0
    %v1542 = vadd.f32 %v1290, %v1541
    %1543 = vmatmul.bf16.gmra.mxu0 %v1108
    %v1544 = vpop.f32.mrf.mxu0
    %v1545 = vadd.f32 %v1290, %v1544
    %v1546 = vpop.f32.mrf.mxu0
    %v1547 = vadd.f32 %v1290, %v1546
    %1548 = vmatmul.bf16.gmra.mxu0 %v1109
    %v1549 = vpop.f32.mrf.mxu0
    %v1550 = vadd.f32 %v1290, %v1549
    %v1551 = vpop.f32.mrf.mxu0
    %v1552 = vadd.f32 %v1290, %v1551
    %1553 = vmatmul.bf16.gmra.mxu0 %v1110
    %v1554 = vpop.f32.mrf.mxu0
    %v1555 = vadd.f32 %v1290, %v1554
    %v1556 = vpop.f32.mrf.mxu0
    %v1557 = vadd.f32 %v1290, %v1556
    %1558 = vmatmul.bf16.gmra.mxu0 %v1111
    %v1559 = vpop.f32.mrf.mxu0
    %v1560 = vadd.f32 %v1290, %v1559
    %v1561 = vpop.f32.mrf.mxu0
    %v1562 = vadd.f32 %v1290, %v1561
    %1563 = vmatmul.bf16.gmra.mxu0 %v1112
    %v1564 = vpop.f32.mrf.mxu0
    %v1565 = vadd.f32 %v1290, %v1564
    %v1566 = vpop.f32.mrf.mxu0
    %v1567 = vadd.f32 %v1290, %v1566
    %1568 = vmatmul.bf16.gmra.mxu0 %v1113
    %v1569 = vpop.f32.mrf.mxu0
    %v1570 = vadd.f32 %v1290, %v1569
    %v1571 = vpop.f32.mrf.mxu0
    %v1572 = vadd.f32 %v1290, %v1571
    %1573 = vmatmul.bf16.gmra.mxu0 %v1114
    %v1574 = vpop.f32.mrf.mxu0
    %v1575 = vadd.f32 %v1290, %v1574
    %v1576 = vpop.f32.mrf.mxu0
    %v1577 = vadd.f32 %v1290, %v1576
    %1578 = vmatmul.bf16.gmra.mxu0 %v1115
    %v1579 = vpop.f32.mrf.mxu0
    %v1580 = vadd.f32 %v1290, %v1579
    %v1581 = vpop.f32.mrf.mxu0
    %v1582 = vadd.f32 %v1290, %v1581
    %1583 = vmatmul.bf16.gmra.mxu0 %v1116
    %v1584 = vpop.f32.mrf.mxu0
    %v1585 = vadd.f32 %v1290, %v1584
    %v1586 = vpop.f32.mrf.mxu0
    %v1587 = vadd.f32 %v1290, %v1586
    %1588 = vmatmul.bf16.gmra.mxu0 %v1117
    %v1589 = vpop.f32.mrf.mxu0
    %v1590 = vadd.f32 %v1290, %v1589
    %v1591 = vpop.f32.mrf.mxu0
    %v1592 = vadd.f32 %v1290, %v1591
    %1593 = vmatmul.bf16.gmra.mxu0 %v1118
    %v1594 = vpop.f32.mrf.mxu0
    %v1595 = vadd.f32 %v1290, %v1594
    %v1596 = vpop.f32.mrf.mxu0
    %v1597 = vadd.f32 %v1290, %v1596
    %1598 = vmatmul.bf16.gmra.mxu0 %v1119
    %v1599 = vpop.f32.mrf.mxu0
    %v1600 = vadd.f32 %v1290, %v1599
    %v1601 = vpop.f32.mrf.mxu0
    %v1602 = vadd.f32 %v1290, %v1601
    %1603 = vmatmul.bf16.gmra.mxu0 %v1120
    %v1604 = vpop.f32.mrf.mxu0
    %v1605 = vadd.f32 %v1290, %v1604
    %v1606 = vpop.f32.mrf.mxu0
    %v1607 = vadd.f32 %v1290, %v1606
    %1608 = vmatmul.bf16.gmra.mxu0 %v1121
    %v1609 = vpop.f32.mrf.mxu0
    %v1610 = vadd.f32 %v1290, %v1609
    %v1611 = vpop.f32.mrf.mxu0
    %v1612 = vadd.f32 %v1290, %v1611
    %1613 = vmatmul.bf16.gmra.mxu0 %v1122
    %v1614 = vpop.f32.mrf.mxu0
    %v1615 = vadd.f32 %v1290, %v1614
    %v1616 = vpop.f32.mrf.mxu0
    %v1617 = vadd.f32 %v1290, %v1616
    %1618 = vmatmul.bf16.gmra.mxu0 %v1123
    %v1619 = vpop.f32.mrf.mxu0
    %v1620 = vadd.f32 %v1290, %v1619
    %v1621 = vpop.f32.mrf.mxu0
    %v1622 = vadd.f32 %v1290, %v1621
    %1623 = vmatmul.bf16.gmra.mxu0 %v1124
    %v1624 = vpop.f32.mrf.mxu0
    %v1625 = vadd.f32 %v1290, %v1624
    %v1626 = vpop.f32.mrf.mxu0
    %v1627 = vadd.f32 %v1290, %v1626
    %1628 = vmatmul.bf16.gmra.mxu0 %v1125
    %v1629 = vpop.f32.mrf.mxu0
    %v1630 = vadd.f32 %v1290, %v1629
    %v1631 = vpop.f32.mrf.mxu0
    %v1632 = vadd.f32 %v1290, %v1631
    %1633 = vmatmul.bf16.gmra.mxu0 %v1126
    %v1634 = vpop.f32.mrf.mxu0
    %v1635 = vadd.f32 %v1290, %v1634
    %v1636 = vpop.f32.mrf.mxu0
    %v1637 = vadd.f32 %v1290, %v1636
    %1638 = vmatmul.bf16.gmra.mxu0 %v1127
    %v1639 = vpop.f32.mrf.mxu0
    %v1640 = vadd.f32 %v1290, %v1639
    %v1641 = vpop.f32.mrf.mxu0
    %v1642 = vadd.f32 %v1290, %v1641
    %1643 = vmatmul.bf16.gmra.mxu0 %v1128
    %v1644 = vpop.f32.mrf.mxu0
    %v1645 = vadd.f32 %v1290, %v1644
    %v1646 = vpop.f32.mrf.mxu0
    %v1647 = vadd.f32 %v1290, %v1646
    %1648 = vmatmul.bf16.gmra.mxu0 %v1129
    %v1649 = vpop.f32.mrf.mxu0
    %v1650 = vadd.f32 %v1290, %v1649
    %v1651 = vpop.f32.mrf.mxu0
    %v1652 = vadd.f32 %v1290, %v1651
    %1653 = vmatmul.bf16.gmra.mxu0 %v1130
    %v1654 = vpop.f32.mrf.mxu0
    %v1655 = vadd.f32 %v1290, %v1654
    %v1656 = vpop.f32.mrf.mxu0
    %v1657 = vadd.f32 %v1290, %v1656
    %1658 = vmatmul.bf16.gmra.mxu0 %v1131
    %v1659 = vpop.f32.mrf.mxu0
    %v1660 = vadd.f32 %v1290, %v1659
    %v1661 = vpop.f32.mrf.mxu0
    %v1662 = vadd.f32 %v1290, %v1661
    %1663 = vmatmul.bf16.gmra.mxu0 %v1132
    %v1664 = vpop.f32.mrf.mxu0
    %v1665 = vadd.f32 %v1290, %v1664
    %v1666 = vpop.f32.mrf.mxu0
    %v1667 = vadd.f32 %v1290, %v1666
    %1668 = vdwg.mxu0
    %v1669 = vmax.f32 %v1350, 0.0
    %v1670 = vmax.f32 %v1352, 0.0
    %v1671 = vmax.f32 %v1355, 0.0
    %v1672 = vmax.f32 %v1357, 0.0
    %v1673 = vmax.f32 %v1360, 0.0
    %v1674 = vmax.f32 %v1362, 0.0
    %v1675 = vmax.f32 %v1365, 0.0
    %v1676 = vmax.f32 %v1367, 0.0
    %v1677 = vmax.f32 %v1370, 0.0
    %v1678 = vmax.f32 %v1372, 0.0
    %v1679 = vmax.f32 %v1375, 0.0
    %v1680 = vmax.f32 %v1377, 0.0
    %v1681 = vmax.f32 %v1380, 0.0
    %v1682 = vmax.f32 %v1382, 0.0
    %v1683 = vmax.f32 %v1385, 0.0
    %v1684 = vmax.f32 %v1387, 0.0
    %v1685 = vmax.f32 %v1390, 0.0
    %v1686 = vmax.f32 %v1392, 0.0
    %v1687 = vmax.f32 %v1395, 0.0
    %v1688 = vmax.f32 %v1397, 0.0
    %v1689 = vmax.f32 %v1400, 0.0
    %v1690 = vmax.f32 %v1402, 0.0
    %v1691 = vmax.f32 %v1405, 0.0
    %v1692 = vmax.f32 %v1407, 0.0
    %v1693 = vmax.f32 %v1410, 0.0
    %v1694 = vmax.f32 %v1412, 0.0
    %v1695 = vmax.f32 %v1415, 0.0
    %v1696 = vmax.f32 %v1417, 0.0
    %v1697 = vmax.f32 %v1420, 0.0
    %v1698 = vmax.f32 %v1422, 0.0
    %v1699 = vmax.f32 %v1425, 0.0
    %v1700 = vmax.f32 %v1427, 0.0
    %v1701 = vmax.f32 %v1430, 0.0
    %v1702 = vmax.f32 %v1432, 0.0
    %v1703 = vmax.f32 %v1435, 0.0
    %v1704 = vmax.f32 %v1437, 0.0
    %v1705 = vmax.f32 %v1440, 0.0
    %v1706 = vmax.f32 %v1442, 0.0
    %v1707 = vmax.f32 %v1445, 0.0
    %v1708 = vmax.f32 %v1447, 0.0
    %v1709 = vmax.f32 %v1450, 0.0
    %v1710 = vmax.f32 %v1452, 0.0
    %v1711 = vmax.f32 %v1455, 0.0
    %v1712 = vmax.f32 %v1457, 0.0
    %v1713 = vmax.f32 %v1460, 0.0
    %v1714 = vmax.f32 %v1462, 0.0
    %v1715 = vmax.f32 %v1465, 0.0
    %v1716 = vmax.f32 %v1467, 0.0
    %v1717 = vmax.f32 %v1470, 0.0
    %v1718 = vmax.f32 %v1472, 0.0
    %v1719 = vmax.f32 %v1475, 0.0
    %v1720 = vmax.f32 %v1477, 0.0
    %v1721 = vmax.f32 %v1480, 0.0
    %v1722 = vmax.f32 %v1482, 0.0
    %v1723 = vmax.f32 %v1485, 0.0
    %v1724 = vmax.f32 %v1487, 0.0
    %v1725 = vmax.f32 %v1490, 0.0
    %v1726 = vmax.f32 %v1492, 0.0
    %v1727 = vmax.f32 %v1495, 0.0
    %v1728 = vmax.f32 %v1497, 0.0
    %v1729 = vmax.f32 %v1500, 0.0
    %v1730 = vmax.f32 %v1502, 0.0
    %v1731 = vmax.f32 %v1505, 0.0
    %v1732 = vmax.f32 %v1507, 0.0
    %v1733 = vmax.f32 %v1510, 0.0
    %v1734 = vmax.f32 %v1512, 0.0
    %v1735 = vmax.f32 %v1515, 0.0
    %v1736 = vmax.f32 %v1517, 0.0
    %v1737 = vmax.f32 %v1520, 0.0
    %v1738 = vmax.f32 %v1522, 0.0
    %v1739 = vmax.f32 %v1525, 0.0
    %v1740 = vmax.f32 %v1527, 0.0
    %v1741 = vmax.f32 %v1530, 0.0
    %v1742 = vmax.f32 %v1532, 0.0
    %v1743 = vmax.f32 %v1535, 0.0
    %v1744 = vmax.f32 %v1537, 0.0
    %v1745 = vmax.f32 %v1540, 0.0
    %v1746 = vmax.f32 %v1542, 0.0
    %v1747 = vmax.f32 %v1545, 0.0
    %v1748 = vmax.f32 %v1547, 0.0
    %v1749 = vmax.f32 %v1550, 0.0
    %v1750 = vmax.f32 %v1552, 0.0
    %v1751 = vmax.f32 %v1555, 0.0
    %v1752 = vmax.f32 %v1557, 0.0
    %v1753 = vmax.f32 %v1560, 0.0
    %v1754 = vmax.f32 %v1562, 0.0
    %v1755 = vmax.f32 %v1565, 0.0
    %v1756 = vmax.f32 %v1567, 0.0
    %v1757 = vmax.f32 %v1570, 0.0
    %v1758 = vmax.f32 %v1572, 0.0
    %v1759 = vmax.f32 %v1575, 0.0
    %v1760 = vmax.f32 %v1577, 0.0
    %v1761 = vmax.f32 %v1580, 0.0
    %v1762 = vmax.f32 %v1582, 0.0
    %v1763 = vmax.f32 %v1585, 0.0
    %v1764 = vmax.f32 %v1587, 0.0
    %v1765 = vmax.f32 %v1590, 0.0
    %v1766 = vmax.f32 %v1592, 0.0
    %v1767 = vmax.f32 %v1595, 0.0
    %v1768 = vmax.f32 %v1597, 0.0
    %v1769 = vmax.f32 %v1600, 0.0
    %v1770 = vmax.f32 %v1602, 0.0
    %v1771 = vmax.f32 %v1605, 0.0
    %v1772 = vmax.f32 %v1607, 0.0
    %v1773 = vmax.f32 %v1610, 0.0
    %v1774 = vmax.f32 %v1612, 0.0
    %v1775 = vmax.f32 %v1615, 0.0
    %v1776 = vmax.f32 %v1617, 0.0
    %v1777 = vmax.f32 %v1620, 0.0
    %v1778 = vmax.f32 %v1622, 0.0
    %v1779 = vmax.f32 %v1625, 0.0
    %v1780 = vmax.f32 %v1627, 0.0
    %v1781 = vmax.f32 %v1630, 0.0
    %v1782 = vmax.f32 %v1632, 0.0
    %v1783 = vmax.f32 %v1635, 0.0
    %v1784 = vmax.f32 %v1637, 0.0
    %v1785 = vmax.f32 %v1640, 0.0
    %v1786 = vmax.f32 %v1642, 0.0
    %v1787 = vmax.f32 %v1645, 0.0
    %v1788 = vmax.f32 %v1647, 0.0
    %v1789 = vmax.f32 %v1650, 0.0
    %v1790 = vmax.f32 %v1652, 0.0
    %v1791 = vmax.f32 %v1655, 0.0
    %v1792 = vmax.f32 %v1657, 0.0
    %v1793 = vmax.f32 %v1660, 0.0
    %v1794 = vmax.f32 %v1662, 0.0
    %v1795 = vmax.f32 %v1665, 0.0
    %v1796 = vmax.f32 %v1667, 0.0
    %v1797 = vpack.c.bf16 %v1670, %v1669
    %v1798 = vpack.c.bf16 %v1672, %v1671
    %v1799 = vpack.c.bf16 %v1674, %v1673
    %v1800 = vpack.c.bf16 %v1676, %v1675
    %v1801 = vpack.c.bf16 %v1678, %v1677
    %v1802 = vpack.c.bf16 %v1680, %v1679
    %v1803 = vpack.c.bf16 %v1682, %v1681
    %v1804 = vpack.c.bf16 %v1684, %v1683
    %v1805 = vpack.c.bf16 %v1686, %v1685
    %v1806 = vpack.c.bf16 %v1688, %v1687
    %v1807 = vpack.c.bf16 %v1690, %v1689
    %v1808 = vpack.c.bf16 %v1692, %v1691
    %v1809 = vpack.c.bf16 %v1694, %v1693
    %v1810 = vpack.c.bf16 %v1696, %v1695
    %v1811 = vpack.c.bf16 %v1698, %v1697
    %v1812 = vpack.c.bf16 %v1700, %v1699
    %v1813 = vpack.c.bf16 %v1702, %v1701
    %v1814 = vpack.c.bf16 %v1704, %v1703
    %v1815 = vpack.c.bf16 %v1706, %v1705
    %v1816 = vpack.c.bf16 %v1708, %v1707
    %v1817 = vpack.c.bf16 %v1710, %v1709
    %v1818 = vpack.c.bf16 %v1712, %v1711
    %v1819 = vpack.c.bf16 %v1714, %v1713
    %v1820 = vpack.c.bf16 %v1716, %v1715
    %v1821 = vpack.c.bf16 %v1718, %v1717
    %v1822 = vpack.c.bf16 %v1720, %v1719
    %v1823 = vpack.c.bf16 %v1722, %v1721
    %v1824 = vpack.c.bf16 %v1724, %v1723
    %v1825 = vpack.c.bf16 %v1726, %v1725
    %v1826 = vpack.c.bf16 %v1728, %v1727
    %v1827 = vpack.c.bf16 %v1730, %v1729
    %v1828 = vpack.c.bf16 %v1732, %v1731
    %v1829 = vpack.c.bf16 %v1734, %v1733
    %v1830 = vpack.c.bf16 %v1736, %v1735
    %v1831 = vpack.c.bf16 %v1738, %v1737
    %v1832 = vpack.c.bf16 %v1740, %v1739
    %v1833 = vpack.c.bf16 %v1742, %v1741
    %v1834 = vpack.c.bf16 %v1744, %v1743
    %v1835 = vpack.c.bf16 %v1746, %v1745
    %v1836 = vpack.c.bf16 %v1748, %v1747
    %v1837 = vpack.c.bf16 %v1750, %v1749
    %v1838 = vpack.c.bf16 %v1752, %v1751
    %v1839 = vpack.c.bf16 %v1754, %v1753
    %v1840 = vpack.c.bf16 %v1756, %v1755
    %v1841 = vpack.c.bf16 %v1758, %v1757
    %v1842 = vpack.c.bf16 %v1760, %v1759
    %v1843 = vpack.c.bf16 %v1762, %v1761
    %v1844 = vpack.c.bf16 %v1764, %v1763
    %v1845 = vpack.c.bf16 %v1766, %v1765
    %v1846 = vpack.c.bf16 %v1768, %v1767
    %v1847 = vpack.c.bf16 %v1770, %v1769
    %v1848 = vpack.c.bf16 %v1772, %v1771
    %v1849 = vpack.c.bf16 %v1774, %v1773
    %v1850 = vpack.c.bf16 %v1776, %v1775
    %v1851 = vpack.c.bf16 %v1778, %v1777
    %v1852 = vpack.c.bf16 %v1780, %v1779
    %v1853 = vpack.c.bf16 %v1782, %v1781
    %v1854 = vpack.c.bf16 %v1784, %v1783
    %v1855 = vpack.c.bf16 %v1786, %v1785
    %v1856 = vpack.c.bf16 %v1788, %v1787
    %v1857 = vpack.c.bf16 %v1790, %v1789
    %v1858 = vpack.c.bf16 %v1792, %v1791
    %v1859 = vpack.c.bf16 %v1794, %v1793
    %v1860 = vpack.c.bf16 %v1796, %v1795
    %s1861 = scalar_lea.vmem [#allocation16], 64
    %v1862 = vld [vmem:[%s1861] sm:$0xf]
    %v1863 = vld [vmem:[%s1861 + $0x4] sm:$0xf]
    %v1864 = vld [vmem:[%s1861 + $0x8] sm:$0xf]
    %v1865 = vld [vmem:[%s1861 + $0xc] sm:$0xf]
    %v1866 = vld [vmem:[%s1861 + $0x10] sm:$0xf]
    %v1867 = vld [vmem:[%s1861 + $0x14] sm:$0xf]
    %v1868 = vld [vmem:[%s1861 + $0x18] sm:$0xf]
    %v1869 = vld [vmem:[%s1861 + $0x1c] sm:$0xf]
    %v1870 = vld [vmem:[%s1861 + $0x20] sm:$0xf]
    %v1871 = vld [vmem:[%s1861 + $0x24] sm:$0xf]
    %v1872 = vld [vmem:[%s1861 + $0x28] sm:$0xf]
    %v1873 = vld [vmem:[%s1861 + $0x2c] sm:$0xf]
    %v1874 = vld [vmem:[%s1861 + $0x30] sm:$0xf]
    %v1875 = vld [vmem:[%s1861 + $0x34] sm:$0xf]
    %v1876 = vld [vmem:[%s1861 + $0x38] sm:$0xf]
    %v1877 = vld [vmem:[%s1861 + $0x3c] sm:$0xf]
    %s1878 = scalar_lea.vmem [#allocation17], 1
    %v1879 = vld [vmem:[%s1878] sm:$0x1]
    %v1881 = vperm.slane %v1879, 0
    %v1899 = vunpack.c.l.b16 %v1862
    %v1900 = vunpack.c.l.b16 %v1863
    %v1901 = vunpack.c.l.b16 %v1864
    %v1902 = vunpack.c.l.b16 %v1865
    %v1903 = vunpack.c.l.b16 %v1866
    %v1904 = vunpack.c.l.b16 %v1867
    %v1905 = vunpack.c.l.b16 %v1868
    %v1906 = vunpack.c.l.b16 %v1869
    %v1907 = vunpack.c.l.b16 %v1870
    %v1908 = vunpack.c.l.b16 %v1871
    %v1909 = vunpack.c.l.b16 %v1872
    %v1910 = vunpack.c.l.b16 %v1873
    %v1911 = vunpack.c.l.b16 %v1874
    %v1912 = vunpack.c.l.b16 %v1875
    %v1913 = vunpack.c.l.b16 %v1876
    %v1914 = vunpack.c.l.b16 %v1877
    %v1915 = vpack.c.b16 %v1900, %v1899
    %v1916 = vpack.c.b16 %v1902, %v1901
    %v1917 = vpack.c.b16 %v1904, %v1903
    %v1918 = vpack.c.b16 %v1906, %v1905
    %v1919 = vpack.c.b16 %v1908, %v1907
    %v1920 = vpack.c.b16 %v1910, %v1909
    %v1921 = vpack.c.b16 %v1912, %v1911
    %v1922 = vpack.c.b16 %v1914, %v1913
    %1931 = vmatpush.bf16.msra.mxu0 %v1922
    %1932 = vmatpush.bf16.msra.mxu0 %v1921
    %1933 = vmatpush.bf16.msra.mxu0 %v1920
    %1934 = vmatpush.bf16.msra.mxu0 %v1919
    %1935 = vmatpush.bf16.msra.mxu0 %v1918
    %1936 = vmatpush.bf16.msra.mxu0 %v1917
    %1937 = vmatpush.bf16.msra.mxu0 %v1916
    %1938 = vmatpush.bf16.msra.mxu0 %v1915
    %1939 = vmatmul.bf16.gmra.mxu0 %v1797
    %v1940 = vpop.f32.mrf.mxu0
    %v1941 = vadd.f32 %v1881, %v1940
    %v1942 = vpop.f32.mrf.mxu0
    %v1943 = vadd.f32 %v1881, %v1942
    %1944 = vmatmul.bf16.gmra.mxu0 %v1798
    %v1945 = vpop.f32.mrf.mxu0
    %v1946 = vadd.f32 %v1881, %v1945
    %v1947 = vpop.f32.mrf.mxu0
    %v1948 = vadd.f32 %v1881, %v1947
    %1949 = vmatmul.bf16.gmra.mxu0 %v1799
    %v1950 = vpop.f32.mrf.mxu0
    %v1951 = vadd.f32 %v1881, %v1950
    %v1952 = vpop.f32.mrf.mxu0
    %v1953 = vadd.f32 %v1881, %v1952
    %1954 = vmatmul.bf16.gmra.mxu0 %v1800
    %v1955 = vpop.f32.mrf.mxu0
    %v1956 = vadd.f32 %v1881, %v1955
    %v1957 = vpop.f32.mrf.mxu0
    %v1958 = vadd.f32 %v1881, %v1957
    %1959 = vmatmul.bf16.gmra.mxu0 %v1801
    %v1960 = vpop.f32.mrf.mxu0
    %v1961 = vadd.f32 %v1881, %v1960
    %v1962 = vpop.f32.mrf.mxu0
    %v1963 = vadd.f32 %v1881, %v1962
    %1964 = vmatmul.bf16.gmra.mxu0 %v1802
    %v1965 = vpop.f32.mrf.mxu0
    %v1966 = vadd.f32 %v1881, %v1965
    %v1967 = vpop.f32.mrf.mxu0
    %v1968 = vadd.f32 %v1881, %v1967
    %1969 = vmatmul.bf16.gmra.mxu0 %v1803
    %v1970 = vpop.f32.mrf.mxu0
    %v1971 = vadd.f32 %v1881, %v1970
    %v1972 = vpop.f32.mrf.mxu0
    %v1973 = vadd.f32 %v1881, %v1972
    %1974 = vmatmul.bf16.gmra.mxu0 %v1804
    %v1975 = vpop.f32.mrf.mxu0
    %v1976 = vadd.f32 %v1881, %v1975
    %v1977 = vpop.f32.mrf.mxu0
    %v1978 = vadd.f32 %v1881, %v1977
    %1979 = vmatmul.bf16.gmra.mxu0 %v1805
    %v1980 = vpop.f32.mrf.mxu0
    %v1981 = vadd.f32 %v1881, %v1980
    %v1982 = vpop.f32.mrf.mxu0
    %v1983 = vadd.f32 %v1881, %v1982
    %1984 = vmatmul.bf16.gmra.mxu0 %v1806
    %v1985 = vpop.f32.mrf.mxu0
    %v1986 = vadd.f32 %v1881, %v1985
    %v1987 = vpop.f32.mrf.mxu0
    %v1988 = vadd.f32 %v1881, %v1987
    %1989 = vmatmul.bf16.gmra.mxu0 %v1807
    %v1990 = vpop.f32.mrf.mxu0
    %v1991 = vadd.f32 %v1881, %v1990
    %v1992 = vpop.f32.mrf.mxu0
    %v1993 = vadd.f32 %v1881, %v1992
    %1994 = vmatmul.bf16.gmra.mxu0 %v1808
    %v1995 = vpop.f32.mrf.mxu0
    %v1996 = vadd.f32 %v1881, %v1995
    %v1997 = vpop.f32.mrf.mxu0
    %v1998 = vadd.f32 %v1881, %v1997
    %1999 = vmatmul.bf16.gmra.mxu0 %v1809
    %v2000 = vpop.f32.mrf.mxu0
    %v2001 = vadd.f32 %v1881, %v2000
    %v2002 = vpop.f32.mrf.mxu0
    %v2003 = vadd.f32 %v1881, %v2002
    %2004 = vmatmul.bf16.gmra.mxu0 %v1810
    %v2005 = vpop.f32.mrf.mxu0
    %v2006 = vadd.f32 %v1881, %v2005
    %v2007 = vpop.f32.mrf.mxu0
    %v2008 = vadd.f32 %v1881, %v2007
    %2009 = vmatmul.bf16.gmra.mxu0 %v1811
    %v2010 = vpop.f32.mrf.mxu0
    %v2011 = vadd.f32 %v1881, %v2010
    %v2012 = vpop.f32.mrf.mxu0
    %v2013 = vadd.f32 %v1881, %v2012
    %2014 = vmatmul.bf16.gmra.mxu0 %v1812
    %v2015 = vpop.f32.mrf.mxu0
    %v2016 = vadd.f32 %v1881, %v2015
    %v2017 = vpop.f32.mrf.mxu0
    %v2018 = vadd.f32 %v1881, %v2017
    %2019 = vmatmul.bf16.gmra.mxu0 %v1813
    %v2020 = vpop.f32.mrf.mxu0
    %v2021 = vadd.f32 %v1881, %v2020
    %v2022 = vpop.f32.mrf.mxu0
    %v2023 = vadd.f32 %v1881, %v2022
    %2024 = vmatmul.bf16.gmra.mxu0 %v1814
    %v2025 = vpop.f32.mrf.mxu0
    %v2026 = vadd.f32 %v1881, %v2025
    %v2027 = vpop.f32.mrf.mxu0
    %v2028 = vadd.f32 %v1881, %v2027
    %2029 = vmatmul.bf16.gmra.mxu0 %v1815
    %v2030 = vpop.f32.mrf.mxu0
    %v2031 = vadd.f32 %v1881, %v2030
    %v2032 = vpop.f32.mrf.mxu0
    %v2033 = vadd.f32 %v1881, %v2032
    %2034 = vmatmul.bf16.gmra.mxu0 %v1816
    %v2035 = vpop.f32.mrf.mxu0
    %v2036 = vadd.f32 %v1881, %v2035
    %v2037 = vpop.f32.mrf.mxu0
    %v2038 = vadd.f32 %v1881, %v2037
    %2039 = vmatmul.bf16.gmra.mxu0 %v1817
    %v2040 = vpop.f32.mrf.mxu0
    %v2041 = vadd.f32 %v1881, %v2040
    %v2042 = vpop.f32.mrf.mxu0
    %v2043 = vadd.f32 %v1881, %v2042
    %2044 = vmatmul.bf16.gmra.mxu0 %v1818
    %v2045 = vpop.f32.mrf.mxu0
    %v2046 = vadd.f32 %v1881, %v2045
    %v2047 = vpop.f32.mrf.mxu0
    %v2048 = vadd.f32 %v1881, %v2047
    %2049 = vmatmul.bf16.gmra.mxu0 %v1819
    %v2050 = vpop.f32.mrf.mxu0
    %v2051 = vadd.f32 %v1881, %v2050
    %v2052 = vpop.f32.mrf.mxu0
    %v2053 = vadd.f32 %v1881, %v2052
    %2054 = vmatmul.bf16.gmra.mxu0 %v1820
    %v2055 = vpop.f32.mrf.mxu0
    %v2056 = vadd.f32 %v1881, %v2055
    %v2057 = vpop.f32.mrf.mxu0
    %v2058 = vadd.f32 %v1881, %v2057
    %2059 = vmatmul.bf16.gmra.mxu0 %v1821
    %v2060 = vpop.f32.mrf.mxu0
    %v2061 = vadd.f32 %v1881, %v2060
    %v2062 = vpop.f32.mrf.mxu0
    %v2063 = vadd.f32 %v1881, %v2062
    %2064 = vmatmul.bf16.gmra.mxu0 %v1822
    %v2065 = vpop.f32.mrf.mxu0
    %v2066 = vadd.f32 %v1881, %v2065
    %v2067 = vpop.f32.mrf.mxu0
    %v2068 = vadd.f32 %v1881, %v2067
    %2069 = vmatmul.bf16.gmra.mxu0 %v1823
    %v2070 = vpop.f32.mrf.mxu0
    %v2071 = vadd.f32 %v1881, %v2070
    %v2072 = vpop.f32.mrf.mxu0
    %v2073 = vadd.f32 %v1881, %v2072
    %2074 = vmatmul.bf16.gmra.mxu0 %v1824
    %v2075 = vpop.f32.mrf.mxu0
    %v2076 = vadd.f32 %v1881, %v2075
    %v2077 = vpop.f32.mrf.mxu0
    %v2078 = vadd.f32 %v1881, %v2077
    %2079 = vmatmul.bf16.gmra.mxu0 %v1825
    %v2080 = vpop.f32.mrf.mxu0
    %v2081 = vadd.f32 %v1881, %v2080
    %v2082 = vpop.f32.mrf.mxu0
    %v2083 = vadd.f32 %v1881, %v2082
    %2084 = vmatmul.bf16.gmra.mxu0 %v1826
    %v2085 = vpop.f32.mrf.mxu0
    %v2086 = vadd.f32 %v1881, %v2085
    %v2087 = vpop.f32.mrf.mxu0
    %v2088 = vadd.f32 %v1881, %v2087
    %2089 = vmatmul.bf16.gmra.mxu0 %v1827
    %v2090 = vpop.f32.mrf.mxu0
    %v2091 = vadd.f32 %v1881, %v2090
    %v2092 = vpop.f32.mrf.mxu0
    %v2093 = vadd.f32 %v1881, %v2092
    %2094 = vmatmul.bf16.gmra.mxu0 %v1828
    %v2095 = vpop.f32.mrf.mxu0
    %v2096 = vadd.f32 %v1881, %v2095
    %v2097 = vpop.f32.mrf.mxu0
    %v2098 = vadd.f32 %v1881, %v2097
    %2099 = vmatmul.bf16.gmra.mxu0 %v1829
    %v2100 = vpop.f32.mrf.mxu0
    %v2101 = vadd.f32 %v1881, %v2100
    %v2102 = vpop.f32.mrf.mxu0
    %v2103 = vadd.f32 %v1881, %v2102
    %2104 = vmatmul.bf16.gmra.mxu0 %v1830
    %v2105 = vpop.f32.mrf.mxu0
    %v2106 = vadd.f32 %v1881, %v2105
    %v2107 = vpop.f32.mrf.mxu0
    %v2108 = vadd.f32 %v1881, %v2107
    %2109 = vmatmul.bf16.gmra.mxu0 %v1831
    %v2110 = vpop.f32.mrf.mxu0
    %v2111 = vadd.f32 %v1881, %v2110
    %v2112 = vpop.f32.mrf.mxu0
    %v2113 = vadd.f32 %v1881, %v2112
    %2114 = vmatmul.bf16.gmra.mxu0 %v1832
    %v2115 = vpop.f32.mrf.mxu0
    %v2116 = vadd.f32 %v1881, %v2115
    %v2117 = vpop.f32.mrf.mxu0
    %v2118 = vadd.f32 %v1881, %v2117
    %2119 = vmatmul.bf16.gmra.mxu0 %v1833
    %v2120 = vpop.f32.mrf.mxu0
    %v2121 = vadd.f32 %v1881, %v2120
    %v2122 = vpop.f32.mrf.mxu0
    %v2123 = vadd.f32 %v1881, %v2122
    %2124 = vmatmul.bf16.gmra.mxu0 %v1834
    %v2125 = vpop.f32.mrf.mxu0
    %v2126 = vadd.f32 %v1881, %v2125
    %v2127 = vpop.f32.mrf.mxu0
    %v2128 = vadd.f32 %v1881, %v2127
    %2129 = vmatmul.bf16.gmra.mxu0 %v1835
    %v2130 = vpop.f32.mrf.mxu0
    %v2131 = vadd.f32 %v1881, %v2130
    %v2132 = vpop.f32.mrf.mxu0
    %v2133 = vadd.f32 %v1881, %v2132
    %2134 = vmatmul.bf16.gmra.mxu0 %v1836
    %v2135 = vpop.f32.mrf.mxu0
    %v2136 = vadd.f32 %v1881, %v2135
    %v2137 = vpop.f32.mrf.mxu0
    %v2138 = vadd.f32 %v1881, %v2137
    %2139 = vmatmul.bf16.gmra.mxu0 %v1837
    %v2140 = vpop.f32.mrf.mxu0
    %v2141 = vadd.f32 %v1881, %v2140
    %v2142 = vpop.f32.mrf.mxu0
    %v2143 = vadd.f32 %v1881, %v2142
    %2144 = vmatmul.bf16.gmra.mxu0 %v1838
    %v2145 = vpop.f32.mrf.mxu0
    %v2146 = vadd.f32 %v1881, %v2145
    %v2147 = vpop.f32.mrf.mxu0
    %v2148 = vadd.f32 %v1881, %v2147
    %2149 = vmatmul.bf16.gmra.mxu0 %v1839
    %v2150 = vpop.f32.mrf.mxu0
    %v2151 = vadd.f32 %v1881, %v2150
    %v2152 = vpop.f32.mrf.mxu0
    %v2153 = vadd.f32 %v1881, %v2152
    %2154 = vmatmul.bf16.gmra.mxu0 %v1840
    %v2155 = vpop.f32.mrf.mxu0
    %v2156 = vadd.f32 %v1881, %v2155
    %v2157 = vpop.f32.mrf.mxu0
    %v2158 = vadd.f32 %v1881, %v2157
    %2159 = vmatmul.bf16.gmra.mxu0 %v1841
    %v2160 = vpop.f32.mrf.mxu0
    %v2161 = vadd.f32 %v1881, %v2160
    %v2162 = vpop.f32.mrf.mxu0
    %v2163 = vadd.f32 %v1881, %v2162
    %2164 = vmatmul.bf16.gmra.mxu0 %v1842
    %v2165 = vpop.f32.mrf.mxu0
    %v2166 = vadd.f32 %v1881, %v2165
    %v2167 = vpop.f32.mrf.mxu0
    %v2168 = vadd.f32 %v1881, %v2167
    %2169 = vmatmul.bf16.gmra.mxu0 %v1843
    %v2170 = vpop.f32.mrf.mxu0
    %v2171 = vadd.f32 %v1881, %v2170
    %v2172 = vpop.f32.mrf.mxu0
    %v2173 = vadd.f32 %v1881, %v2172
    %2174 = vmatmul.bf16.gmra.mxu0 %v1844
    %v2175 = vpop.f32.mrf.mxu0
    %v2176 = vadd.f32 %v1881, %v2175
    %v2177 = vpop.f32.mrf.mxu0
    %v2178 = vadd.f32 %v1881, %v2177
    %2179 = vmatmul.bf16.gmra.mxu0 %v1845
    %v2180 = vpop.f32.mrf.mxu0
    %v2181 = vadd.f32 %v1881, %v2180
    %v2182 = vpop.f32.mrf.mxu0
    %v2183 = vadd.f32 %v1881, %v2182
    %2184 = vmatmul.bf16.gmra.mxu0 %v1846
    %v2185 = vpop.f32.mrf.mxu0
    %v2186 = vadd.f32 %v1881, %v2185
    %v2187 = vpop.f32.mrf.mxu0
    %v2188 = vadd.f32 %v1881, %v2187
    %2189 = vmatmul.bf16.gmra.mxu0 %v1847
    %v2190 = vpop.f32.mrf.mxu0
    %v2191 = vadd.f32 %v1881, %v2190
    %v2192 = vpop.f32.mrf.mxu0
    %v2193 = vadd.f32 %v1881, %v2192
    %2194 = vmatmul.bf16.gmra.mxu0 %v1848
    %v2195 = vpop.f32.mrf.mxu0
    %v2196 = vadd.f32 %v1881, %v2195
    %v2197 = vpop.f32.mrf.mxu0
    %v2198 = vadd.f32 %v1881, %v2197
    %2199 = vmatmul.bf16.gmra.mxu0 %v1849
    %v2200 = vpop.f32.mrf.mxu0
    %v2201 = vadd.f32 %v1881, %v2200
    %v2202 = vpop.f32.mrf.mxu0
    %v2203 = vadd.f32 %v1881, %v2202
    %2204 = vmatmul.bf16.gmra.mxu0 %v1850
    %v2205 = vpop.f32.mrf.mxu0
    %v2206 = vadd.f32 %v1881, %v2205
    %v2207 = vpop.f32.mrf.mxu0
    %v2208 = vadd.f32 %v1881, %v2207
    %2209 = vmatmul.bf16.gmra.mxu0 %v1851
    %v2210 = vpop.f32.mrf.mxu0
    %v2211 = vadd.f32 %v1881, %v2210
    %v2212 = vpop.f32.mrf.mxu0
    %v2213 = vadd.f32 %v1881, %v2212
    %2214 = vmatmul.bf16.gmra.mxu0 %v1852
    %v2215 = vpop.f32.mrf.mxu0
    %v2216 = vadd.f32 %v1881, %v2215
    %v2217 = vpop.f32.mrf.mxu0
    %v2218 = vadd.f32 %v1881, %v2217
    %2219 = vmatmul.bf16.gmra.mxu0 %v1853
    %v2220 = vpop.f32.mrf.mxu0
    %v2221 = vadd.f32 %v1881, %v2220
    %v2222 = vpop.f32.mrf.mxu0
    %v2223 = vadd.f32 %v1881, %v2222
    %2224 = vmatmul.bf16.gmra.mxu0 %v1854
    %v2225 = vpop.f32.mrf.mxu0
    %v2226 = vadd.f32 %v1881, %v2225
    %v2227 = vpop.f32.mrf.mxu0
    %v2228 = vadd.f32 %v1881, %v2227
    %2229 = vmatmul.bf16.gmra.mxu0 %v1855
    %v2230 = vpop.f32.mrf.mxu0
    %v2231 = vadd.f32 %v1881, %v2230
    %v2232 = vpop.f32.mrf.mxu0
    %v2233 = vadd.f32 %v1881, %v2232
    %2234 = vmatmul.bf16.gmra.mxu0 %v1856
    %v2235 = vpop.f32.mrf.mxu0
    %v2236 = vadd.f32 %v1881, %v2235
    %v2237 = vpop.f32.mrf.mxu0
    %v2238 = vadd.f32 %v1881, %v2237
    %2239 = vmatmul.bf16.gmra.mxu0 %v1857
    %v2240 = vpop.f32.mrf.mxu0
    %v2241 = vadd.f32 %v1881, %v2240
    %v2242 = vpop.f32.mrf.mxu0
    %v2243 = vadd.f32 %v1881, %v2242
    %2244 = vmatmul.bf16.gmra.mxu0 %v1858
    %v2245 = vpop.f32.mrf.mxu0
    %v2246 = vadd.f32 %v1881, %v2245
    %v2247 = vpop.f32.mrf.mxu0
    %v2248 = vadd.f32 %v1881, %v2247
    %2249 = vmatmul.bf16.gmra.mxu0 %v1859
    %v2250 = vpop.f32.mrf.mxu0
    %v2251 = vadd.f32 %v1881, %v2250
    %v2252 = vpop.f32.mrf.mxu0
    %v2253 = vadd.f32 %v1881, %v2252
    %2254 = vmatmul.bf16.gmra.mxu0 %v1860
    %v2255 = vpop.f32.mrf.mxu0
    %v2256 = vadd.f32 %v1881, %v2255
    %v2257 = vpop.f32.mrf.mxu0
    %v2258 = vadd.f32 %v1881, %v2257
    %2259 = vdwg.mxu0
    %v2260 = vmax.f32 %v1941, 0.0
    %v2261 = vmax.f32 %v1943, 0.0
    %v2262 = vmax.f32 %v1946, 0.0
    %v2263 = vmax.f32 %v1948, 0.0
    %v2264 = vmax.f32 %v1951, 0.0
    %v2265 = vmax.f32 %v1953, 0.0
    %v2266 = vmax.f32 %v1956, 0.0
    %v2267 = vmax.f32 %v1958, 0.0
    %v2268 = vmax.f32 %v1961, 0.0
    %v2269 = vmax.f32 %v1963, 0.0
    %v2270 = vmax.f32 %v1966, 0.0
    %v2271 = vmax.f32 %v1968, 0.0
    %v2272 = vmax.f32 %v1971, 0.0
    %v2273 = vmax.f32 %v1973, 0.0
    %v2274 = vmax.f32 %v1976, 0.0
    %v2275 = vmax.f32 %v1978, 0.0
    %v2276 = vmax.f32 %v1981, 0.0
    %v2277 = vmax.f32 %v1983, 0.0
    %v2278 = vmax.f32 %v1986, 0.0
    %v2279 = vmax.f32 %v1988, 0.0
    %v2280 = vmax.f32 %v1991, 0.0
    %v2281 = vmax.f32 %v1993, 0.0
    %v2282 = vmax.f32 %v1996, 0.0
    %v2283 = vmax.f32 %v1998, 0.0
    %v2284 = vmax.f32 %v2001, 0.0
    %v2285 = vmax.f32 %v2003, 0.0
    %v2286 = vmax.f32 %v2006, 0.0
    %v2287 = vmax.f32 %v2008, 0.0
    %v2288 = vmax.f32 %v2011, 0.0
    %v2289 = vmax.f32 %v2013, 0.0
    %v2290 = vmax.f32 %v2016, 0.0
    %v2291 = vmax.f32 %v2018, 0.0
    %v2292 = vmax.f32 %v2021, 0.0
    %v2293 = vmax.f32 %v2023, 0.0
    %v2294 = vmax.f32 %v2026, 0.0
    %v2295 = vmax.f32 %v2028, 0.0
    %v2296 = vmax.f32 %v2031, 0.0
    %v2297 = vmax.f32 %v2033, 0.0
    %v2298 = vmax.f32 %v2036, 0.0
    %v2299 = vmax.f32 %v2038, 0.0
    %v2300 = vmax.f32 %v2041, 0.0
    %v2301 = vmax.f32 %v2043, 0.0
    %v2302 = vmax.f32 %v2046, 0.0
    %v2303 = vmax.f32 %v2048, 0.0
    %v2304 = vmax.f32 %v2051, 0.0
    %v2305 = vmax.f32 %v2053, 0.0
    %v2306 = vmax.f32 %v2056, 0.0
    %v2307 = vmax.f32 %v2058, 0.0
    %v2308 = vmax.f32 %v2061, 0.0
    %v2309 = vmax.f32 %v2063, 0.0
    %v2310 = vmax.f32 %v2066, 0.0
    %v2311 = vmax.f32 %v2068, 0.0
    %v2312 = vmax.f32 %v2071, 0.0
    %v2313 = vmax.f32 %v2073, 0.0
    %v2314 = vmax.f32 %v2076, 0.0
    %v2315 = vmax.f32 %v2078, 0.0
    %v2316 = vmax.f32 %v2081, 0.0
    %v2317 = vmax.f32 %v2083, 0.0
    %v2318 = vmax.f32 %v2086, 0.0
    %v2319 = vmax.f32 %v2088, 0.0
    %v2320 = vmax.f32 %v2091, 0.0
    %v2321 = vmax.f32 %v2093, 0.0
    %v2322 = vmax.f32 %v2096, 0.0
    %v2323 = vmax.f32 %v2098, 0.0
    %v2324 = vmax.f32 %v2101, 0.0
    %v2325 = vmax.f32 %v2103, 0.0
    %v2326 = vmax.f32 %v2106, 0.0
    %v2327 = vmax.f32 %v2108, 0.0
    %v2328 = vmax.f32 %v2111, 0.0
    %v2329 = vmax.f32 %v2113, 0.0
    %v2330 = vmax.f32 %v2116, 0.0
    %v2331 = vmax.f32 %v2118, 0.0
    %v2332 = vmax.f32 %v2121, 0.0
    %v2333 = vmax.f32 %v2123, 0.0
    %v2334 = vmax.f32 %v2126, 0.0
    %v2335 = vmax.f32 %v2128, 0.0
    %v2336 = vmax.f32 %v2131, 0.0
    %v2337 = vmax.f32 %v2133, 0.0
    %v2338 = vmax.f32 %v2136, 0.0
    %v2339 = vmax.f32 %v2138, 0.0
    %v2340 = vmax.f32 %v2141, 0.0
    %v2341 = vmax.f32 %v2143, 0.0
    %v2342 = vmax.f32 %v2146, 0.0
    %v2343 = vmax.f32 %v2148, 0.0
    %v2344 = vmax.f32 %v2151, 0.0
    %v2345 = vmax.f32 %v2153, 0.0
    %v2346 = vmax.f32 %v2156, 0.0
    %v2347 = vmax.f32 %v2158, 0.0
    %v2348 = vmax.f32 %v2161, 0.0
    %v2349 = vmax.f32 %v2163, 0.0
    %v2350 = vmax.f32 %v2166, 0.0
    %v2351 = vmax.f32 %v2168, 0.0
    %v2352 = vmax.f32 %v2171, 0.0
    %v2353 = vmax.f32 %v2173, 0.0
    %v2354 = vmax.f32 %v2176, 0.0
    %v2355 = vmax.f32 %v2178, 0.0
    %v2356 = vmax.f32 %v2181, 0.0
    %v2357 = vmax.f32 %v2183, 0.0
    %v2358 = vmax.f32 %v2186, 0.0
    %v2359 = vmax.f32 %v2188, 0.0
    %v2360 = vmax.f32 %v2191, 0.0
    %v2361 = vmax.f32 %v2193, 0.0
    %v2362 = vmax.f32 %v2196, 0.0
    %v2363 = vmax.f32 %v2198, 0.0
    %v2364 = vmax.f32 %v2201, 0.0
    %v2365 = vmax.f32 %v2203, 0.0
    %v2366 = vmax.f32 %v2206, 0.0
    %v2367 = vmax.f32 %v2208, 0.0
    %v2368 = vmax.f32 %v2211, 0.0
    %v2369 = vmax.f32 %v2213, 0.0
    %v2370 = vmax.f32 %v2216, 0.0
    %v2371 = vmax.f32 %v2218, 0.0
    %v2372 = vmax.f32 %v2221, 0.0
    %v2373 = vmax.f32 %v2223, 0.0
    %v2374 = vmax.f32 %v2226, 0.0
    %v2375 = vmax.f32 %v2228, 0.0
    %v2376 = vmax.f32 %v2231, 0.0
    %v2377 = vmax.f32 %v2233, 0.0
    %v2378 = vmax.f32 %v2236, 0.0
    %v2379 = vmax.f32 %v2238, 0.0
    %v2380 = vmax.f32 %v2241, 0.0
    %v2381 = vmax.f32 %v2243, 0.0
    %v2382 = vmax.f32 %v2246, 0.0
    %v2383 = vmax.f32 %v2248, 0.0
    %v2384 = vmax.f32 %v2251, 0.0
    %v2385 = vmax.f32 %v2253, 0.0
    %v2386 = vmax.f32 %v2256, 0.0
    %v2387 = vmax.f32 %v2258, 0.0
    %v2388 = vpack.c.bf16 %v2261, %v2260
    %v2389 = vpack.c.bf16 %v2263, %v2262
    %v2390 = vpack.c.bf16 %v2265, %v2264
    %v2391 = vpack.c.bf16 %v2267, %v2266
    %v2392 = vpack.c.bf16 %v2269, %v2268
    %v2393 = vpack.c.bf16 %v2271, %v2270
    %v2394 = vpack.c.bf16 %v2273, %v2272
    %v2395 = vpack.c.bf16 %v2275, %v2274
    %v2396 = vpack.c.bf16 %v2277, %v2276
    %v2397 = vpack.c.bf16 %v2279, %v2278
    %v2398 = vpack.c.bf16 %v2281, %v2280
    %v2399 = vpack.c.bf16 %v2283, %v2282
    %v2400 = vpack.c.bf16 %v2285, %v2284
    %v2401 = vpack.c.bf16 %v2287, %v2286
    %v2402 = vpack.c.bf16 %v2289, %v2288
    %v2403 = vpack.c.bf16 %v2291, %v2290
    %v2404 = vpack.c.bf16 %v2293, %v2292
    %v2405 = vpack.c.bf16 %v2295, %v2294
    %v2406 = vpack.c.bf16 %v2297, %v2296
    %v2407 = vpack.c.bf16 %v2299, %v2298
    %v2408 = vpack.c.bf16 %v2301, %v2300
    %v2409 = vpack.c.bf16 %v2303, %v2302
    %v2410 = vpack.c.bf16 %v2305, %v2304
    %v2411 = vpack.c.bf16 %v2307, %v2306
    %v2412 = vpack.c.bf16 %v2309, %v2308
    %v2413 = vpack.c.bf16 %v2311, %v2310
    %v2414 = vpack.c.bf16 %v2313, %v2312
    %v2415 = vpack.c.bf16 %v2315, %v2314
    %v2416 = vpack.c.bf16 %v2317, %v2316
    %v2417 = vpack.c.bf16 %v2319, %v2318
    %v2418 = vpack.c.bf16 %v2321, %v2320
    %v2419 = vpack.c.bf16 %v2323, %v2322
    %v2420 = vpack.c.bf16 %v2325, %v2324
    %v2421 = vpack.c.bf16 %v2327, %v2326
    %v2422 = vpack.c.bf16 %v2329, %v2328
    %v2423 = vpack.c.bf16 %v2331, %v2330
    %v2424 = vpack.c.bf16 %v2333, %v2332
    %v2425 = vpack.c.bf16 %v2335, %v2334
    %v2426 = vpack.c.bf16 %v2337, %v2336
    %v2427 = vpack.c.bf16 %v2339, %v2338
    %v2428 = vpack.c.bf16 %v2341, %v2340
    %v2429 = vpack.c.bf16 %v2343, %v2342
    %v2430 = vpack.c.bf16 %v2345, %v2344
    %v2431 = vpack.c.bf16 %v2347, %v2346
    %v2432 = vpack.c.bf16 %v2349, %v2348
    %v2433 = vpack.c.bf16 %v2351, %v2350
    %v2434 = vpack.c.bf16 %v2353, %v2352
    %v2435 = vpack.c.bf16 %v2355, %v2354
    %v2436 = vpack.c.bf16 %v2357, %v2356
    %v2437 = vpack.c.bf16 %v2359, %v2358
    %v2438 = vpack.c.bf16 %v2361, %v2360
    %v2439 = vpack.c.bf16 %v2363, %v2362
    %v2440 = vpack.c.bf16 %v2365, %v2364
    %v2441 = vpack.c.bf16 %v2367, %v2366
    %v2442 = vpack.c.bf16 %v2369, %v2368
    %v2443 = vpack.c.bf16 %v2371, %v2370
    %v2444 = vpack.c.bf16 %v2373, %v2372
    %v2445 = vpack.c.bf16 %v2375, %v2374
    %v2446 = vpack.c.bf16 %v2377, %v2376
    %v2447 = vpack.c.bf16 %v2379, %v2378
    %v2448 = vpack.c.bf16 %v2381, %v2380
    %v2449 = vpack.c.bf16 %v2383, %v2382
    %v2450 = vpack.c.bf16 %v2385, %v2384
    %v2451 = vpack.c.bf16 %v2387, %v2386
    %v2452 = vld [vmem:[#allocation2] sm:$0xff]
    %v2453 = vld [vmem:[#allocation10] sm:$0xff]
    %v2454 = vperm.slane %v2453, 0
    %v2455 = vperm.slane %v2453, 1
    %v2456 = vperm.slane %v2453, 2
    %v2457 = vperm.slane %v2453, 3
    %v2458 = vperm.slane %v2453, 4
    %v2459 = vperm.slane %v2453, 5
    %v2460 = vperm.slane %v2453, 6
    %v2461 = vperm.slane %v2453, 7
    %vm2462 = vcmp.eq.s32.totalorder %v237, %v2454
    %vm2463 = vcmp.eq.s32.totalorder %v237, %v2455
    %vm2464 = vcmp.eq.s32.totalorder %v237, %v2456
    %vm2465 = vcmp.eq.s32.totalorder %v237, %v2457
    %vm2466 = vcmp.eq.s32.totalorder %v237, %v2458
    %vm2467 = vcmp.eq.s32.totalorder %v237, %v2459
    %vm2468 = vcmp.eq.s32.totalorder %v237, %v2460
    %vm2469 = vcmp.eq.s32.totalorder %v237, %v2461
    %v2470 = vsel %vm2462, 1, 0
    %v2471 = vsel %vm2463, 1, 0
    %v2472 = vsel %vm2464, 1, 0
    %v2473 = vsel %vm2465, 1, 0
    %v2474 = vsel %vm2466, 1, 0
    %v2475 = vsel %vm2467, 1, 0
    %v2476 = vsel %vm2468, 1, 0
    %v2477 = vsel %vm2469, 1, 0
    %v2478 = vcvt.s32.f32 %v2470
    %v2479 = vcvt.s32.f32 %v2471
    %v2480 = vcvt.s32.f32 %v2472
    %v2481 = vcvt.s32.f32 %v2473
    %v2482 = vcvt.s32.f32 %v2474
    %v2483 = vcvt.s32.f32 %v2475
    %v2484 = vcvt.s32.f32 %v2476
    %v2485 = vcvt.s32.f32 %v2477
    %v2486 = vpack.c.bf16 %v2478, %v2478
    %v2487 = vpack.c.bf16 %v2479, %v2479
    %v2488 = vpack.c.bf16 %v2480, %v2480
    %v2489 = vpack.c.bf16 %v2481, %v2481
    %v2490 = vpack.c.bf16 %v2482, %v2482
    %v2491 = vpack.c.bf16 %v2483, %v2483
    %v2492 = vpack.c.bf16 %v2484, %v2484
    %v2493 = vpack.c.bf16 %v2485, %v2485
    %2494 = vmatpush.bf16.msra.mxu0 %v2395
    %2495 = vmatpush.bf16.msra.mxu0 %v2394
    %2496 = vmatpush.bf16.msra.mxu0 %v2393
    %2497 = vmatpush.bf16.msra.mxu0 %v2392
    %2498 = vmatpush.bf16.msra.mxu0 %v2391
    %2499 = vmatpush.bf16.msra.mxu0 %v2390
    %2500 = vmatpush.bf16.msra.mxu0 %v2389
    %2501 = vmatpush.bf16.msra.mxu0 %v2388
    %2502 = vmatmul.bf16.gmra.mxu0 %v2486
    %v2503 = vpop.f32.mrf.mxu0
    %v2504 = vadd.f32 0.0, %v2503
    %v2505 = vpop.f32.mrf.mxu0
    %2506 = vdwg.mxu0
    %2507 = vmatpush.bf16.msra.mxu0 %v2403
    %2508 = vmatpush.bf16.msra.mxu0 %v2402
    %2509 = vmatpush.bf16.msra.mxu0 %v2401
    %2510 = vmatpush.bf16.msra.mxu0 %v2400
    %2511 = vmatpush.bf16.msra.mxu0 %v2399
    %2512 = vmatpush.bf16.msra.mxu0 %v2398
    %2513 = vmatpush.bf16.msra.mxu0 %v2397
    %2514 = vmatpush.bf16.msra.mxu0 %v2396
    %2515 = vmatmul.bf16.gmra.mxu0 %v2487
    %v2516 = vpop.f32.mrf.mxu0
    %v2517 = vadd.f32 %v2504, %v2516
    %v2518 = vpop.f32.mrf.mxu0
    %2519 = vdwg.mxu0
    %2520 = vmatpush.bf16.msra.mxu0 %v2411
    %2521 = vmatpush.bf16.msra.mxu0 %v2410
    %2522 = vmatpush.bf16.msra.mxu0 %v2409
    %2523 = vmatpush.bf16.msra.mxu0 %v2408
    %2524 = vmatpush.bf16.msra.mxu0 %v2407
    %2525 = vmatpush.bf16.msra.mxu0 %v2406
    %2526 = vmatpush.bf16.msra.mxu0 %v2405
    %2527 = vmatpush.bf16.msra.mxu0 %v2404
    %2528 = vmatmul.bf16.gmra.mxu0 %v2488
    %v2529 = vpop.f32.mrf.mxu0
    %v2530 = vadd.f32 %v2517, %v2529
    %v2531 = vpop.f32.mrf.mxu0
    %2532 = vdwg.mxu0
    %2533 = vmatpush.bf16.msra.mxu0 %v2419
    %2534 = vmatpush.bf16.msra.mxu0 %v2418
    %2535 = vmatpush.bf16.msra.mxu0 %v2417
    %2536 = vmatpush.bf16.msra.mxu0 %v2416
    %2537 = vmatpush.bf16.msra.mxu0 %v2415
    %2538 = vmatpush.bf16.msra.mxu0 %v2414
    %2539 = vmatpush.bf16.msra.mxu0 %v2413
    %2540 = vmatpush.bf16.msra.mxu0 %v2412
    %2541 = vmatmul.bf16.gmra.mxu0 %v2489
    %v2542 = vpop.f32.mrf.mxu0
    %v2543 = vadd.f32 %v2530, %v2542
    %v2544 = vpop.f32.mrf.mxu0
    %2545 = vdwg.mxu0
    %2546 = vmatpush.bf16.msra.mxu0 %v2427
    %2547 = vmatpush.bf16.msra.mxu0 %v2426
    %2548 = vmatpush.bf16.msra.mxu0 %v2425
    %2549 = vmatpush.bf16.msra.mxu0 %v2424
    %2550 = vmatpush.bf16.msra.mxu0 %v2423
    %2551 = vmatpush.bf16.msra.mxu0 %v2422
    %2552 = vmatpush.bf16.msra.mxu0 %v2421
    %2553 = vmatpush.bf16.msra.mxu0 %v2420
    %2554 = vmatmul.bf16.gmra.mxu0 %v2490
    %v2555 = vpop.f32.mrf.mxu0
    %v2556 = vadd.f32 %v2543, %v2555
    %v2557 = vpop.f32.mrf.mxu0
    %2558 = vdwg.mxu0
    %2559 = vmatpush.bf16.msra.mxu0 %v2435
    %2560 = vmatpush.bf16.msra.mxu0 %v2434
    %2561 = vmatpush.bf16.msra.mxu0 %v2433
    %2562 = vmatpush.bf16.msra.mxu0 %v2432
    %2563 = vmatpush.bf16.msra.mxu0 %v2431
    %2564 = vmatpush.bf16.msra.mxu0 %v2430
    %2565 = vmatpush.bf16.msra.mxu0 %v2429
    %2566 = vmatpush.bf16.msra.mxu0 %v2428
    %2567 = vmatmul.bf16.gmra.mxu0 %v2491
    %v2568 = vpop.f32.mrf.mxu0
    %v2569 = vadd.f32 %v2556, %v2568
    %v2570 = vpop.f32.mrf.mxu0
    %2571 = vdwg.mxu0
    %2572 = vmatpush.bf16.msra.mxu0 %v2443
    %2573 = vmatpush.bf16.msra.mxu0 %v2442
    %2574 = vmatpush.bf16.msra.mxu0 %v2441
    %2575 = vmatpush.bf16.msra.mxu0 %v2440
    %2576 = vmatpush.bf16.msra.mxu0 %v2439
    %2577 = vmatpush.bf16.msra.mxu0 %v2438
    %2578 = vmatpush.bf16.msra.mxu0 %v2437
    %2579 = vmatpush.bf16.msra.mxu0 %v2436
    %2580 = vmatmul.bf16.gmra.mxu0 %v2492
    %v2581 = vpop.f32.mrf.mxu0
    %v2582 = vadd.f32 %v2569, %v2581
    %v2583 = vpop.f32.mrf.mxu0
    %2584 = vdwg.mxu0
    %2585 = vmatpush.bf16.msra.mxu0 %v2451
    %2586 = vmatpush.bf16.msra.mxu0 %v2450
    %2587 = vmatpush.bf16.msra.mxu0 %v2449
    %2588 = vmatpush.bf16.msra.mxu0 %v2448
    %2589 = vmatpush.bf16.msra.mxu0 %v2447
    %2590 = vmatpush.bf16.msra.mxu0 %v2446
    %2591 = vmatpush.bf16.msra.mxu0 %v2445
    %2592 = vmatpush.bf16.msra.mxu0 %v2444
    %2593 = vmatmul.bf16.gmra.mxu0 %v2493
    %v2594 = vpop.f32.mrf.mxu0
    %v2595 = vadd.f32 %v2582, %v2594
    %v2596 = vpop.f32.mrf.mxu0
    %2597 = vdwg.mxu0
    %v2598 = vadd.f32 %v2452, %v2595
    %2599 = vst [vmem:[#allocation2] sm:$0xff] %v2598
    %v2600 = vld [vmem:[#allocation3] sm:$0xff]
    %v2601 = vld [vmem:[#allocation11] sm:$0xff]
    %v2602 = vperm.slane %v2601, 0
    %v2603 = vperm.slane %v2601, 1
    %v2604 = vperm.slane %v2601, 2
    %v2605 = vperm.slane %v2601, 3
    %v2606 = vperm.slane %v2601, 4
    %v2607 = vperm.slane %v2601, 5
    %v2608 = vperm.slane %v2601, 6
    %v2609 = vperm.slane %v2601, 7
    %vm2610 = vcmp.eq.s32.totalorder %v237, %v2602
    %vm2611 = vcmp.eq.s32.totalorder %v237, %v2603
    %vm2612 = vcmp.eq.s32.totalorder %v237, %v2604
    %vm2613 = vcmp.eq.s32.totalorder %v237, %v2605
    %vm2614 = vcmp.eq.s32.totalorder %v237, %v2606
    %vm2615 = vcmp.eq.s32.totalorder %v237, %v2607
    %vm2616 = vcmp.eq.s32.totalorder %v237, %v2608
    %vm2617 = vcmp.eq.s32.totalorder %v237, %v2609
    %v2618 = vsel %vm2610, 1, 0
    %v2619 = vsel %vm2611, 1, 0
    %v2620 = vsel %vm2612, 1, 0
    %v2621 = vsel %vm2613, 1, 0
    %v2622 = vsel %vm2614, 1, 0
    %v2623 = vsel %vm2615, 1, 0
    %v2624 = vsel %vm2616, 1, 0
    %v2625 = vsel %vm2617, 1, 0
    %v2626 = vcvt.s32.f32 %v2618
    %v2627 = vcvt.s32.f32 %v2619
    %v2628 = vcvt.s32.f32 %v2620
    %v2629 = vcvt.s32.f32 %v2621
    %v2630 = vcvt.s32.f32 %v2622
    %v2631 = vcvt.s32.f32 %v2623
    %v2632 = vcvt.s32.f32 %v2624
    %v2633 = vcvt.s32.f32 %v2625
    %v2634 = vpack.c.bf16 %v2626, %v2626
    %v2635 = vpack.c.bf16 %v2627, %v2627
    %v2636 = vpack.c.bf16 %v2628, %v2628
    %v2637 = vpack.c.bf16 %v2629, %v2629
    %v2638 = vpack.c.bf16 %v2630, %v2630
    %v2639 = vpack.c.bf16 %v2631, %v2631
    %v2640 = vpack.c.bf16 %v2632, %v2632
    %v2641 = vpack.c.bf16 %v2633, %v2633
    %2642 = vmatpush.bf16.msra.mxu0 %v2395
    %2643 = vmatpush.bf16.msra.mxu0 %v2394
    %2644 = vmatpush.bf16.msra.mxu0 %v2393
    %2645 = vmatpush.bf16.msra.mxu0 %v2392
    %2646 = vmatpush.bf16.msra.mxu0 %v2391
    %2647 = vmatpush.bf16.msra.mxu0 %v2390
    %2648 = vmatpush.bf16.msra.mxu0 %v2389
    %2649 = vmatpush.bf16.msra.mxu0 %v2388
    %2650 = vmatmul.bf16.gmra.mxu0 %v2634
    %v2651 = vpop.f32.mrf.mxu0
    %v2652 = vadd.f32 0.0, %v2651
    %v2653 = vpop.f32.mrf.mxu0
    %2654 = vdwg.mxu0
    %2655 = vmatpush.bf16.msra.mxu0 %v2403
    %2656 = vmatpush.bf16.msra.mxu0 %v2402
    %2657 = vmatpush.bf16.msra.mxu0 %v2401
    %2658 = vmatpush.bf16.msra.mxu0 %v2400
    %2659 = vmatpush.bf16.msra.mxu0 %v2399
    %2660 = vmatpush.bf16.msra.mxu0 %v2398
    %2661 = vmatpush.bf16.msra.mxu0 %v2397
    %2662 = vmatpush.bf16.msra.mxu0 %v2396
    %2663 = vmatmul.bf16.gmra.mxu0 %v2635
    %v2664 = vpop.f32.mrf.mxu0
    %v2665 = vadd.f32 %v2652, %v2664
    %v2666 = vpop.f32.mrf.mxu0
    %2667 = vdwg.mxu0
    %2668 = vmatpush.bf16.msra.mxu0 %v2411
    %2669 = vmatpush.bf16.msra.mxu0 %v2410
    %2670 = vmatpush.bf16.msra.mxu0 %v2409
    %2671 = vmatpush.bf16.msra.mxu0 %v2408
    %2672 = vmatpush.bf16.msra.mxu0 %v2407
    %2673 = vmatpush.bf16.msra.mxu0 %v2406
    %2674 = vmatpush.bf16.msra.mxu0 %v2405
    %2675 = vmatpush.bf16.msra.mxu0 %v2404
    %2676 = vmatmul.bf16.gmra.mxu0 %v2636
    %v2677 = vpop.f32.mrf.mxu0
    %v2678 = vadd.f32 %v2665, %v2677
    %v2679 = vpop.f32.mrf.mxu0
    %2680 = vdwg.mxu0
    %2681 = vmatpush.bf16.msra.mxu0 %v2419
    %2682 = vmatpush.bf16.msra.mxu0 %v2418
    %2683 = vmatpush.bf16.msra.mxu0 %v2417
    %2684 = vmatpush.bf16.msra.mxu0 %v2416
    %2685 = vmatpush.bf16.msra.mxu0 %v2415
    %2686 = vmatpush.bf16.msra.mxu0 %v2414
    %2687 = vmatpush.bf16.msra.mxu0 %v2413
    %2688 = vmatpush.bf16.msra.mxu0 %v2412
    %2689 = vmatmul.bf16.gmra.mxu0 %v2637
    %v2690 = vpop.f32.mrf.mxu0
    %v2691 = vadd.f32 %v2678, %v2690
    %v2692 = vpop.f32.mrf.mxu0
    %2693 = vdwg.mxu0
    %2694 = vmatpush.bf16.msra.mxu0 %v2427
    %2695 = vmatpush.bf16.msra.mxu0 %v2426
    %2696 = vmatpush.bf16.msra.mxu0 %v2425
    %2697 = vmatpush.bf16.msra.mxu0 %v2424
    %2698 = vmatpush.bf16.msra.mxu0 %v2423
    %2699 = vmatpush.bf16.msra.mxu0 %v2422
    %2700 = vmatpush.bf16.msra.mxu0 %v2421
    %2701 = vmatpush.bf16.msra.mxu0 %v2420
    %2702 = vmatmul.bf16.gmra.mxu0 %v2638
    %v2703 = vpop.f32.mrf.mxu0
    %v2704 = vadd.f32 %v2691, %v2703
    %v2705 = vpop.f32.mrf.mxu0
    %2706 = vdwg.mxu0
    %2707 = vmatpush.bf16.msra.mxu0 %v2435
    %2708 = vmatpush.bf16.msra.mxu0 %v2434
    %2709 = vmatpush.bf16.msra.mxu0 %v2433
    %2710 = vmatpush.bf16.msra.mxu0 %v2432
    %2711 = vmatpush.bf16.msra.mxu0 %v2431
    %2712 = vmatpush.bf16.msra.mxu0 %v2430
    %2713 = vmatpush.bf16.msra.mxu0 %v2429
    %2714 = vmatpush.bf16.msra.mxu0 %v2428
    %2715 = vmatmul.bf16.gmra.mxu0 %v2639
    %v2716 = vpop.f32.mrf.mxu0
    %v2717 = vadd.f32 %v2704, %v2716
    %v2718 = vpop.f32.mrf.mxu0
    %2719 = vdwg.mxu0
    %2720 = vmatpush.bf16.msra.mxu0 %v2443
    %2721 = vmatpush.bf16.msra.mxu0 %v2442
    %2722 = vmatpush.bf16.msra.mxu0 %v2441
    %2723 = vmatpush.bf16.msra.mxu0 %v2440
    %2724 = vmatpush.bf16.msra.mxu0 %v2439
    %2725 = vmatpush.bf16.msra.mxu0 %v2438
    %2726 = vmatpush.bf16.msra.mxu0 %v2437
    %2727 = vmatpush.bf16.msra.mxu0 %v2436
    %2728 = vmatmul.bf16.gmra.mxu0 %v2640
    %v2729 = vpop.f32.mrf.mxu0
    %v2730 = vadd.f32 %v2717, %v2729
    %v2731 = vpop.f32.mrf.mxu0
    %2732 = vdwg.mxu0
    %2733 = vmatpush.bf16.msra.mxu0 %v2451
    %2734 = vmatpush.bf16.msra.mxu0 %v2450
    %2735 = vmatpush.bf16.msra.mxu0 %v2449
    %2736 = vmatpush.bf16.msra.mxu0 %v2448
    %2737 = vmatpush.bf16.msra.mxu0 %v2447
    %2738 = vmatpush.bf16.msra.mxu0 %v2446
    %2739 = vmatpush.bf16.msra.mxu0 %v2445
    %2740 = vmatpush.bf16.msra.mxu0 %v2444
    %2741 = vmatmul.bf16.gmra.mxu0 %v2641
    %v2742 = vpop.f32.mrf.mxu0
    %v2743 = vadd.f32 %v2730, %v2742
    %v2744 = vpop.f32.mrf.mxu0
    %2745 = vdwg.mxu0
    %v2746 = vadd.f32 %v2600, %v2743
    %2747 = vst [vmem:[#allocation3] sm:$0xff] %v2746
    // Predicated region
    $region114: #{tpu_custom_call.1} parent=1 // pred_check
      %p2748 = pneg %p229
    $region115: #{tpu_custom_call.1} parent=1 // pred_check_branch
      %2750 = sbr.rel (%p2748) target = $region117
    $region116: #{tpu_custom_call.1} parent=1 // pred_region
      %v2751 = vld [vmem:[#allocation4] sm:$0xff]
      %v2752 = vpack.c.bf16 %v2751, %v2751
      %v2753 = vld [vmem:[#allocation19] sm:$0xf]
      %v2754 = vld [vmem:[#allocation19 + $0x4] sm:$0xf]
      %v2755 = vld [vmem:[#allocation19 + $0x8] sm:$0xf]
      %v2756 = vld [vmem:[#allocation19 + $0xc] sm:$0xf]
      %v2757 = vld [vmem:[#allocation19 + $0x10] sm:$0xf]
      %v2758 = vld [vmem:[#allocation19 + $0x14] sm:$0xf]
      %v2759 = vld [vmem:[#allocation19 + $0x18] sm:$0xf]
      %v2760 = vld [vmem:[#allocation19 + $0x1c] sm:$0xf]
      %v2761 = vld [vmem:[#allocation19 + $0x20] sm:$0xf]
      %v2762 = vld [vmem:[#allocation19 + $0x24] sm:$0xf]
      %v2763 = vld [vmem:[#allocation19 + $0x28] sm:$0xf]
      %v2764 = vld [vmem:[#allocation19 + $0x2c] sm:$0xf]
      %v2765 = vld [vmem:[#allocation19 + $0x30] sm:$0xf]
      %v2766 = vld [vmem:[#allocation19 + $0x34] sm:$0xf]
      %v2767 = vld [vmem:[#allocation19 + $0x38] sm:$0xf]
      %v2768 = vld [vmem:[#allocation19 + $0x3c] sm:$0xf]
      %v2769 = vld [vmem:[#allocation20] sm:$0x1]
      %v2771 = vperm.slane %v2769, 0
      %v2789 = vunpack.c.l.b16 %v2753
      %v2790 = vunpack.c.l.b16 %v2754
      %v2791 = vunpack.c.l.b16 %v2755
      %v2792 = vunpack.c.l.b16 %v2756
      %v2793 = vunpack.c.l.b16 %v2757
      %v2794 = vunpack.c.l.b16 %v2758
      %v2795 = vunpack.c.l.b16 %v2759
      %v2796 = vunpack.c.l.b16 %v2760
      %v2797 = vunpack.c.l.b16 %v2761
      %v2798 = vunpack.c.l.b16 %v2762
      %v2799 = vunpack.c.l.b16 %v2763
      %v2800 = vunpack.c.l.b16 %v2764
      %v2801 = vunpack.c.l.b16 %v2765
      %v2802 = vunpack.c.l.b16 %v2766
      %v2803 = vunpack.c.l.b16 %v2767
      %v2804 = vunpack.c.l.b16 %v2768
      %v2805 = vpack.c.b16 %v2790, %v2789
      %v2806 = vpack.c.b16 %v2792, %v2791
      %v2807 = vpack.c.b16 %v2794, %v2793
      %v2808 = vpack.c.b16 %v2796, %v2795
      %v2809 = vpack.c.b16 %v2798, %v2797
      %v2810 = vpack.c.b16 %v2800, %v2799
      %v2811 = vpack.c.b16 %v2802, %v2801
      %v2812 = vpack.c.b16 %v2804, %v2803
      %2821 = vmatpush.bf16.msra.mxu0 %v2812
      %2822 = vmatpush.bf16.msra.mxu0 %v2811
      %2823 = vmatpush.bf16.msra.mxu0 %v2810
      %2824 = vmatpush.bf16.msra.mxu0 %v2809
      %2825 = vmatpush.bf16.msra.mxu0 %v2808
      %2826 = vmatpush.bf16.msra.mxu0 %v2807
      %2827 = vmatpush.bf16.msra.mxu0 %v2806
      %2828 = vmatpush.bf16.msra.mxu0 %v2805
      %2829 = vmatmul.bf16.gmra.mxu0 %v2752
      %v2830 = vpop.f32.mrf.mxu0
      %v2831 = vadd.f32 %v2771, %v2830
      %v2832 = vpop.f32.mrf.mxu0
      %2833 = vdwg.mxu0
      %v2834 = vmax.f32 %v2831, 0.0
      %v2835 = vpack.c.bf16 %v2834, %v2834
      %s2836 = scalar_lea.vmem [#allocation19], 64
      %v2837 = vld [vmem:[%s2836] sm:$0xf]
      %v2838 = vld [vmem:[%s2836 + $0x4] sm:$0xf]
      %v2839 = vld [vmem:[%s2836 + $0x8] sm:$0xf]
      %v2840 = vld [vmem:[%s2836 + $0xc] sm:$0xf]
      %v2841 = vld [vmem:[%s2836 + $0x10] sm:$0xf]
      %v2842 = vld [vmem:[%s2836 + $0x14] sm:$0xf]
      %v2843 = vld [vmem:[%s2836 + $0x18] sm:$0xf]
      %v2844 = vld [vmem:[%s2836 + $0x1c] sm:$0xf]
      %v2845 = vld [vmem:[%s2836 + $0x20] sm:$0xf]
      %v2846 = vld [vmem:[%s2836 + $0x24] sm:$0xf]
      %v2847 = vld [vmem:[%s2836 + $0x28] sm:$0xf]
      %v2848 = vld [vmem:[%s2836 + $0x2c] sm:$0xf]
      %v2849 = vld [vmem:[%s2836 + $0x30] sm:$0xf]
      %v2850 = vld [vmem:[%s2836 + $0x34] sm:$0xf]
      %v2851 = vld [vmem:[%s2836 + $0x38] sm:$0xf]
      %v2852 = vld [vmem:[%s2836 + $0x3c] sm:$0xf]
      %s2853 = scalar_lea.vmem [#allocation20], 1
      %v2854 = vld [vmem:[%s2853] sm:$0x1]
      %v2856 = vperm.slane %v2854, 0
      %v2874 = vunpack.c.l.b16 %v2837
      %v2875 = vunpack.c.l.b16 %v2838
      %v2876 = vunpack.c.l.b16 %v2839
      %v2877 = vunpack.c.l.b16 %v2840
      %v2878 = vunpack.c.l.b16 %v2841
      %v2879 = vunpack.c.l.b16 %v2842
      %v2880 = vunpack.c.l.b16 %v2843
      %v2881 = vunpack.c.l.b16 %v2844
      %v2882 = vunpack.c.l.b16 %v2845
      %v2883 = vunpack.c.l.b16 %v2846
      %v2884 = vunpack.c.l.b16 %v2847
      %v2885 = vunpack.c.l.b16 %v2848
      %v2886 = vunpack.c.l.b16 %v2849
      %v2887 = vunpack.c.l.b16 %v2850
      %v2888 = vunpack.c.l.b16 %v2851
      %v2889 = vunpack.c.l.b16 %v2852
      %v2890 = vpack.c.b16 %v2875, %v2874
      %v2891 = vpack.c.b16 %v2877, %v2876
      %v2892 = vpack.c.b16 %v2879, %v2878
      %v2893 = vpack.c.b16 %v2881, %v2880
      %v2894 = vpack.c.b16 %v2883, %v2882
      %v2895 = vpack.c.b16 %v2885, %v2884
      %v2896 = vpack.c.b16 %v2887, %v2886
      %v2897 = vpack.c.b16 %v2889, %v2888
      %2906 = vmatpush.bf16.msra.mxu0 %v2897
      %2907 = vmatpush.bf16.msra.mxu0 %v2896
      %2908 = vmatpush.bf16.msra.mxu0 %v2895
      %2909 = vmatpush.bf16.msra.mxu0 %v2894
      %2910 = vmatpush.bf16.msra.mxu0 %v2893
      %2911 = vmatpush.bf16.msra.mxu0 %v2892
      %2912 = vmatpush.bf16.msra.mxu0 %v2891
      %2913 = vmatpush.bf16.msra.mxu0 %v2890
      %2914 = vmatmul.bf16.gmra.mxu0 %v2835
      %v2915 = vpop.f32.mrf.mxu0
      %v2916 = vadd.f32 %v2856, %v2915
      %v2917 = vpop.f32.mrf.mxu0
      %2918 = vdwg.mxu0
      %v2919 = vmax.f32 %v2916, 0.0
      %v2920 = vld [vmem:[%s10] sm:$0xf]
      %v2921 = vpack.c.bf16 %v2919, %v2919
      %vm2922 = vcmask 64512
      %v2924 = vsel %vm2922, %v2920, 0
      %vm2926 = vcmask 1043456
      %v2928 = vsel %vm2926, %v2921, 0
      %2930 = vmatpush.bf16.msra.mxu0 0
      %2931 = vmatpush.bf16.msra.mxu0 0
      %2932 = vmatpush.bf16.msra.mxu0 0
      %2933 = vmatpush.bf16.msra.mxu0 0
      %2934 = vmatpush.bf16.msra.mxu0 0
      %2935 = vmatpush.bf16.msra.mxu0 0
      %2936 = vmatpush.bf16.msra.mxu0 0
      %2937 = vmatpush.bf16.msra.mxu0 %v2928
      %2938 = vmatmul.bf16.gmra.mxu0 %v2924
      %v2939 = vpop.f32.mrf.mxu0
      %v2940 = vadd.f32 0.0, %v2939
      %v2941 = vpop.f32.mrf.mxu0
      %2942 = vdwg.mxu0
      %v2943 = vld [vmem:[#allocation2] sm:$0xff]
      %v2944 = vpack.c.bf16 %v2943, %v2943
      %v2945 = vld [vmem:[#allocation22] sm:$0xff]
      %v2946 = vld [vmem:[#allocation22 + $0x8] sm:$0xf]
      %v2947 = vld [vmem:[#allocation22 + $0xc] sm:$0xff]
      %v2948 = vld [vmem:[#allocation22 + $0x14] sm:$0xf]
      %v2949 = vld [vmem:[#allocation22 + $0x18] sm:$0xff]
      %v2950 = vld [vmem:[#allocation22 + $0x20] sm:$0xf]
      %v2951 = vld [vmem:[#allocation22 + $0x24] sm:$0xff]
      %v2952 = vld [vmem:[#allocation22 + $0x2c] sm:$0xf]
      %v2953 = vld [vmem:[#allocation22 + $0x30] sm:$0xff]
      %v2954 = vld [vmem:[#allocation22 + $0x38] sm:$0xf]
      %v2955 = vld [vmem:[#allocation22 + $0x3c] sm:$0xff]
      %v2956 = vld [vmem:[#allocation22 + $0x44] sm:$0xf]
      %v2957 = vld [vmem:[#allocation22 + $0x48] sm:$0xff]
      %v2958 = vld [vmem:[#allocation22 + $0x50] sm:$0xf]
      %v2959 = vld [vmem:[#allocation22 + $0x54] sm:$0xff]
      %v2960 = vld [vmem:[#allocation22 + $0x5c] sm:$0xf]
      %v2961 = vld [vmem:[#allocation22 + $0x60] sm:$0xff]
      %v2962 = vld [vmem:[#allocation22 + $0x68] sm:$0xf]
      %v2963 = vld [vmem:[#allocation22 + $0x6c] sm:$0xff]
      %v2964 = vld [vmem:[#allocation22 + $0x74] sm:$0xf]
      %v2965 = vld [vmem:[#allocation22 + $0x78] sm:$0xff]
      %v2966 = vld [vmem:[#allocation22 + $0x80] sm:$0xf]
      %v2967 = vld [vmem:[#allocation22 + $0x84] sm:$0xff]
      %v2968 = vld [vmem:[#allocation22 + $0x8c] sm:$0xf]
      %v2969 = vld [vmem:[#allocation22 + $0x90] sm:$0xff]
      %v2970 = vld [vmem:[#allocation22 + $0x98] sm:$0xf]
      %v2971 = vld [vmem:[#allocation22 + $0x9c] sm:$0xff]
      %v2972 = vld [vmem:[#allocation22 + $0xa4] sm:$0xf]
      %v2973 = vld [vmem:[#allocation22 + $0xa8] sm:$0xff]
      %v2974 = vld [vmem:[#allocation22 + $0xb0] sm:$0xf]
      %v2975 = vld [vmem:[#allocation22 + $0xb4] sm:$0xff]
      %v2976 = vld [vmem:[#allocation22 + $0xbc] sm:$0xf]
      %v2977 = vld [vmem:[#allocation3] sm:$0xff]
      %v2978 = vpack.c.bf16 %v2977, %v2977
      %s2979 = scalar_lea.vmem [#allocation22], 192
      %v2980 = vld [vmem:[%s2979] sm:$0xff]
      %v2981 = vld [vmem:[%s2979 + $0x8] sm:$0xf]
      %v2982 = vld [vmem:[%s2979 + $0xc] sm:$0xff]
      %v2983 = vld [vmem:[%s2979 + $0x14] sm:$0xf]
      %v2984 = vld [vmem:[%s2979 + $0x18] sm:$0xff]
      %v2985 = vld [vmem:[%s2979 + $0x20] sm:$0xf]
      %v2986 = vld [vmem:[%s2979 + $0x24] sm:$0xff]
      %v2987 = vld [vmem:[%s2979 + $0x2c] sm:$0xf]
      %v2988 = vld [vmem:[%s2979 + $0x30] sm:$0xff]
      %v2989 = vld [vmem:[%s2979 + $0x38] sm:$0xf]
      %v2990 = vld [vmem:[%s2979 + $0x3c] sm:$0xff]
      %v2991 = vld [vmem:[%s2979 + $0x44] sm:$0xf]
      %v2992 = vld [vmem:[%s2979 + $0x48] sm:$0xff]
      %v2993 = vld [vmem:[%s2979 + $0x50] sm:$0xf]
      %v2994 = vld [vmem:[%s2979 + $0x54] sm:$0xff]
      %v2995 = vld [vmem:[%s2979 + $0x5c] sm:$0xf]
      %v2996 = vld [vmem:[%s2979 + $0x60] sm:$0xff]
      %v2997 = vld [vmem:[%s2979 + $0x68] sm:$0xf]
      %v2998 = vld [vmem:[%s2979 + $0x6c] sm:$0xff]
      %v2999 = vld [vmem:[%s2979 + $0x74] sm:$0xf]
      %v3000 = vld [vmem:[%s2979 + $0x78] sm:$0xff]
      %v3001 = vld [vmem:[%s2979 + $0x80] sm:$0xf]
      %v3002 = vld [vmem:[%s2979 + $0x84] sm:$0xff]
      %v3003 = vld [vmem:[%s2979 + $0x8c] sm:$0xf]
      %v3004 = vld [vmem:[%s2979 + $0x90] sm:$0xff]
      %v3005 = vld [vmem:[%s2979 + $0x98] sm:$0xf]
      %v3006 = vld [vmem:[%s2979 + $0x9c] sm:$0xff]
      %v3007 = vld [vmem:[%s2979 + $0xa4] sm:$0xf]
      %v3008 = vld [vmem:[%s2979 + $0xa8] sm:$0xff]
      %v3009 = vld [vmem:[%s2979 + $0xb0] sm:$0xf]
      %v3010 = vld [vmem:[%s2979 + $0xb4] sm:$0xff]
      %v3011 = vld [vmem:[%s2979 + $0xbc] sm:$0xf]
      %v3044 = vunpack.c.l.b16 %v2980
      %v3045 = vunpack.c.h.b16 %v2980
      %v3046 = vunpack.c.l.b16 %v2981
      %v3047 = vunpack.c.l.b16 %v2982
      %v3048 = vunpack.c.h.b16 %v2982
      %v3049 = vunpack.c.l.b16 %v2983
      %v3050 = vunpack.c.l.b16 %v2984
      %v3051 = vunpack.c.h.b16 %v2984
      %v3052 = vunpack.c.l.b16 %v2985
      %v3053 = vunpack.c.l.b16 %v2986
      %v3054 = vunpack.c.h.b16 %v2986
      %v3055 = vunpack.c.l.b16 %v2987
      %v3056 = vunpack.c.l.b16 %v2988
      %v3057 = vunpack.c.h.b16 %v2988
      %v3058 = vunpack.c.l.b16 %v2989
      %v3059 = vunpack.c.l.b16 %v2990
      %v3060 = vunpack.c.h.b16 %v2990
      %v3061 = vunpack.c.l.b16 %v2991
      %v3062 = vunpack.c.l.b16 %v2992
      %v3063 = vunpack.c.h.b16 %v2992
      %v3064 = vunpack.c.l.b16 %v2993
      %v3065 = vunpack.c.l.b16 %v2994
      %v3066 = vunpack.c.h.b16 %v2994
      %v3067 = vunpack.c.l.b16 %v2995
      %v3068 = vunpack.c.l.b16 %v2996
      %v3069 = vunpack.c.h.b16 %v2996
      %v3070 = vunpack.c.l.b16 %v2997
      %v3071 = vunpack.c.l.b16 %v2998
      %v3072 = vunpack.c.h.b16 %v2998
      %v3073 = vunpack.c.l.b16 %v2999
      %v3074 = vunpack.c.l.b16 %v3000
      %v3075 = vunpack.c.h.b16 %v3000
      %v3076 = vunpack.c.l.b16 %v3001
      %v3077 = vunpack.c.l.b16 %v3002
      %v3078 = vunpack.c.h.b16 %v3002
      %v3079 = vunpack.c.l.b16 %v3003
      %v3080 = vunpack.c.l.b16 %v3004
      %v3081 = vunpack.c.h.b16 %v3004
      %v3082 = vunpack.c.l.b16 %v3005
      %v3083 = vunpack.c.l.b16 %v3006
      %v3084 = vunpack.c.h.b16 %v3006
      %v3085 = vunpack.c.l.b16 %v3007
      %v3086 = vunpack.c.l.b16 %v3008
      %v3087 = vunpack.c.h.b16 %v3008
      %v3088 = vunpack.c.l.b16 %v3009
      %v3089 = vunpack.c.l.b16 %v3010
      %v3090 = vunpack.c.h.b16 %v3010
      %v3091 = vunpack.c.l.b16 %v3011
      %v3092 = vpack.c.b16 %v3047, %v3044
      %v3093 = vpack.c.b16 %v3048, %v3045
      %v3094 = vpack.c.b16 %v3049, %v3046
      %v3095 = vpack.c.b16 %v3053, %v3050
      %v3096 = vpack.c.b16 %v3054, %v3051
      %v3097 = vpack.c.b16 %v3055, %v3052
      %v3098 = vpack.c.b16 %v3059, %v3056
      %v3099 = vpack.c.b16 %v3060, %v3057
      %v3100 = vpack.c.b16 %v3061, %v3058
      %v3101 = vpack.c.b16 %v3065, %v3062
      %v3102 = vpack.c.b16 %v3066, %v3063
      %v3103 = vpack.c.b16 %v3067, %v3064
      %v3104 = vpack.c.b16 %v3071, %v3068
      %v3105 = vpack.c.b16 %v3072, %v3069
      %v3106 = vpack.c.b16 %v3073, %v3070
      %v3107 = vpack.c.b16 %v3077, %v3074
      %v3108 = vpack.c.b16 %v3078, %v3075
      %v3109 = vpack.c.b16 %v3079, %v3076
      %v3110 = vpack.c.b16 %v3083, %v3080
      %v3111 = vpack.c.b16 %v3084, %v3081
      %v3112 = vpack.c.b16 %v3085, %v3082
      %v3113 = vpack.c.b16 %v3089, %v3086
      %v3114 = vpack.c.b16 %v3090, %v3087
      %v3115 = vpack.c.b16 %v3091, %v3088
      %3140 = vmatpush.bf16.msra.mxu0 %v3113
      %3141 = vmatpush.bf16.msra.mxu0 %v3110
      %3142 = vmatpush.bf16.msra.mxu0 %v3107
      %3143 = vmatpush.bf16.msra.mxu0 %v3104
      %3144 = vmatpush.bf16.msra.mxu0 %v3101
      %3145 = vmatpush.bf16.msra.mxu0 %v3098
      %3146 = vmatpush.bf16.msra.mxu0 %v3095
      %3147 = vmatpush.bf16.msra.mxu0 %v3092
      %3148 = vmatmul.bf16.gmra.mxu0 %v2978
      %v3149 = vpop.f32.mrf.mxu0
      %v3150 = vadd.f32 0.0, %v3149
      %v3151 = vpop.f32.mrf.mxu0
      %3152 = vdwg.mxu0
      %3153 = vmatpush.bf16.msra.mxu0 %v3114
      %3154 = vmatpush.bf16.msra.mxu0 %v3111
      %3155 = vmatpush.bf16.msra.mxu0 %v3108
      %3156 = vmatpush.bf16.msra.mxu0 %v3105
      %3157 = vmatpush.bf16.msra.mxu0 %v3102
      %3158 = vmatpush.bf16.msra.mxu0 %v3099
      %3159 = vmatpush.bf16.msra.mxu0 %v3096
      %3160 = vmatpush.bf16.msra.mxu0 %v3093
      %3161 = vmatmul.bf16.gmra.mxu0 %v2978
      %v3162 = vpop.f32.mrf.mxu0
      %v3163 = vadd.f32 0.0, %v3162
      %v3164 = vpop.f32.mrf.mxu0
      %3165 = vdwg.mxu0
      %3166 = vmatpush.bf16.msra.mxu0 %v3115
      %3167 = vmatpush.bf16.msra.mxu0 %v3112
      %3168 = vmatpush.bf16.msra.mxu0 %v3109
      %3169 = vmatpush.bf16.msra.mxu0 %v3106
      %3170 = vmatpush.bf16.msra.mxu0 %v3103
      %3171 = vmatpush.bf16.msra.mxu0 %v3100
      %3172 = vmatpush.bf16.msra.mxu0 %v3097
      %3173 = vmatpush.bf16.msra.mxu0 %v3094
      %3174 = vmatmul.bf16.gmra.mxu0 %v2978
      %v3175 = vpop.f32.mrf.mxu0
      %v3176 = vadd.f32 0.0, %v3175
      %v3177 = vpop.f32.mrf.mxu0
      %3178 = vdwg.mxu0
      %v3211 = vunpack.c.l.b16 %v2945
      %v3212 = vunpack.c.h.b16 %v2945
      %v3213 = vunpack.c.l.b16 %v2946
      %v3214 = vunpack.c.l.b16 %v2947
      %v3215 = vunpack.c.h.b16 %v2947
      %v3216 = vunpack.c.l.b16 %v2948
      %v3217 = vunpack.c.l.b16 %v2949
      %v3218 = vunpack.c.h.b16 %v2949
      %v3219 = vunpack.c.l.b16 %v2950
      %v3220 = vunpack.c.l.b16 %v2951
      %v3221 = vunpack.c.h.b16 %v2951
      %v3222 = vunpack.c.l.b16 %v2952
      %v3223 = vunpack.c.l.b16 %v2953
      %v3224 = vunpack.c.h.b16 %v2953
      %v3225 = vunpack.c.l.b16 %v2954
      %v3226 = vunpack.c.l.b16 %v2955
      %v3227 = vunpack.c.h.b16 %v2955
      %v3228 = vunpack.c.l.b16 %v2956
      %v3229 = vunpack.c.l.b16 %v2957
      %v3230 = vunpack.c.h.b16 %v2957
      %v3231 = vunpack.c.l.b16 %v2958
      %v3232 = vunpack.c.l.b16 %v2959
      %v3233 = vunpack.c.h.b16 %v2959
      %v3234 = vunpack.c.l.b16 %v2960
      %v3235 = vunpack.c.l.b16 %v2961
      %v3236 = vunpack.c.h.b16 %v2961
      %v3237 = vunpack.c.l.b16 %v2962
      %v3238 = vunpack.c.l.b16 %v2963
      %v3239 = vunpack.c.h.b16 %v2963
      %v3240 = vunpack.c.l.b16 %v2964
      %v3241 = vunpack.c.l.b16 %v2965
      %v3242 = vunpack.c.h.b16 %v2965
      %v3243 = vunpack.c.l.b16 %v2966
      %v3244 = vunpack.c.l.b16 %v2967
      %v3245 = vunpack.c.h.b16 %v2967
      %v3246 = vunpack.c.l.b16 %v2968
      %v3247 = vunpack.c.l.b16 %v2969
      %v3248 = vunpack.c.h.b16 %v2969
      %v3249 = vunpack.c.l.b16 %v2970
      %v3250 = vunpack.c.l.b16 %v2971
      %v3251 = vunpack.c.h.b16 %v2971
      %v3252 = vunpack.c.l.b16 %v2972
      %v3253 = vunpack.c.l.b16 %v2973
      %v3254 = vunpack.c.h.b16 %v2973
      %v3255 = vunpack.c.l.b16 %v2974
      %v3256 = vunpack.c.l.b16 %v2975
      %v3257 = vunpack.c.h.b16 %v2975
      %v3258 = vunpack.c.l.b16 %v2976
      %v3259 = vpack.c.b16 %v3214, %v3211
      %v3260 = vpack.c.b16 %v3215, %v3212
      %v3261 = vpack.c.b16 %v3216, %v3213
      %v3262 = vpack.c.b16 %v3220, %v3217
      %v3263 = vpack.c.b16 %v3221, %v3218
      %v3264 = vpack.c.b16 %v3222, %v3219
      %v3265 = vpack.c.b16 %v3226, %v3223
      %v3266 = vpack.c.b16 %v3227, %v3224
      %v3267 = vpack.c.b16 %v3228, %v3225
      %v3268 = vpack.c.b16 %v3232, %v3229
      %v3269 = vpack.c.b16 %v3233, %v3230
      %v3270 = vpack.c.b16 %v3234, %v3231
      %v3271 = vpack.c.b16 %v3238, %v3235
      %v3272 = vpack.c.b16 %v3239, %v3236
      %v3273 = vpack.c.b16 %v3240, %v3237
      %v3274 = vpack.c.b16 %v3244, %v3241
      %v3275 = vpack.c.b16 %v3245, %v3242
      %v3276 = vpack.c.b16 %v3246, %v3243
      %v3277 = vpack.c.b16 %v3250, %v3247
      %v3278 = vpack.c.b16 %v3251, %v3248
      %v3279 = vpack.c.b16 %v3252, %v3249
      %v3280 = vpack.c.b16 %v3256, %v3253
      %v3281 = vpack.c.b16 %v3257, %v3254
      %v3282 = vpack.c.b16 %v3258, %v3255
      %3307 = vmatpush.bf16.msra.mxu0 %v3280
      %3308 = vmatpush.bf16.msra.mxu0 %v3277
      %3309 = vmatpush.bf16.msra.mxu0 %v3274
      %3310 = vmatpush.bf16.msra.mxu0 %v3271
      %3311 = vmatpush.bf16.msra.mxu0 %v3268
      %3312 = vmatpush.bf16.msra.mxu0 %v3265
      %3313 = vmatpush.bf16.msra.mxu0 %v3262
      %3314 = vmatpush.bf16.msra.mxu0 %v3259
      %3315 = vmatmul.bf16.gmra.mxu0 %v2944
      %v3316 = vpop.f32.mrf.mxu0
      %v3317 = vadd.f32 %v3150, %v3316
      %v3318 = vpop.f32.mrf.mxu0
      %3319 = vdwg.mxu0
      %3320 = vmatpush.bf16.msra.mxu0 %v3281
      %3321 = vmatpush.bf16.msra.mxu0 %v3278
      %3322 = vmatpush.bf16.msra.mxu0 %v3275
      %3323 = vmatpush.bf16.msra.mxu0 %v3272
      %3324 = vmatpush.bf16.msra.mxu0 %v3269
      %3325 = vmatpush.bf16.msra.mxu0 %v3266
      %3326 = vmatpush.bf16.msra.mxu0 %v3263
      %3327 = vmatpush.bf16.msra.mxu0 %v3260
      %3328 = vmatmul.bf16.gmra.mxu0 %v2944
      %v3329 = vpop.f32.mrf.mxu0
      %v3330 = vadd.f32 %v3163, %v3329
      %v3331 = vpop.f32.mrf.mxu0
      %3332 = vdwg.mxu0
      %3333 = vmatpush.bf16.msra.mxu0 %v3282
      %3334 = vmatpush.bf16.msra.mxu0 %v3279
      %3335 = vmatpush.bf16.msra.mxu0 %v3276
      %3336 = vmatpush.bf16.msra.mxu0 %v3273
      %3337 = vmatpush.bf16.msra.mxu0 %v3270
      %3338 = vmatpush.bf16.msra.mxu0 %v3267
      %3339 = vmatpush.bf16.msra.mxu0 %v3264
      %3340 = vmatpush.bf16.msra.mxu0 %v3261
      %3341 = vmatmul.bf16.gmra.mxu0 %v2944
      %v3342 = vpop.f32.mrf.mxu0
      %v3343 = vadd.f32 %v3176, %v3342
      %v3344 = vpop.f32.mrf.mxu0
      %3345 = vdwg.mxu0
      %v3346 = vpack.c.bf16 %v2940, %v2940
      %s3347 = scalar_lea.vmem [#allocation22], 384
      %v3348 = vld [vmem:[%s3347] sm:$0xff]
      %v3349 = vld [vmem:[%s3347 + $0x8] sm:$0xf]
      %v3350 = vld [vmem:[%s3347 + $0xc] sm:$0xff]
      %v3351 = vld [vmem:[%s3347 + $0x14] sm:$0xf]
      %v3352 = vld [vmem:[%s3347 + $0x18] sm:$0xff]
      %v3353 = vld [vmem:[%s3347 + $0x20] sm:$0xf]
      %v3354 = vld [vmem:[%s3347 + $0x24] sm:$0xff]
      %v3355 = vld [vmem:[%s3347 + $0x2c] sm:$0xf]
      %v3356 = vld [vmem:[%s3347 + $0x30] sm:$0xff]
      %v3357 = vld [vmem:[%s3347 + $0x38] sm:$0xf]
      %v3358 = vld [vmem:[%s3347 + $0x3c] sm:$0xff]
      %v3359 = vld [vmem:[%s3347 + $0x44] sm:$0xf]
      %v3360 = vld [vmem:[%s3347 + $0x48] sm:$0xff]
      %v3361 = vld [vmem:[%s3347 + $0x50] sm:$0xf]
      %v3362 = vld [vmem:[%s3347 + $0x54] sm:$0xff]
      %v3363 = vld [vmem:[%s3347 + $0x5c] sm:$0xf]
      %v3364 = vld [vmem:[%s3347 + $0x60] sm:$0xff]
      %v3365 = vld [vmem:[%s3347 + $0x68] sm:$0xf]
      %v3366 = vld [vmem:[%s3347 + $0x6c] sm:$0xff]
      %v3367 = vld [vmem:[%s3347 + $0x74] sm:$0xf]
      %v3368 = vld [vmem:[%s3347 + $0x78] sm:$0xff]
      %v3369 = vld [vmem:[%s3347 + $0x80] sm:$0xf]
      %v3370 = vld [vmem:[%s3347 + $0x84] sm:$0xff]
      %v3371 = vld [vmem:[%s3347 + $0x8c] sm:$0xf]
      %v3372 = vld [vmem:[%s3347 + $0x90] sm:$0xff]
      %v3373 = vld [vmem:[%s3347 + $0x98] sm:$0xf]
      %v3374 = vld [vmem:[%s3347 + $0x9c] sm:$0xff]
      %v3375 = vld [vmem:[%s3347 + $0xa4] sm:$0xf]
      %v3376 = vld [vmem:[%s3347 + $0xa8] sm:$0xff]
      %v3377 = vld [vmem:[%s3347 + $0xb0] sm:$0xf]
      %v3378 = vld [vmem:[%s3347 + $0xb4] sm:$0xff]
      %v3379 = vld [vmem:[%s3347 + $0xbc] sm:$0xf]
      %v3412 = vunpack.c.l.b16 %v3348
      %v3413 = vunpack.c.h.b16 %v3348
      %v3414 = vunpack.c.l.b16 %v3349
      %v3415 = vunpack.c.l.b16 %v3350
      %v3416 = vunpack.c.h.b16 %v3350
      %v3417 = vunpack.c.l.b16 %v3351
      %v3418 = vunpack.c.l.b16 %v3352
      %v3419 = vunpack.c.h.b16 %v3352
      %v3420 = vunpack.c.l.b16 %v3353
      %v3421 = vunpack.c.l.b16 %v3354
      %v3422 = vunpack.c.h.b16 %v3354
      %v3423 = vunpack.c.l.b16 %v3355
      %v3424 = vunpack.c.l.b16 %v3356
      %v3425 = vunpack.c.h.b16 %v3356
      %v3426 = vunpack.c.l.b16 %v3357
      %v3427 = vunpack.c.l.b16 %v3358
      %v3428 = vunpack.c.h.b16 %v3358
      %v3429 = vunpack.c.l.b16 %v3359
      %v3430 = vunpack.c.l.b16 %v3360
      %v3431 = vunpack.c.h.b16 %v3360
      %v3432 = vunpack.c.l.b16 %v3361
      %v3433 = vunpack.c.l.b16 %v3362
      %v3434 = vunpack.c.h.b16 %v3362
      %v3435 = vunpack.c.l.b16 %v3363
      %v3436 = vunpack.c.l.b16 %v3364
      %v3437 = vunpack.c.h.b16 %v3364
      %v3438 = vunpack.c.l.b16 %v3365
      %v3439 = vunpack.c.l.b16 %v3366
      %v3440 = vunpack.c.h.b16 %v3366
      %v3441 = vunpack.c.l.b16 %v3367
      %v3442 = vunpack.c.l.b16 %v3368
      %v3443 = vunpack.c.h.b16 %v3368
      %v3444 = vunpack.c.l.b16 %v3369
      %v3445 = vunpack.c.l.b16 %v3370
      %v3446 = vunpack.c.h.b16 %v3370
      %v3447 = vunpack.c.l.b16 %v3371
      %v3448 = vunpack.c.l.b16 %v3372
      %v3449 = vunpack.c.h.b16 %v3372
      %v3450 = vunpack.c.l.b16 %v3373
      %v3451 = vunpack.c.l.b16 %v3374
      %v3452 = vunpack.c.h.b16 %v3374
      %v3453 = vunpack.c.l.b16 %v3375
      %v3454 = vunpack.c.l.b16 %v3376
      %v3455 = vunpack.c.h.b16 %v3376
      %v3456 = vunpack.c.l.b16 %v3377
      %v3457 = vunpack.c.l.b16 %v3378
      %v3458 = vunpack.c.h.b16 %v3378
      %v3459 = vunpack.c.l.b16 %v3379
      %v3460 = vpack.c.b16 %v3415, %v3412
      %v3461 = vpack.c.b16 %v3416, %v3413
      %v3462 = vpack.c.b16 %v3417, %v3414
      %v3463 = vpack.c.b16 %v3421, %v3418
      %v3464 = vpack.c.b16 %v3422, %v3419
      %v3465 = vpack.c.b16 %v3423, %v3420
      %v3466 = vpack.c.b16 %v3427, %v3424
      %v3467 = vpack.c.b16 %v3428, %v3425
      %v3468 = vpack.c.b16 %v3429, %v3426
      %v3469 = vpack.c.b16 %v3433, %v3430
      %v3470 = vpack.c.b16 %v3434, %v3431
      %v3471 = vpack.c.b16 %v3435, %v3432
      %v3472 = vpack.c.b16 %v3439, %v3436
      %v3473 = vpack.c.b16 %v3440, %v3437
      %v3474 = vpack.c.b16 %v3441, %v3438
      %v3475 = vpack.c.b16 %v3445, %v3442
      %v3476 = vpack.c.b16 %v3446, %v3443
      %v3477 = vpack.c.b16 %v3447, %v3444
      %v3478 = vpack.c.b16 %v3451, %v3448
      %v3479 = vpack.c.b16 %v3452, %v3449
      %v3480 = vpack.c.b16 %v3453, %v3450
      %v3481 = vpack.c.b16 %v3457, %v3454
      %v3482 = vpack.c.b16 %v3458, %v3455
      %v3483 = vpack.c.b16 %v3459, %v3456
      %3508 = vmatpush.bf16.msra.mxu0 %v3481
      %3509 = vmatpush.bf16.msra.mxu0 %v3478
      %3510 = vmatpush.bf16.msra.mxu0 %v3475
      %3511 = vmatpush.bf16.msra.mxu0 %v3472
      %3512 = vmatpush.bf16.msra.mxu0 %v3469
      %3513 = vmatpush.bf16.msra.mxu0 %v3466
      %3514 = vmatpush.bf16.msra.mxu0 %v3463
      %3515 = vmatpush.bf16.msra.mxu0 %v3460
      %3516 = vmatmul.bf16.gmra.mxu0 %v3346
      %v3517 = vpop.f32.mrf.mxu0
      %v3518 = vadd.f32 0.0, %v3517
      %v3519 = vpop.f32.mrf.mxu0
      %3520 = vdwg.mxu0
      %3521 = vmatpush.bf16.msra.mxu0 %v3482
      %3522 = vmatpush.bf16.msra.mxu0 %v3479
      %3523 = vmatpush.bf16.msra.mxu0 %v3476
      %3524 = vmatpush.bf16.msra.mxu0 %v3473
      %3525 = vmatpush.bf16.msra.mxu0 %v3470
      %3526 = vmatpush.bf16.msra.mxu0 %v3467
      %3527 = vmatpush.bf16.msra.mxu0 %v3464
      %3528 = vmatpush.bf16.msra.mxu0 %v3461
      %3529 = vmatmul.bf16.gmra.mxu0 %v3346
      %v3530 = vpop.f32.mrf.mxu0
      %v3531 = vadd.f32 0.0, %v3530
      %v3532 = vpop.f32.mrf.mxu0
      %3533 = vdwg.mxu0
      %3534 = vmatpush.bf16.msra.mxu0 %v3483
      %3535 = vmatpush.bf16.msra.mxu0 %v3480
      %3536 = vmatpush.bf16.msra.mxu0 %v3477
      %3537 = vmatpush.bf16.msra.mxu0 %v3474
      %3538 = vmatpush.bf16.msra.mxu0 %v3471
      %3539 = vmatpush.bf16.msra.mxu0 %v3468
      %3540 = vmatpush.bf16.msra.mxu0 %v3465
      %3541 = vmatpush.bf16.msra.mxu0 %v3462
      %3542 = vmatmul.bf16.gmra.mxu0 %v3346
      %v3543 = vpop.f32.mrf.mxu0
      %v3544 = vadd.f32 0.0, %v3543
      %v3545 = vpop.f32.mrf.mxu0
      %3546 = vdwg.mxu0
      %v3547 = vadd.f32 %v3317, %v3518
      %v3548 = vadd.f32 %v3330, %v3531
      %v3549 = vadd.f32 %v3343, %v3544
      %v3550 = vld [vmem:[%s12] sm:$0x7]
      %v3552 = vperm.slane %v3550, 0
      %v3553 = vperm.slane %v3550, 1
      %v3554 = vperm.slane %v3550, 2
      %v3558 = vadd.f32 %v3547, %v3552
      %v3559 = vadd.f32 %v3548, %v3553
      %v3560 = vadd.f32 %v3549, %v3554
      %v3561 = vmax.f32 %v3558, 0.0
      %v3562 = vmax.f32 %v3559, 0.0
      %v3563 = vmax.f32 %v3560, 0.0
      %v3564 = vpack.c.bf16 %v3561, %v3561
      %v3565 = vpack.c.bf16 %v3562, %v3562
      %v3566 = vpack.c.bf16 %v3563, %v3563
      %v3567 = vld [vmem:[#allocation23] sm:$0xf]
      %v3568 = vld [vmem:[#allocation23 + $0x4] sm:$0xf]
      %v3569 = vld [vmem:[#allocation23 + $0x8] sm:$0xf]
      %v3570 = vld [vmem:[#allocation23 + $0xc] sm:$0xf]
      %v3571 = vld [vmem:[#allocation23 + $0x10] sm:$0xf]
      %v3572 = vld [vmem:[#allocation23 + $0x14] sm:$0xf]
      %v3573 = vld [vmem:[#allocation23 + $0x18] sm:$0xf]
      %v3574 = vld [vmem:[#allocation23 + $0x1c] sm:$0xf]
      %v3575 = vld [vmem:[#allocation23 + $0x20] sm:$0xf]
      %v3576 = vld [vmem:[#allocation23 + $0x24] sm:$0xf]
      %v3577 = vld [vmem:[#allocation23 + $0x28] sm:$0xf]
      %v3578 = vld [vmem:[#allocation23 + $0x2c] sm:$0xf]
      %v3579 = vld [vmem:[#allocation23 + $0x30] sm:$0xf]
      %v3580 = vld [vmem:[#allocation23 + $0x34] sm:$0xf]
      %v3581 = vld [vmem:[#allocation23 + $0x38] sm:$0xf]
      %v3582 = vld [vmem:[#allocation23 + $0x3c] sm:$0xf]
      %v3583 = vld [vmem:[#allocation23 + $0x40] sm:$0xf]
      %v3584 = vld [vmem:[#allocation23 + $0x44] sm:$0xf]
      %v3585 = vld [vmem:[#allocation23 + $0x48] sm:$0xf]
      %v3586 = vld [vmem:[#allocation23 + $0x4c] sm:$0xf]
      %v3587 = vld [vmem:[#allocation23 + $0x50] sm:$0xf]
      %v3588 = vld [vmem:[#allocation23 + $0x54] sm:$0xf]
      %v3589 = vld [vmem:[#allocation23 + $0x58] sm:$0xf]
      %v3590 = vld [vmem:[#allocation23 + $0x5c] sm:$0xf]
      %v3591 = vld [vmem:[#allocation23 + $0x60] sm:$0xf]
      %v3592 = vld [vmem:[#allocation23 + $0x64] sm:$0xf]
      %v3593 = vld [vmem:[#allocation23 + $0x68] sm:$0xf]
      %v3594 = vld [vmem:[#allocation23 + $0x6c] sm:$0xf]
      %v3595 = vld [vmem:[#allocation23 + $0x70] sm:$0xf]
      %v3596 = vld [vmem:[#allocation23 + $0x74] sm:$0xf]
      %v3597 = vld [vmem:[#allocation23 + $0x78] sm:$0xf]
      %v3598 = vld [vmem:[#allocation23 + $0x7c] sm:$0xf]
      %v3599 = vld [vmem:[#allocation23 + $0x80] sm:$0xf]
      %v3600 = vld [vmem:[#allocation23 + $0x84] sm:$0xf]
      %v3601 = vld [vmem:[#allocation23 + $0x88] sm:$0xf]
      %v3602 = vld [vmem:[#allocation23 + $0x8c] sm:$0xf]
      %v3603 = vld [vmem:[#allocation23 + $0x90] sm:$0xf]
      %v3604 = vld [vmem:[#allocation23 + $0x94] sm:$0xf]
      %v3605 = vld [vmem:[#allocation23 + $0x98] sm:$0xf]
      %v3606 = vld [vmem:[#allocation23 + $0x9c] sm:$0xf]
      %v3607 = vld [vmem:[#allocation23 + $0xa0] sm:$0xf]
      %v3608 = vld [vmem:[#allocation23 + $0xa4] sm:$0xf]
      %v3609 = vld [vmem:[#allocation23 + $0xa8] sm:$0xf]
      %v3610 = vld [vmem:[#allocation23 + $0xac] sm:$0xf]
      %v3611 = vld [vmem:[#allocation23 + $0xb0] sm:$0xf]
      %v3612 = vld [vmem:[#allocation23 + $0xb4] sm:$0xf]
      %v3613 = vld [vmem:[#allocation23 + $0xb8] sm:$0xf]
      %v3614 = vld [vmem:[#allocation23 + $0xbc] sm:$0xf]
      %v3615 = vld [vmem:[%s14] sm:$0x1]
      %v3617 = vperm.slane %v3615, 0
      %v3667 = vunpack.c.l.b16 %v3567
      %v3668 = vunpack.c.l.b16 %v3568
      %v3669 = vunpack.c.l.b16 %v3569
      %v3670 = vunpack.c.l.b16 %v3570
      %v3671 = vunpack.c.l.b16 %v3571
      %v3672 = vunpack.c.l.b16 %v3572
      %v3673 = vunpack.c.l.b16 %v3573
      %v3674 = vunpack.c.l.b16 %v3574
      %v3675 = vunpack.c.l.b16 %v3575
      %v3676 = vunpack.c.l.b16 %v3576
      %v3677 = vunpack.c.l.b16 %v3577
      %v3678 = vunpack.c.l.b16 %v3578
      %v3679 = vunpack.c.l.b16 %v3579
      %v3680 = vunpack.c.l.b16 %v3580
      %v3681 = vunpack.c.l.b16 %v3581
      %v3682 = vunpack.c.l.b16 %v3582
      %v3683 = vunpack.c.l.b16 %v3583
      %v3684 = vunpack.c.l.b16 %v3584
      %v3685 = vunpack.c.l.b16 %v3585
      %v3686 = vunpack.c.l.b16 %v3586
      %v3687 = vunpack.c.l.b16 %v3587
      %v3688 = vunpack.c.l.b16 %v3588
      %v3689 = vunpack.c.l.b16 %v3589
      %v3690 = vunpack.c.l.b16 %v3590
      %v3691 = vunpack.c.l.b16 %v3591
      %v3692 = vunpack.c.l.b16 %v3592
      %v3693 = vunpack.c.l.b16 %v3593
      %v3694 = vunpack.c.l.b16 %v3594
      %v3695 = vunpack.c.l.b16 %v3595
      %v3696 = vunpack.c.l.b16 %v3596
      %v3697 = vunpack.c.l.b16 %v3597
      %v3698 = vunpack.c.l.b16 %v3598
      %v3699 = vunpack.c.l.b16 %v3599
      %v3700 = vunpack.c.l.b16 %v3600
      %v3701 = vunpack.c.l.b16 %v3601
      %v3702 = vunpack.c.l.b16 %v3602
      %v3703 = vunpack.c.l.b16 %v3603
      %v3704 = vunpack.c.l.b16 %v3604
      %v3705 = vunpack.c.l.b16 %v3605
      %v3706 = vunpack.c.l.b16 %v3606
      %v3707 = vunpack.c.l.b16 %v3607
      %v3708 = vunpack.c.l.b16 %v3608
      %v3709 = vunpack.c.l.b16 %v3609
      %v3710 = vunpack.c.l.b16 %v3610
      %v3711 = vunpack.c.l.b16 %v3611
      %v3712 = vunpack.c.l.b16 %v3612
      %v3713 = vunpack.c.l.b16 %v3613
      %v3714 = vunpack.c.l.b16 %v3614
      %v3715 = vpack.c.b16 %v3668, %v3667
      %v3716 = vpack.c.b16 %v3670, %v3669
      %v3717 = vpack.c.b16 %v3672, %v3671
      %v3718 = vpack.c.b16 %v3674, %v3673
      %v3719 = vpack.c.b16 %v3676, %v3675
      %v3720 = vpack.c.b16 %v3678, %v3677
      %v3721 = vpack.c.b16 %v3680, %v3679
      %v3722 = vpack.c.b16 %v3682, %v3681
      %v3723 = vpack.c.b16 %v3684, %v3683
      %v3724 = vpack.c.b16 %v3686, %v3685
      %v3725 = vpack.c.b16 %v3688, %v3687
      %v3726 = vpack.c.b16 %v3690, %v3689
      %v3727 = vpack.c.b16 %v3692, %v3691
      %v3728 = vpack.c.b16 %v3694, %v3693
      %v3729 = vpack.c.b16 %v3696, %v3695
      %v3730 = vpack.c.b16 %v3698, %v3697
      %v3731 = vpack.c.b16 %v3700, %v3699
      %v3732 = vpack.c.b16 %v3702, %v3701
      %v3733 = vpack.c.b16 %v3704, %v3703
      %v3734 = vpack.c.b16 %v3706, %v3705
      %v3735 = vpack.c.b16 %v3708, %v3707
      %v3736 = vpack.c.b16 %v3710, %v3709
      %v3737 = vpack.c.b16 %v3712, %v3711
      %v3738 = vpack.c.b16 %v3714, %v3713
      %3763 = vmatpush.bf16.msra.mxu0 %v3722
      %3764 = vmatpush.bf16.msra.mxu0 %v3721
      %3765 = vmatpush.bf16.msra.mxu0 %v3720
      %3766 = vmatpush.bf16.msra.mxu0 %v3719
      %3767 = vmatpush.bf16.msra.mxu0 %v3718
      %3768 = vmatpush.bf16.msra.mxu0 %v3717
      %3769 = vmatpush.bf16.msra.mxu0 %v3716
      %3770 = vmatpush.bf16.msra.mxu0 %v3715
      %3771 = vmatmul.bf16.gmra.mxu0 %v3564
      %v3772 = vpop.f32.mrf.mxu0
      %v3773 = vadd.f32 %v3617, %v3772
      %v3774 = vpop.f32.mrf.mxu0
      %3775 = vdwg.mxu0
      %3776 = vmatpush.bf16.msra.mxu0 %v3730
      %3777 = vmatpush.bf16.msra.mxu0 %v3729
      %3778 = vmatpush.bf16.msra.mxu0 %v3728
      %3779 = vmatpush.bf16.msra.mxu0 %v3727
      %3780 = vmatpush.bf16.msra.mxu0 %v3726
      %3781 = vmatpush.bf16.msra.mxu0 %v3725
      %3782 = vmatpush.bf16.msra.mxu0 %v3724
      %3783 = vmatpush.bf16.msra.mxu0 %v3723
      %3784 = vmatmul.bf16.gmra.mxu0 %v3565
      %v3785 = vpop.f32.mrf.mxu0
      %v3786 = vadd.f32 %v3773, %v3785
      %v3787 = vpop.f32.mrf.mxu0
      %3788 = vdwg.mxu0
      %3789 = vmatpush.bf16.msra.mxu0 %v3738
      %3790 = vmatpush.bf16.msra.mxu0 %v3737
      %3791 = vmatpush.bf16.msra.mxu0 %v3736
      %3792 = vmatpush.bf16.msra.mxu0 %v3735
      %3793 = vmatpush.bf16.msra.mxu0 %v3734
      %3794 = vmatpush.bf16.msra.mxu0 %v3733
      %3795 = vmatpush.bf16.msra.mxu0 %v3732
      %3796 = vmatpush.bf16.msra.mxu0 %v3731
      %3797 = vmatmul.bf16.gmra.mxu0 %v3566
      %v3798 = vpop.f32.mrf.mxu0
      %v3799 = vadd.f32 %v3786, %v3798
      %v3800 = vpop.f32.mrf.mxu0
      %3801 = vdwg.mxu0
      %3802 = vst [vmem:[#allocation25] sm:$0xff] %v3799
    $region117: #{tpu_custom_call.1} parent=1 // pred_fallthru
      _
    // Predicated region
    $region118: #{tpu_custom_call.1} parent=1 // pred_check
      _
    $region119: #{tpu_custom_call.1} parent=1 // pred_check_branch
      %3804 = sbr.rel (0) target = $region121
    $region120: #{tpu_custom_call.1} parent=1 // pred_region
      %3806 = vsyncadd [#allocation7], 0
      %s3808 = sshll.u32 [#allocation25], 4
      %s3809 = int_to_ptr.vmem [resolvable:$true] %s3808
      %s3810 = sshll.u32 %s15, 4
      %s3811 = int_to_ptr.hbm [resolvable:$true] %s3810
      %3813 = dma.vmem_to_hbm [thread:$0]  %s3809, 128, %s3811, [#allocation7]
    $region121: #{tpu_custom_call.1} parent=1 // pred_fallthru
      _
    // Predicated region
    $region122: #{tpu_custom_call.1} parent=1 // pred_check
      _
    $region123: #{tpu_custom_call.1} parent=1 // pred_check_branch
      %3815 = sbr.rel (0) target = $region125
    $region124: #{tpu_custom_call.1} parent=1 // pred_region
      %3817 = dma.done [#allocation7], 128
    $region125: #{tpu_custom_call.1} parent=1 // pred_fallthru
      _
    %3818 = vsyncpa [#allocation6], 1
    %3819 = vsyncpa [#allocation9], 1
    %3820 = vsyncpa [#allocation12], 1
    %3821 = vsyncpa [#allocation15], 1
    %3822 = vsyncpa [#allocation18], 1
    %3823 = vsyncpa [#allocation21], 1
    %3824 = vsyncpa [#allocation24], 1
    %3825 = vsyncpa [#allocation7], 1

</llo_original>
